<compile_context>
chip_gen: v6e
topology: v6e:2x2x1
jax: 0.10.0
libtpu: 0.0.40
codegen_flags: <defaults>
</compile_context>

<pallas_src>
import functools

import numpy as np
import jax
import jax.numpy as jnp
from jax.experimental import pallas as pl
from jax.experimental.pallas import tpu as pltpu


# ----------------------------------------------------------------------------
# Fused kernel: one grid step == one batch element.
# ----------------------------------------------------------------------------
def _fused_vit_kernel(vself_ref, patches_ref, wconv_ref, bconv_ref,
                      gamma_ref, beta_ref, wq_ref, bq_ref,
                      wkv_ref, bkv_ref, wproj_ref, bproj_ref, pbias_ref,
                      out_ref, attn_ref, *, s, n_head, eps=1e-5):
    f32 = jnp.float32
    Lq, d = vself_ref.shape                    # (h*w, d)
    Lk, _K = patches_ref.shape                 # (s*hp*wp, d*r*r)
    P = Lk // s                                # patches per frame (hp*wp)
    dk = d // n_head
    cg = d // n_head                           # GroupNorm group width (groups == n_head)

    # --- 1) Patch embedding: Conv2d(k=stride=ratio) as one im2col matmul (bf16 -> f32). ---
    conv = jnp.dot(patches_ref[...], wconv_ref[...],
                   preferred_element_type=f32) + bconv_ref[...]              # (Lk, d) f32

    # --- 2) GroupNorm(n_head, d): vectorized per-(frame, group) stats via indicator
    #        matmuls (MXU) — no scratch, no masked partial stores. -------------------
    row = jax.lax.broadcasted_iota(jnp.int32, (s, Lk), 1)
    frm = jax.lax.broadcasted_iota(jnp.int32, (s, Lk), 0)
    ind = ((row >= frm * P) & (row < (frm + 1) * P)).astype(f32)             # (s, Lk)
    rowT = jax.lax.broadcasted_iota(jnp.int32, (Lk, s), 0)
    frmT = jax.lax.broadcasted_iota(jnp.int32, (Lk, s), 1)
    indT = ((rowT >= frmT * P) & (rowT < (frmT + 1) * P)).astype(f32)        # (Lk, s)
    ch = jax.lax.broadcasted_iota(jnp.int32, (n_head, d), 1)
    grp = jax.lax.broadcasted_iota(jnp.int32, (n_head, d), 0)
    gind = ((ch >= grp * cg) & (ch < (grp + 1) * cg)).astype(f32)            # (n_head, d)
    chT = jax.lax.broadcasted_iota(jnp.int32, (d, n_head), 0)
    grpT = jax.lax.broadcasted_iota(jnp.int32, (d, n_head), 1)
    gindT = ((chT >= grpT * cg) & (chT < (grpT + 1) * cg)).astype(f32)       # (d, n_head)

    sums = jnp.dot(ind, conv, preferred_element_type=f32)                    # (s, d)
    sumsq = jnp.dot(ind, conv * conv, preferred_element_type=f32)            # (s, d)
    inv_n = 1.0 / float(P * cg)
    gmean = jnp.dot(sums, gindT, preferred_element_type=f32) * inv_n         # (s, n_head)
    gmsq = jnp.dot(sumsq, gindT, preferred_element_type=f32) * inv_n         # E[x^2]
    rstd = jax.lax.rsqrt(gmsq - gmean * gmean + eps)                         # (s, n_head)
    mean_sd = jnp.dot(gmean, gind, preferred_element_type=f32)               # (s, d)
    rstd_sd = jnp.dot(rstd, gind, preferred_element_type=f32)                # (s, d)
    a_sd = rstd_sd * gamma_ref[...]                                          # scale
    b_sd = beta_ref[...] - mean_sd * a_sd                                    # offset
    a_full = jnp.dot(indT, a_sd, preferred_element_type=f32)                 # (Lk, d)
    b_full = jnp.dot(indT, b_sd, preferred_element_type=f32)                 # (Lk, d)
    vn = conv * a_full + b_full                                              # (Lk, d) f32

    # --- 3) q / kv projections (temperature pre-folded into wq/bq in the wrapper). ---
    q = jnp.dot(vself_ref[...], wq_ref[...],
                preferred_element_type=f32) + bq_ref[...]                    # (Lq, d)
    kv = jnp.dot(vn.astype(jnp.bfloat16), wkv_ref[...],
                 preferred_element_type=f32) + bkv_ref[...]                  # (Lk, 2d)

    # --- 4) Per-head attention; output projection distributed over heads (no concat). --
    out_acc = jnp.zeros((Lq, d), f32)
    for hh in range(n_head):                   # static unroll (n_head == 2)
        qh = q[:, hh * dk:(hh + 1) * dk].astype(jnp.bfloat16)                # (Lq, dk)
        kh = kv[:, hh * dk:(hh + 1) * dk].astype(jnp.bfloat16)               # (Lk, dk)
        vh = kv[:, d + hh * dk:d + (hh + 1) * dk].astype(jnp.bfloat16)       # (Lk, dk)
        dots = jax.lax.dot_general(qh, kh, (((1,), (1,)), ((), ())),
                                   preferred_element_type=f32)               # (Lq, Lk)
        dots = dots + pbias_ref[hh].astype(f32)
        m = jnp.max(dots, axis=-1, keepdims=True)
        e = jnp.exp(dots - m)
        attn = e * pl.reciprocal(jnp.sum(e, axis=-1, keepdims=True), approx=True)
        attn_ref[hh, 0] = attn                                               # lane-dense store
        oh = jnp.dot(attn.astype(jnp.bfloat16), vh,
                     preferred_element_type=f32)                             # (Lq, dk)
        out_acc = out_acc + jnp.dot(oh.astype(jnp.bfloat16),
                                    wproj_ref[hh * dk:(hh + 1) * dk, :],
                                    preferred_element_type=f32)

    # TODO(synk): training-mode nn.Dropout on attn / proj output not implemented
    # (eval mode -> identity).
    out_ref[...] = out_acc + bproj_ref[...]


# ----------------------------------------------------------------------------
# Wrapper: glue (im2col, weight transposes, temperature folding, bf16 casts)
# fused under one jit, then the single fused pallas_call.
# ----------------------------------------------------------------------------
@functools.partial(jax.jit, static_argnames=("n_head", "ratio"))
def _vit_forward(x, conv_w, conv_b, gn_gamma, gn_beta, wq, bq, wkv, bkv,
                 proj_w, proj_b, pos_bias, *, n_head, ratio):
    b, s, d, h, w = x.shape
    dk = d // n_head
    hp, wp = h // ratio, w // ratio
    Lq, Lk, K = h * w, s * hp * wp, d * ratio * ratio
    temperature = float(dk) ** (-0.5)

    # v_self = x[:, 4] rearranged 'b c h w -> b (h w) c', cast to bf16 (fused by XLA).
    v_self = jnp.transpose(x[:, 4], (0, 2, 3, 1)).reshape(b, Lq, d).astype(jnp.bfloat16)

    # im2col for Conv2d(d, d, kernel=stride=ratio): (b, s*hp*wp, d*r*r), bf16.
    # TODO(synk): folding this layout change into the kernel DMA would need a 6-D
    # transpose of channels-first data inside Mosaic (or 32 strided mini-matmuls);
    # kept as one jit-fused XLA cast+copy instead.
    patches = x.reshape(b, s, d, hp, ratio, wp, ratio)
    patches = jnp.transpose(patches, (0, 1, 3, 5, 2, 4, 6)).reshape(b, Lk, K)
    patches = patches.astype(jnp.bfloat16)

    wconv_t = conv_w.reshape(d, K).T.astype(jnp.bfloat16)    # (K, d)
    bconv = conv_b.reshape(1, d).astype(jnp.float32)
    gamma = gn_gamma.reshape(1, d).astype(jnp.float32)
    beta = gn_beta.reshape(1, d).astype(jnp.float32)
    wq_t = (wq.T * temperature).astype(jnp.bfloat16)         # temperature folded into q proj
    bq_s = (bq * temperature).reshape(1, d).astype(jnp.float32)
    wkv_t = wkv.T.astype(jnp.bfloat16)                       # (d, 2d)
    bkv_s = bkv.reshape(1, 2 * d).astype(jnp.float32)
    wproj_t = proj_w.T.astype(jnp.bfloat16)                  # (d, d)
    bproj = proj_b.reshape(1, d).astype(jnp.float32)
    pbias = pos_bias[:, 0].astype(jnp.bfloat16)              # (H, Lq, Lk)

    flops = 2 * b * (Lk * K * d                    # conv
                     + 4 * s * Lk * d              # GN indicator matmuls (stats + broadcast)
                     + Lq * d * d                  # q
                     + Lk * d * 2 * d              # kv
                     + n_head * (2 * Lq * Lk * dk + Lq * dk * d))   # attention + proj
    transcendentals = b * n_head * Lq * (Lk + 1)
    bytes_in = (v_self.size + patches.size + wconv_t.size + wq_t.size
                + wkv_t.size + wproj_t.size + pbias.size) * 2 \
               + (bconv.size + gamma.size + beta.size + bq_s.size + bkv_s.size + bproj.size) * 4
    bytes_out = b * Lq * d * 4 + n_head * b * Lq * Lk * 4

    kernel = functools.partial(_fused_vit_kernel, s=s, n_head=n_head)
    out, attn = pl.pallas_call(
        kernel,
        out_shape=(
            jax.ShapeDtypeStruct((b, Lq, d), jnp.float32),
            jax.ShapeDtypeStruct((n_head, b, Lq, Lk), jnp.float32),
        ),
        grid=(b,),
        in_specs=[
            pl.BlockSpec((None, Lq, d), lambda i: (i, 0, 0)),        # v_self (bf16)
            pl.BlockSpec((None, Lk, K), lambda i: (i, 0, 0)),        # im2col patches (bf16)
            pl.BlockSpec((K, d), lambda i: (0, 0)),                  # conv weight^T (bf16)
            pl.BlockSpec((1, d), lambda i: (0, 0)),                  # conv bias
            pl.BlockSpec((1, d), lambda i: (0, 0)),                  # gn gamma
            pl.BlockSpec((1, d), lambda i: (0, 0)),                  # gn beta
            pl.BlockSpec((d, d), lambda i: (0, 0)),                  # wq^T * temperature (bf16)
            pl.BlockSpec((1, d), lambda i: (0, 0)),                  # bq * temperature
            pl.BlockSpec((d, 2 * d), lambda i: (0, 0)),              # wkv^T (bf16)
            pl.BlockSpec((1, 2 * d), lambda i: (0, 0)),              # bkv
            pl.BlockSpec((d, d), lambda i: (0, 0)),                  # proj^T (bf16)
            pl.BlockSpec((1, d), lambda i: (0, 0)),                  # proj bias
            pl.BlockSpec((n_head, Lq, Lk), lambda i: (0, 0, 0)),     # pos_bias (bf16)
        ],
        out_specs=(
            pl.BlockSpec((None, Lq, d), lambda i: (i, 0, 0)),
            pl.BlockSpec((n_head, 1, Lq, Lk), lambda i: (0, i, 0, 0)),
        ),
        compiler_params=pltpu.CompilerParams(dimension_semantics=("parallel",)),
        cost_estimate=pl.CostEstimate(flops=flops, transcendentals=transcendentals,
                                      bytes_accessed=bytes_in + bytes_out),
    )(v_self, patches, wconv_t, bconv, gamma, beta, wq_t, bq_s,
      wkv_t, bkv_s, wproj_t, bproj, pbias)

    return out.reshape(b, h, w, d), attn


def multihead_vit_nonself_pallas(x, params):
    return _vit_forward(
        x, params["conv_w"], params["conv_b"], params["gn_gamma"], params["gn_beta"],
        params["wq"], params["bq"], params["wkv"], params["bkv"],
        params["proj_w"], params["proj_b"], params["pos_bias"],
        n_head=int(params["n_head"]), ratio=int(params["ratio"]))


# ----------------------------------------------------------------------------
# Pure-JAX reference (same math, f32, no Pallas) for validation.
# ----------------------------------------------------------------------------
def multihead_vit_nonself_ref(x, params):
    n_head = int(params["n_head"])
    ratio = int(params["ratio"])
    b, s, d, h, w = x.shape
    dk = d // n_head
    hp, wp = h // ratio, w // ratio
    Lq, Lk = h * w, s * hp * wp
    temperature = float(dk) ** (-0.5)

    v_self = jnp.transpose(x[:, 4], (0, 2, 3, 1)).reshape(b, Lq, d)

    xc = x.reshape(b * s, d, h, w)
    conv = jax.lax.conv_general_dilated(
        xc, params["conv_w"], (ratio, ratio), "VALID",
        dimension_numbers=("NCHW", "OIHW", "NCHW"))
    conv = conv + params["conv_b"].reshape(1, d, 1, 1)
    cg = d // n_head
    conv_g = conv.reshape(b * s, n_head, cg, hp, wp)
    mean = conv_g.mean(axis=(2, 3, 4), keepdims=True)
    var = ((conv_g - mean) ** 2).mean(axis=(2, 3, 4), keepdims=True)
    gn = ((conv_g - mean) * jax.lax.rsqrt(var + 1e-5)).reshape(b * s, d, hp, wp)
    gn = gn * params["gn_gamma"].reshape(1, d, 1, 1) + params["gn_beta"].reshape(1, d, 1, 1)
    v_nonself = jnp.transpose(gn.reshape(b, s, d, hp, wp), (0, 1, 3, 4, 2)).reshape(b, Lk, d)

    q = (v_self @ params["wq"].T + params["bq"]).reshape(b, Lq, n_head, dk).transpose(2, 0, 1, 3)
    kv = (v_nonself @ params["wkv"].T + params["bkv"]).reshape(b, Lk, 2, n_head, dk)
    kv = kv.transpose(2, 3, 0, 1, 4)
    key, value = kv[0], kv[1]

    dots = jnp.einsum("hbqd,hbkd->hbqk", q, key) * temperature + params["pos_bias"]
    attn = jax.nn.softmax(dots, axis=-1)
    out = jnp.einsum("hbqk,hbkd->hbqd", attn, value)
    out = out.transpose(1, 2, 0, 3).reshape(b, h, w, n_head * dk)
    out = out @ params["proj_w"].T + params["proj_b"]
    return out, attn


# ----------------------------------------------------------------------------
if __name__ == "__main__":
    rng = jax.random.PRNGKey(0)
    b, s, d_in, h, w = 2, 8, 16, 8, 8            # seq_len >= 5 (x[:, 4] is used)
    n_head, ratio = 2, 2
    d_k = d_in // n_head
    hp, wp = h // ratio, w // ratio
    Lq, Lk = h * w, s * hp * wp                  # window_size = (Lq, Lk) = (64, 128)

    ks = jax.random.split(rng, 12)
    x = jax.random.normal(ks[0], (b, s, d_in, h, w), jnp.float32)
    params = dict(
        n_head=n_head,
        ratio=ratio,
        conv_w=0.1 * jax.random.normal(ks[1], (d_in, d_in, ratio, ratio), jnp.float32),
        conv_b=0.1 * jax.random.normal(ks[2], (d_in,), jnp.float32),
        gn_gamma=1.0 + 0.1 * jax.random.normal(ks[3], (d_in,), jnp.float32),
        gn_beta=0.1 * jax.random.normal(ks[4], (d_in,), jnp.float32),
        wq=0.1 * jax.random.normal(ks[5], (n_head * d_k, d_in), jnp.float32),
        bq=0.1 * jax.random.normal(ks[6], (n_head * d_k,), jnp.float32),
        wkv=0.1 * jax.random.normal(ks[7], (2 * n_head * d_k, d_in), jnp.float32),
        bkv=0.1 * jax.random.normal(ks[8], (2 * n_head * d_k,), jnp.float32),
        proj_w=0.1 * jax.random.normal(ks[9], (d_in, d_in), jnp.float32),
        proj_b=0.1 * jax.random.normal(ks[10], (d_in,), jnp.float32),
        pos_bias=(0.02 * jax.random.normal(ks[11], (n_head, Lq, Lk), jnp.float32))[:, None],
    )

    out, attn = multihead_vit_nonself_pallas(x, params)
    jax.block_until_ready((out, attn))

    ref_out, ref_attn = multihead_vit_nonself_ref(x, params)

    assert out.shape == (b, h, w, d_in), out.shape
    assert attn.shape == (n_head, b, Lq, Lk), attn.shape
    np.testing.assert_allclose(np.asarray(out), np.asarray(ref_out), rtol=5e-2, atol=5e-2)
    np.testing.assert_allclose(np.asarray(attn), np.asarray(ref_attn), rtol=5e-2, atol=5e-2)
    print("KERNEL_OK")
</pallas_src>

<mosaic_0001>
module attributes {stable_mosaic.version = 11 : i64} {
  func.func @_fused_vit_kernel(%arg0: i32, %arg1: memref<1x64x16xbf16, #tpu.memory_space<vmem>>, %arg2: memref<1x128x64xbf16, #tpu.memory_space<vmem>>, %arg3: memref<64x16xbf16, #tpu.memory_space<vmem>>, %arg4: memref<1x16xf32, #tpu.memory_space<vmem>>, %arg5: memref<1x16xf32, #tpu.memory_space<vmem>>, %arg6: memref<1x16xf32, #tpu.memory_space<vmem>>, %arg7: memref<16x16xbf16, #tpu.memory_space<vmem>>, %arg8: memref<1x16xf32, #tpu.memory_space<vmem>>, %arg9: memref<16x32xbf16, #tpu.memory_space<vmem>>, %arg10: memref<1x32xf32, #tpu.memory_space<vmem>>, %arg11: memref<16x16xbf16, #tpu.memory_space<vmem>>, %arg12: memref<1x16xf32, #tpu.memory_space<vmem>>, %arg13: memref<2x64x128xbf16, #tpu.memory_space<vmem>>, %arg14: memref<1x64x16xf32, #tpu.memory_space<vmem>>, %arg15: memref<2x1x64x128xf32, #tpu.memory_space<vmem>>) attributes {dimension_semantics = [#tpu.dimension_semantics<parallel>], iteration_bounds = array<i64: 2>, scalar_prefetch = 0 : i64, scratch_operands = 0 : i64, tpu.core_type = #tpu.core_type<tc>, window_params = [{transform_indices = @transform_0, window_bounds = array<i64: 1, 64, 16>}, {transform_indices = @transform_1, window_bounds = array<i64: 1, 128, 64>}, {pipeline_mode = #tpu.pipeline_mode<synchronous>, transform_indices = @transform_2, window_bounds = array<i64: 64, 16>}, {pipeline_mode = #tpu.pipeline_mode<synchronous>, transform_indices = @transform_3, window_bounds = array<i64: 1, 16>}, {pipeline_mode = #tpu.pipeline_mode<synchronous>, transform_indices = @transform_4, window_bounds = array<i64: 1, 16>}, {pipeline_mode = #tpu.pipeline_mode<synchronous>, transform_indices = @transform_5, window_bounds = array<i64: 1, 16>}, {pipeline_mode = #tpu.pipeline_mode<synchronous>, transform_indices = @transform_6, window_bounds = array<i64: 16, 16>}, {pipeline_mode = #tpu.pipeline_mode<synchronous>, transform_indices = @transform_7, window_bounds = array<i64: 1, 16>}, {pipeline_mode = #tpu.pipeline_mode<synchronous>, transform_indices = @transform_8, window_bounds = array<i64: 16, 32>}, {pipeline_mode = #tpu.pipeline_mode<synchronous>, transform_indices = @transform_9, window_bounds = array<i64: 1, 32>}, {pipeline_mode = #tpu.pipeline_mode<synchronous>, transform_indices = @transform_10, window_bounds = array<i64: 16, 16>}, {pipeline_mode = #tpu.pipeline_mode<synchronous>, transform_indices = @transform_11, window_bounds = array<i64: 1, 16>}, {pipeline_mode = #tpu.pipeline_mode<synchronous>, transform_indices = @transform_12, window_bounds = array<i64: 2, 64, 128>}, {transform_indices = @transform_13, window_bounds = array<i64: 1, 64, 16>}, {transform_indices = @transform_14, window_bounds = array<i64: 2, 1, 64, 128>}]} {
    %c0 = arith.constant 0 : index
    %c0_0 = arith.constant 0 : index
    %c0_1 = arith.constant 0 : index
    %0 = vector.load %arg2[%c0, %c0_0, %c0_1] : memref<1x128x64xbf16, #tpu.memory_space<vmem>>, vector<1x128x64xbf16>
    %1 = vector.shape_cast %0 : vector<1x128x64xbf16> to vector<128x64xbf16>
    %c0_2 = arith.constant 0 : index
    %c0_3 = arith.constant 0 : index
    %2 = vector.load %arg3[%c0_2, %c0_3] : memref<64x16xbf16, #tpu.memory_space<vmem>>, vector<64x16xbf16>
    %cst = arith.constant dense<0.000000e+00> : vector<128x16xf32>
    %3 = tpu.matmul %1, %2, %cst {dimension_numbers = #tpu.dot_dimension_numbers<[1], [0], [0], [1], [0, 0, 1, 1], [], []>} : vector<128x64xbf16>, vector<64x16xbf16>, vector<128x16xf32> -> vector<128x16xf32>
    %c0_4 = arith.constant 0 : index
    %c0_5 = arith.constant 0 : index
    %4 = vector.load %arg4[%c0_4, %c0_5] : memref<1x16xf32, #tpu.memory_space<vmem>>, vector<1x16xf32>
    %5 = vector.broadcast %4 : vector<1x16xf32> to vector<128x16xf32>
    %6 = arith.addf %3, %5 : vector<128x16xf32>
    %7 = tpu.iota {dimensions = array<i32: 1>} : vector<8x128xi32>
    %8 = tpu.iota {dimensions = array<i32: 0>} : vector<8x128xi32>
    %c16_i32 = arith.constant 16 : i32
    %9 = vector.broadcast %c16_i32 : i32 to vector<8x128xi32>
    %10 = arith.muli %8, %9 : vector<8x128xi32>
    %11 = arith.cmpi sge, %7, %10 : vector<8x128xi32>
    %c1_i32 = arith.constant 1 : i32
    %12 = vector.broadcast %c1_i32 : i32 to vector<8x128xi32>
    %13 = arith.addi %8, %12 : vector<8x128xi32>
    %c16_i32_6 = arith.constant 16 : i32
    %14 = vector.broadcast %c16_i32_6 : i32 to vector<8x128xi32>
    %15 = arith.muli %13, %14 : vector<8x128xi32>
    %16 = arith.cmpi slt, %7, %15 : vector<8x128xi32>
    %17 = arith.andi %11, %16 : vector<8x128xi1>
    %18 = arith.extui %17 : vector<8x128xi1> to vector<8x128xi32>
    %19 = arith.sitofp %18 : vector<8x128xi32> to vector<8x128xf32>
    %20 = tpu.iota {dimensions = array<i32: 0>} : vector<128x8xi32>
    %21 = tpu.iota {dimensions = array<i32: 1>} : vector<128x8xi32>
    %c16_i32_7 = arith.constant 16 : i32
    %22 = vector.broadcast %c16_i32_7 : i32 to vector<128x8xi32>
    %23 = arith.muli %21, %22 : vector<128x8xi32>
    %24 = arith.cmpi sge, %20, %23 : vector<128x8xi32>
    %c1_i32_8 = arith.constant 1 : i32
    %25 = vector.broadcast %c1_i32_8 : i32 to vector<128x8xi32>
    %26 = arith.addi %21, %25 : vector<128x8xi32>
    %c16_i32_9 = arith.constant 16 : i32
    %27 = vector.broadcast %c16_i32_9 : i32 to vector<128x8xi32>
    %28 = arith.muli %26, %27 : vector<128x8xi32>
    %29 = arith.cmpi slt, %20, %28 : vector<128x8xi32>
    %30 = arith.andi %24, %29 : vector<128x8xi1>
    %31 = arith.extui %30 : vector<128x8xi1> to vector<128x8xi32>
    %32 = arith.sitofp %31 : vector<128x8xi32> to vector<128x8xf32>
    %33 = tpu.iota {dimensions = array<i32: 1>} : vector<2x16xi32>
    %34 = tpu.iota {dimensions = array<i32: 0>} : vector<2x16xi32>
    %c8_i32 = arith.constant 8 : i32
    %35 = vector.broadcast %c8_i32 : i32 to vector<2x16xi32>
    %36 = arith.muli %34, %35 : vector<2x16xi32>
    %37 = arith.cmpi sge, %33, %36 : vector<2x16xi32>
    %c1_i32_10 = arith.constant 1 : i32
    %38 = vector.broadcast %c1_i32_10 : i32 to vector<2x16xi32>
    %39 = arith.addi %34, %38 : vector<2x16xi32>
    %c8_i32_11 = arith.constant 8 : i32
    %40 = vector.broadcast %c8_i32_11 : i32 to vector<2x16xi32>
    %41 = arith.muli %39, %40 : vector<2x16xi32>
    %42 = arith.cmpi slt, %33, %41 : vector<2x16xi32>
    %43 = arith.andi %37, %42 : vector<2x16xi1>
    %44 = arith.extui %43 : vector<2x16xi1> to vector<2x16xi32>
    %45 = arith.sitofp %44 : vector<2x16xi32> to vector<2x16xf32>
    %46 = tpu.iota {dimensions = array<i32: 0>} : vector<16x2xi32>
    %47 = tpu.iota {dimensions = array<i32: 1>} : vector<16x2xi32>
    %c8_i32_12 = arith.constant 8 : i32
    %48 = vector.broadcast %c8_i32_12 : i32 to vector<16x2xi32>
    %49 = arith.muli %47, %48 : vector<16x2xi32>
    %50 = arith.cmpi sge, %46, %49 : vector<16x2xi32>
    %c1_i32_13 = arith.constant 1 : i32
    %51 = vector.broadcast %c1_i32_13 : i32 to vector<16x2xi32>
    %52 = arith.addi %47, %51 : vector<16x2xi32>
    %c8_i32_14 = arith.constant 8 : i32
    %53 = vector.broadcast %c8_i32_14 : i32 to vector<16x2xi32>
    %54 = arith.muli %52, %53 : vector<16x2xi32>
    %55 = arith.cmpi slt, %46, %54 : vector<16x2xi32>
    %56 = arith.andi %50, %55 : vector<16x2xi1>
    %57 = arith.extui %56 : vector<16x2xi1> to vector<16x2xi32>
    %58 = arith.sitofp %57 : vector<16x2xi32> to vector<16x2xf32>
    %cst_15 = arith.constant dense<0.000000e+00> : vector<8x16xf32>
    %59 = tpu.matmul %19, %6, %cst_15 {dimension_numbers = #tpu.dot_dimension_numbers<[1], [0], [0], [1], [0, 0, 1, 1], [], []>} : vector<8x128xf32>, vector<128x16xf32>, vector<8x16xf32> -> vector<8x16xf32>
    %60 = arith.mulf %6, %6 : vector<128x16xf32>
    %cst_16 = arith.constant dense<0.000000e+00> : vector<8x16xf32>
    %61 = tpu.matmul %19, %60, %cst_16 {dimension_numbers = #tpu.dot_dimension_numbers<[1], [0], [0], [1], [0, 0, 1, 1], [], []>} : vector<8x128xf32>, vector<128x16xf32>, vector<8x16xf32> -> vector<8x16xf32>
    %cst_17 = arith.constant dense<0.000000e+00> : vector<8x2xf32>
    %62 = tpu.matmul %59, %58, %cst_17 {dimension_numbers = #tpu.dot_dimension_numbers<[1], [0], [0], [1], [0, 0, 1, 1], [], []>} : vector<8x16xf32>, vector<16x2xf32>, vector<8x2xf32> -> vector<8x2xf32>
    %cst_18 = arith.constant 7.812500e-03 : f32
    %63 = vector.broadcast %cst_18 : f32 to vector<8x2xf32>
    %64 = arith.mulf %62, %63 : vector<8x2xf32>
    %cst_19 = arith.constant dense<0.000000e+00> : vector<8x2xf32>
    %65 = tpu.matmul %61, %58, %cst_19 {dimension_numbers = #tpu.dot_dimension_numbers<[1], [0], [0], [1], [0, 0, 1, 1], [], []>} : vector<8x16xf32>, vector<16x2xf32>, vector<8x2xf32> -> vector<8x2xf32>
    %cst_20 = arith.constant 7.812500e-03 : f32
    %66 = vector.broadcast %cst_20 : f32 to vector<8x2xf32>
    %67 = arith.mulf %65, %66 : vector<8x2xf32>
    %68 = arith.mulf %64, %64 : vector<8x2xf32>
    %69 = arith.subf %67, %68 : vector<8x2xf32>
    %cst_21 = arith.constant 9.99999974E-6 : f32
    %70 = vector.broadcast %cst_21 : f32 to vector<8x2xf32>
    %71 = arith.addf %69, %70 : vector<8x2xf32>
    %72 = math.rsqrt %71 : vector<8x2xf32>
    %cst_22 = arith.constant dense<0.000000e+00> : vector<8x16xf32>
    %73 = tpu.matmul %64, %45, %cst_22 {dimension_numbers = #tpu.dot_dimension_numbers<[1], [0], [0], [1], [0, 0, 1, 1], [], []>} : vector<8x2xf32>, vector<2x16xf32>, vector<8x16xf32> -> vector<8x16xf32>
    %cst_23 = arith.constant dense<0.000000e+00> : vector<8x16xf32>
    %74 = tpu.matmul %72, %45, %cst_23 {dimension_numbers = #tpu.dot_dimension_numbers<[1], [0], [0], [1], [0, 0, 1, 1], [], []>} : vector<8x2xf32>, vector<2x16xf32>, vector<8x16xf32> -> vector<8x16xf32>
    %c0_24 = arith.constant 0 : index
    %c0_25 = arith.constant 0 : index
    %75 = vector.load %arg5[%c0_24, %c0_25] : memref<1x16xf32, #tpu.memory_space<vmem>>, vector<1x16xf32>
    %76 = vector.broadcast %75 : vector<1x16xf32> to vector<8x16xf32>
    %77 = arith.mulf %74, %76 : vector<8x16xf32>
    %c0_26 = arith.constant 0 : index
    %c0_27 = arith.constant 0 : index
    %78 = vector.load %arg6[%c0_26, %c0_27] : memref<1x16xf32, #tpu.memory_space<vmem>>, vector<1x16xf32>
    %79 = arith.mulf %73, %77 : vector<8x16xf32>
    %80 = vector.broadcast %78 : vector<1x16xf32> to vector<8x16xf32>
    %81 = arith.subf %80, %79 : vector<8x16xf32>
    %cst_28 = arith.constant dense<0.000000e+00> : vector<128x16xf32>
    %82 = tpu.matmul %32, %77, %cst_28 {dimension_numbers = #tpu.dot_dimension_numbers<[1], [0], [0], [1], [0, 0, 1, 1], [], []>} : vector<128x8xf32>, vector<8x16xf32>, vector<128x16xf32> -> vector<128x16xf32>
    %cst_29 = arith.constant dense<0.000000e+00> : vector<128x16xf32>
    %83 = tpu.matmul %32, %81, %cst_29 {dimension_numbers = #tpu.dot_dimension_numbers<[1], [0], [0], [1], [0, 0, 1, 1], [], []>} : vector<128x8xf32>, vector<8x16xf32>, vector<128x16xf32> -> vector<128x16xf32>
    %84 = arith.mulf %6, %82 : vector<128x16xf32>
    %85 = arith.addf %84, %83 : vector<128x16xf32>
    %c0_30 = arith.constant 0 : index
    %c0_31 = arith.constant 0 : index
    %c0_32 = arith.constant 0 : index
    %86 = vector.load %arg1[%c0_30, %c0_31, %c0_32] : memref<1x64x16xbf16, #tpu.memory_space<vmem>>, vector<1x64x16xbf16>
    %87 = vector.shape_cast %86 : vector<1x64x16xbf16> to vector<64x16xbf16>
    %c0_33 = arith.constant 0 : index
    %c0_34 = arith.constant 0 : index
    %88 = vector.load %arg7[%c0_33, %c0_34] : memref<16x16xbf16, #tpu.memory_space<vmem>>, vector<16x16xbf16>
    %cst_35 = arith.constant dense<0.000000e+00> : vector<64x16xf32>
    %89 = tpu.matmul %87, %88, %cst_35 {dimension_numbers = #tpu.dot_dimension_numbers<[1], [0], [0], [1], [0, 0, 1, 1], [], []>} : vector<64x16xbf16>, vector<16x16xbf16>, vector<64x16xf32> -> vector<64x16xf32>
    %c0_36 = arith.constant 0 : index
    %c0_37 = arith.constant 0 : index
    %90 = vector.load %arg8[%c0_36, %c0_37] : memref<1x16xf32, #tpu.memory_space<vmem>>, vector<1x16xf32>
    %91 = vector.broadcast %90 : vector<1x16xf32> to vector<64x16xf32>
    %92 = arith.addf %89, %91 : vector<64x16xf32>
    %93 = arith.truncf %85 : vector<128x16xf32> to vector<128x16xbf16>
    %c0_38 = arith.constant 0 : index
    %c0_39 = arith.constant 0 : index
    %94 = vector.load %arg9[%c0_38, %c0_39] : memref<16x32xbf16, #tpu.memory_space<vmem>>, vector<16x32xbf16>
    %cst_40 = arith.constant dense<0.000000e+00> : vector<128x32xf32>
    %95 = tpu.matmul %93, %94, %cst_40 {dimension_numbers = #tpu.dot_dimension_numbers<[1], [0], [0], [1], [0, 0, 1, 1], [], []>} : vector<128x16xbf16>, vector<16x32xbf16>, vector<128x32xf32> -> vector<128x32xf32>
    %c0_41 = arith.constant 0 : index
    %c0_42 = arith.constant 0 : index
    %96 = vector.load %arg10[%c0_41, %c0_42] : memref<1x32xf32, #tpu.memory_space<vmem>>, vector<1x32xf32>
    %97 = vector.broadcast %96 : vector<1x32xf32> to vector<128x32xf32>
    %98 = arith.addf %95, %97 : vector<128x32xf32>
    %cst_43 = arith.constant 0.000000e+00 : f32
    %99 = vector.broadcast %cst_43 : f32 to vector<64x16xf32>
    %100 = vector.extract_strided_slice %92 {offsets = [0, 0], sizes = [64, 8], strides = [1, 1]} : vector<64x16xf32> to vector<64x8xf32>
    %101 = arith.truncf %100 : vector<64x8xf32> to vector<64x8xbf16>
    %102 = vector.extract_strided_slice %98 {offsets = [0, 0], sizes = [128, 8], strides = [1, 1]} : vector<128x32xf32> to vector<128x8xf32>
    %103 = arith.truncf %102 : vector<128x8xf32> to vector<128x8xbf16>
    %104 = vector.extract_strided_slice %98 {offsets = [0, 16], sizes = [128, 8], strides = [1, 1]} : vector<128x32xf32> to vector<128x8xf32>
    %105 = arith.truncf %104 : vector<128x8xf32> to vector<128x8xbf16>
    %cst_44 = arith.constant dense<0.000000e+00> : vector<64x128xf32>
    %106 = tpu.matmul %101, %103, %cst_44 {dimension_numbers = #tpu.dot_dimension_numbers<[1], [1], [0], [0], [0, 0, 1, 0], [], []>} : vector<64x8xbf16>, vector<128x8xbf16>, vector<64x128xf32> -> vector<64x128xf32>
    %c0_45 = arith.constant 0 : index
    %c0_46 = arith.constant 0 : index
    %c0_47 = arith.constant 0 : index
    %107 = vector.load %arg13[%c0_45, %c0_46, %c0_47] : memref<2x64x128xbf16, #tpu.memory_space<vmem>>, vector<1x64x128xbf16>
    %108 = vector.shape_cast %107 : vector<1x64x128xbf16> to vector<64x128xbf16>
    %109 = arith.extf %108 : vector<64x128xbf16> to vector<64x128xf32>
    %110 = arith.addf %106, %109 : vector<64x128xf32>
    %cst_48 = arith.constant dense<0xFF800000> : vector<64xf32>
    %111 = vector.multi_reduction <maximumf>, %110, %cst_48 [1] : vector<64x128xf32> to vector<64xf32>
    %112 = vector.shape_cast %111 : vector<64xf32> to vector<64x1xf32>
    %113 = vector.broadcast %112 : vector<64x1xf32> to vector<64x128xf32>
    %114 = arith.subf %110, %113 : vector<64x128xf32>
    %115 = math.exp %114 : vector<64x128xf32>
    %cst_49 = arith.constant dense<0.000000e+00> : vector<64xf32>
    %116 = vector.multi_reduction <add>, %115, %cst_49 [1] : vector<64x128xf32> to vector<64xf32>
    %117 = vector.shape_cast %116 : vector<64xf32> to vector<64x1xf32>
    %118 = tpu.reciprocal %117 {approx = true} : vector<64x1xf32> -> vector<64x1xf32>
    %119 = vector.broadcast %118 : vector<64x1xf32> to vector<64x128xf32>
    %120 = arith.mulf %115, %119 : vector<64x128xf32>
    %c0_50 = arith.constant 0 : index
    %c0_51 = arith.constant 0 : index
    %c0_52 = arith.constant 0 : index
    %c0_53 = arith.constant 0 : index
    %121 = vector.load %arg15[%c0_50, %c0_51, %c0_52, %c0_53] : memref<2x1x64x128xf32, #tpu.memory_space<vmem>>, vector<1x1x64x128xf32>
    %122 = vector.shape_cast %121 : vector<1x1x64x128xf32> to vector<64x128xf32>
    %123 = vector.shape_cast %120 : vector<64x128xf32> to vector<1x1x64x128xf32>
    tpu.vector_store %arg15[%c0_50, %c0_51, %c0_52, %c0_53], %123 {strides = array<i32>} : memref<2x1x64x128xf32, #tpu.memory_space<vmem>>, vector<1x1x64x128xf32>,
    %124 = arith.truncf %120 : vector<64x128xf32> to vector<64x128xbf16>
    %cst_54 = arith.constant dense<0.000000e+00> : vector<64x8xf32>
    %125 = tpu.matmul %124, %105, %cst_54 {dimension_numbers = #tpu.dot_dimension_numbers<[1], [0], [0], [1], [0, 0, 1, 1], [], []>} : vector<64x128xbf16>, vector<128x8xbf16>, vector<64x8xf32> -> vector<64x8xf32>
    %126 = arith.truncf %125 : vector<64x8xf32> to vector<64x8xbf16>
    %c0_55 = arith.constant 0 : index
    %c0_56 = arith.constant 0 : index
    %127 = vector.load %arg11[%c0_55, %c0_56] : memref<16x16xbf16, #tpu.memory_space<vmem>>, vector<8x16xbf16>
    %cst_57 = arith.constant dense<0.000000e+00> : vector<64x16xf32>
    %128 = tpu.matmul %126, %127, %cst_57 {dimension_numbers = #tpu.dot_dimension_numbers<[1], [0], [0], [1], [0, 0, 1, 1], [], []>} : vector<64x8xbf16>, vector<8x16xbf16>, vector<64x16xf32> -> vector<64x16xf32>
    %129 = arith.addf %99, %128 : vector<64x16xf32>
    %130 = vector.extract_strided_slice %92 {offsets = [0, 8], sizes = [64, 8], strides = [1, 1]} : vector<64x16xf32> to vector<64x8xf32>
    %131 = arith.truncf %130 : vector<64x8xf32> to vector<64x8xbf16>
    %132 = vector.extract_strided_slice %98 {offsets = [0, 8], sizes = [128, 8], strides = [1, 1]} : vector<128x32xf32> to vector<128x8xf32>
    %133 = arith.truncf %132 : vector<128x8xf32> to vector<128x8xbf16>
    %134 = vector.extract_strided_slice %98 {offsets = [0, 24], sizes = [128, 8], strides = [1, 1]} : vector<128x32xf32> to vector<128x8xf32>
    %135 = arith.truncf %134 : vector<128x8xf32> to vector<128x8xbf16>
    %cst_58 = arith.constant dense<0.000000e+00> : vector<64x128xf32>
    %136 = tpu.matmul %131, %133, %cst_58 {dimension_numbers = #tpu.dot_dimension_numbers<[1], [1], [0], [0], [0, 0, 1, 0], [], []>} : vector<64x8xbf16>, vector<128x8xbf16>, vector<64x128xf32> -> vector<64x128xf32>
    %c1 = arith.constant 1 : index
    %c0_59 = arith.constant 0 : index
    %c0_60 = arith.constant 0 : index
    %137 = vector.load %arg13[%c1, %c0_59, %c0_60] : memref<2x64x128xbf16, #tpu.memory_space<vmem>>, vector<1x64x128xbf16>
    %138 = vector.shape_cast %137 : vector<1x64x128xbf16> to vector<64x128xbf16>
    %139 = arith.extf %138 : vector<64x128xbf16> to vector<64x128xf32>
    %140 = arith.addf %136, %139 : vector<64x128xf32>
    %cst_61 = arith.constant dense<0xFF800000> : vector<64xf32>
    %141 = vector.multi_reduction <maximumf>, %140, %cst_61 [1] : vector<64x128xf32> to vector<64xf32>
    %142 = vector.shape_cast %141 : vector<64xf32> to vector<64x1xf32>
    %143 = vector.broadcast %142 : vector<64x1xf32> to vector<64x128xf32>
    %144 = arith.subf %140, %143 : vector<64x128xf32>
    %145 = math.exp %144 : vector<64x128xf32>
    %cst_62 = arith.constant dense<0.000000e+00> : vector<64xf32>
    %146 = vector.multi_reduction <add>, %145, %cst_62 [1] : vector<64x128xf32> to vector<64xf32>
    %147 = vector.shape_cast %146 : vector<64xf32> to vector<64x1xf32>
    %148 = tpu.reciprocal %147 {approx = true} : vector<64x1xf32> -> vector<64x1xf32>
    %149 = vector.broadcast %148 : vector<64x1xf32> to vector<64x128xf32>
    %150 = arith.mulf %145, %149 : vector<64x128xf32>
    %c1_63 = arith.constant 1 : index
    %c0_64 = arith.constant 0 : index
    %c0_65 = arith.constant 0 : index
    %c0_66 = arith.constant 0 : index
    %151 = vector.load %arg15[%c1_63, %c0_64, %c0_65, %c0_66] : memref<2x1x64x128xf32, #tpu.memory_space<vmem>>, vector<1x1x64x128xf32>
    %152 = vector.shape_cast %151 : vector<1x1x64x128xf32> to vector<64x128xf32>
    %153 = vector.shape_cast %150 : vector<64x128xf32> to vector<1x1x64x128xf32>
    tpu.vector_store %arg15[%c1_63, %c0_64, %c0_65, %c0_66], %153 {strides = array<i32>} : memref<2x1x64x128xf32, #tpu.memory_space<vmem>>, vector<1x1x64x128xf32>,
    %154 = arith.truncf %150 : vector<64x128xf32> to vector<64x128xbf16>
    %cst_67 = arith.constant dense<0.000000e+00> : vector<64x8xf32>
    %155 = tpu.matmul %154, %135, %cst_67 {dimension_numbers = #tpu.dot_dimension_numbers<[1], [0], [0], [1], [0, 0, 1, 1], [], []>} : vector<64x128xbf16>, vector<128x8xbf16>, vector<64x8xf32> -> vector<64x8xf32>
    %156 = arith.truncf %155 : vector<64x8xf32> to vector<64x8xbf16>
    %c8 = arith.constant 8 : index
    %c0_68 = arith.constant 0 : index
    %157 = vector.load %arg11[%c8, %c0_68] : memref<16x16xbf16, #tpu.memory_space<vmem>>, vector<8x16xbf16>
    %cst_69 = arith.constant dense<0.000000e+00> : vector<64x16xf32>
    %158 = tpu.matmul %156, %157, %cst_69 {dimension_numbers = #tpu.dot_dimension_numbers<[1], [0], [0], [1], [0, 0, 1, 1], [], []>} : vector<64x8xbf16>, vector<8x16xbf16>, vector<64x16xf32> -> vector<64x16xf32>
    %159 = arith.addf %129, %158 : vector<64x16xf32>
    %c0_70 = arith.constant 0 : index
    %c0_71 = arith.constant 0 : index
    %160 = vector.load %arg12[%c0_70, %c0_71] : memref<1x16xf32, #tpu.memory_space<vmem>>, vector<1x16xf32>
    %161 = vector.broadcast %160 : vector<1x16xf32> to vector<64x16xf32>
    %162 = arith.addf %159, %161 : vector<64x16xf32>
    %c0_72 = arith.constant 0 : index
    %c0_73 = arith.constant 0 : index
    %c0_74 = arith.constant 0 : index
    %163 = vector.load %arg14[%c0_72, %c0_73, %c0_74] : memref<1x64x16xf32, #tpu.memory_space<vmem>>, vector<1x64x16xf32>
    %164 = vector.shape_cast %163 : vector<1x64x16xf32> to vector<64x16xf32>
    %165 = vector.shape_cast %162 : vector<64x16xf32> to vector<1x64x16xf32>
    tpu.vector_store %arg14[%c0_72, %c0_73, %c0_74], %165 {strides = array<i32>} : memref<1x64x16xf32, #tpu.memory_space<vmem>>, vector<1x64x16xf32>,
    return
  }
  func.func @transform_0(%arg0: i32) -> (i32, i32, i32) {
    %c0_i32 = arith.constant 0 : i32
    %c0_i32_0 = arith.constant 0 : i32
    %c0_i32_1 = arith.constant 0 : i32
    return %arg0, %c0_i32, %c0_i32_0 : i32, i32, i32
  }
  func.func @transform_1(%arg0: i32) -> (i32, i32, i32) {
    %c0_i32 = arith.constant 0 : i32
    %c0_i32_0 = arith.constant 0 : i32
    %c0_i32_1 = arith.constant 0 : i32
    return %arg0, %c0_i32, %c0_i32_0 : i32, i32, i32
  }
  func.func @transform_2(%arg0: i32) -> (i32, i32) {
    %c0_i32 = arith.constant 0 : i32
    %c0_i32_0 = arith.constant 0 : i32
    %c0_i32_1 = arith.constant 0 : i32
    return %c0_i32, %c0_i32_0 : i32, i32
  }
  func.func @transform_3(%arg0: i32) -> (i32, i32) {
    %c0_i32 = arith.constant 0 : i32
    %c0_i32_0 = arith.constant 0 : i32
    %c0_i32_1 = arith.constant 0 : i32
    return %c0_i32, %c0_i32_0 : i32, i32
  }
  func.func @transform_4(%arg0: i32) -> (i32, i32) {
    %c0_i32 = arith.constant 0 : i32
    %c0_i32_0 = arith.constant 0 : i32
    %c0_i32_1 = arith.constant 0 : i32
    return %c0_i32, %c0_i32_0 : i32, i32
  }
  func.func @transform_5(%arg0: i32) -> (i32, i32) {
    %c0_i32 = arith.constant 0 : i32
    %c0_i32_0 = arith.constant 0 : i32
    %c0_i32_1 = arith.constant 0 : i32
    return %c0_i32, %c0_i32_0 : i32, i32
  }
  func.func @transform_6(%arg0: i32) -> (i32, i32) {
    %c0_i32 = arith.constant 0 : i32
    %c0_i32_0 = arith.constant 0 : i32
    %c0_i32_1 = arith.constant 0 : i32
    return %c0_i32, %c0_i32_0 : i32, i32
  }
  func.func @transform_7(%arg0: i32) -> (i32, i32) {
    %c0_i32 = arith.constant 0 : i32
    %c0_i32_0 = arith.constant 0 : i32
    %c0_i32_1 = arith.constant 0 : i32
    return %c0_i32, %c0_i32_0 : i32, i32
  }
  func.func @transform_8(%arg0: i32) -> (i32, i32) {
    %c0_i32 = arith.constant 0 : i32
    %c0_i32_0 = arith.constant 0 : i32
    %c0_i32_1 = arith.constant 0 : i32
    return %c0_i32, %c0_i32_0 : i32, i32
  }
  func.func @transform_9(%arg0: i32) -> (i32, i32) {
    %c0_i32 = arith.constant 0 : i32
    %c0_i32_0 = arith.constant 0 : i32
    %c0_i32_1 = arith.constant 0 : i32
    return %c0_i32, %c0_i32_0 : i32, i32
  }
  func.func @transform_10(%arg0: i32) -> (i32, i32) {
    %c0_i32 = arith.constant 0 : i32
    %c0_i32_0 = arith.constant 0 : i32
    %c0_i32_1 = arith.constant 0 : i32
    return %c0_i32, %c0_i32_0 : i32, i32
  }
  func.func @transform_11(%arg0: i32) -> (i32, i32) {
    %c0_i32 = arith.constant 0 : i32
    %c0_i32_0 = arith.constant 0 : i32
    %c0_i32_1 = arith.constant 0 : i32
    return %c0_i32, %c0_i32_0 : i32, i32
  }
  func.func @transform_12(%arg0: i32) -> (i32, i32, i32) {
    %c0_i32 = arith.constant 0 : i32
    %c0_i32_0 = arith.constant 0 : i32
    %c0_i32_1 = arith.constant 0 : i32
    %c0_i32_2 = arith.constant 0 : i32
    return %c0_i32, %c0_i32_0, %c0_i32_1 : i32, i32, i32
  }
  func.func @transform_13(%arg0: i32) -> (i32, i32, i32) {
    %c0_i32 = arith.constant 0 : i32
    %c0_i32_0 = arith.constant 0 : i32
    %c0_i32_1 = arith.constant 0 : i32
    return %arg0, %c0_i32, %c0_i32_0 : i32, i32, i32
  }
  func.func @transform_14(%arg0: i32) -> (i32, i32, i32, i32) {
    %c0_i32 = arith.constant 0 : i32
    %c0_i32_0 = arith.constant 0 : i32
    %c0_i32_1 = arith.constant 0 : i32
    %c0_i32_2 = arith.constant 0 : i32
    return %c0_i32, %arg0, %c0_i32_0, %c0_i32_1 : i32, i32, i32, i32
  }
}

</mosaic_0001>

<llo_original>
// kernel: _vit_forward.1
$region0: #{_vit_forward.1}
  #allocation0 [shape = 'u32[]', space=smem, size = 0x4, offset = 0x4, fixed_abs, tag = 'smem constant byte address 0x4 - core index']
  #allocation1 [shape = 'u32[144,128]{1,0:T(1,128)}', space=vmem, size = 0x12000, scoped, tag = 'internal scratch']
  #allocation6 [shape = 's32[]', space=sflag, size = 0x4, offset = 0, fixed_abs, tag = 'sflag constant byte address 0x0 - dummy sync flag']
  %s0 = inlined_call_operand.vmem [shape: bf16[2,64,16], index: 0, kind: input, shape index: {}]
  %s1 = inlined_call_operand.vmem [shape: bf16[2,128,64], index: 1, kind: input, shape index: {}]
  %s2 = inlined_call_operand.vmem [shape: bf16[64,16], index: 2, kind: input, shape index: {}]
  %s3 = inlined_call_operand.vmem [shape: f32[1,16], index: 3, kind: input, shape index: {}]
  %s4 = inlined_call_operand.vmem [shape: f32[1,16], index: 4, kind: input, shape index: {}]
  %s5 = inlined_call_operand.vmem [shape: f32[1,16], index: 5, kind: input, shape index: {}]
  %s6 = inlined_call_operand.vmem [shape: bf16[16,16], index: 6, kind: input, shape index: {}]
  %s7 = inlined_call_operand.vmem [shape: f32[1,16], index: 7, kind: input, shape index: {}]
  %s8 = inlined_call_operand.vmem [shape: bf16[16,32], index: 8, kind: input, shape index: {}]
  %s9 = inlined_call_operand.vmem [shape: f32[1,32], index: 9, kind: input, shape index: {}]
  %s10 = inlined_call_operand.vmem [shape: bf16[16,16], index: 10, kind: input, shape index: {}]
  %s11 = inlined_call_operand.vmem [shape: f32[1,16], index: 11, kind: input, shape index: {}]
  %s12 = inlined_call_operand.vmem [shape: bf16[2,64,128], index: 12, kind: input, shape index: {}]
  %s13 = inlined_call_operand.hbm [shape: f32[2,64,16], index: 13, kind: output, shape index: {0}]
  %s14 = inlined_call_operand.hbm [shape: f32[2,2,64,128], index: 14, kind: output, shape index: {1}]
  %15 = xla_tuple %s13, %s14
  %s16 = sld [smem:[#allocation0]]
  $region93: #{_vit_forward.1} parent=0
    _
  %s18 = ssub.s32 1, %s16
  %s19 = scalar_select 0, %s18, %s16
  $region1: #{_vit_forward.1} parent=0
    #allocation2 [shape = 'u8[65536]{0}', space=vmem, size = 0x10000, scoped, tag = 'output window, operand 0']
    #allocation3 [shape = 's32[2]{0}', space=sflag, size = 0x8, scoped, tag = 'scoped memory for _vit_forward.1']
    #allocation4 [shape = 'u8[131072]{0}', space=vmem, size = 0x20000, scoped, tag = 'output window, operand 1']
    #allocation5 [shape = 's32[2]{0}', space=sflag, size = 0x8, scoped, tag = 'scoped memory for _vit_forward.1']
    %20 = vsyncpa [#allocation3], 0
    %s21 = scalar_lea.sflag [#allocation3], 1
    %22 = vsyncpa %s21, 0
    %23 = vsyncpa [#allocation5], 0
    %s24 = scalar_lea.sflag [#allocation5], 1
    %25 = vsyncpa %s24, 0
    loop: start=0, step=1, limit=4
    $region2: #{_vit_forward.1} parent=1 // loop_pre_header
      _
    $region3: #{_vit_forward.1} parent=1 // loop_header
      %s27 = sphi 0, %s31
      %p28 = scmp.ge.s32.totalorder %s27, 4
      %s37 = sphi 0, %s39
      %s40 = sphi 0, %s37
      %s41 = sphi 0, %s40
      %s57 = sphi 0, %s41
      %s63 = sphi 0, %s65
      %s66 = sphi 0, %s63
      %s67 = sphi 0, %s66
      %s83 = sphi 0, %s67
      %s87 = sphi 0, %s87
      %s89 = sphi 0, %s87
      %s90 = sphi 0, %s89
      %s104 = sphi 0, %s90
      %s108 = sphi 0, %s108
      %s110 = sphi 0, %s108
      %s111 = sphi 0, %s110
      %s125 = sphi 0, %s111
      %s129 = sphi 0, %s129
      %s131 = sphi 0, %s129
      %s132 = sphi 0, %s131
      %s146 = sphi 0, %s132
      %s150 = sphi 0, %s150
      %s152 = sphi 0, %s150
      %s153 = sphi 0, %s152
      %s167 = sphi 0, %s153
      %s171 = sphi 0, %s171
      %s173 = sphi 0, %s171
      %s174 = sphi 0, %s173
      %s188 = sphi 0, %s174
      %s192 = sphi 0, %s192
      %s194 = sphi 0, %s192
      %s195 = sphi 0, %s194
      %s209 = sphi 0, %s195
      %s213 = sphi 0, %s213
      %s215 = sphi 0, %s213
      %s216 = sphi 0, %s215
      %s230 = sphi 0, %s216
      %s234 = sphi 0, %s234
      %s236 = sphi 0, %s234
      %s237 = sphi 0, %s236
      %s251 = sphi 0, %s237
      %s255 = sphi 0, %s255
      %s257 = sphi 0, %s255
      %s258 = sphi 0, %s257
      %s272 = sphi 0, %s258
      %s276 = sphi 0, %s276
      %s278 = sphi 0, %s276
      %s279 = sphi 0, %s278
      %s293 = sphi 0, %s279
      %s297 = sphi 0, %s297
      %s299 = sphi 0, %s297
      %s300 = sphi 0, %s299
      %s314 = sphi 0, %s300
      %s320 = sphi 0, %s322
      %s323 = sphi 0, %s320
      %s324 = sphi 0, %s323
      %s340 = sphi 0, %s324
      %s346 = sphi 0, %s348
      %s349 = sphi 0, %s346
      %s350 = sphi 0, %s349
      %s366 = sphi 0, %s350
    $region4: #{_vit_forward.1} parent=1 // loop_header_branch
      %30 = sbr.rel (%p28) target = $region8
    $region5: #{_vit_forward.1} parent=1 // loop_body
      %s32 = ssub.s32 %s27, 1
      %s33 = ssub.s32 %s27, 2
      %s34 = sadd.s32 %s27, 1
      %s35 = ssub.s32 %s27, %s34
      %p36 = scmp.eq.s32.totalorder %s35, 0
      %s38 = sadd.s32 %s37, 1
      %s39 = scalar_select %p36, %s37, %s38
      %p42 = pneg %p36
      %p43 = scmp.eq.s32.totalorder %s27, 1
      %p44 = por %p42, %p43
      %p45 = scmp.ne.s32.totalorder %s37, %s40
      %p46 = scmp.eq.s32.totalorder %s27, 0
      %p47 = por %p45, %p46
      %p48 = scmp.ne.s32.totalorder %s37, %s40
      %p49 = scmp.eq.s32.totalorder %s32, 1
      %p50 = por %p48, %p49
      %p51 = scmp.ne.s32.totalorder %s40, %s41
      %p52 = scmp.eq.s32.totalorder %s32, 0
      %p53 = por %p51, %p52
      %p54 = scmp.ne.s32.totalorder %s40, %s41
      %p55 = scmp.eq.s32.totalorder %s33, 1
      %p56 = por %p54, %p55
      %p58 = scmp.ne.s32.totalorder %s41, %s57
      %p59 = scmp.eq.s32.totalorder %s33, 0
      %p60 = por %p58, %p59
      %s61 = ssub.s32 %s27, %s34
      %p62 = scmp.eq.s32.totalorder %s61, 0
      %s64 = sadd.s32 %s63, 1
      %s65 = scalar_select %p62, %s63, %s64
      %p68 = pneg %p62
      %p69 = scmp.eq.s32.totalorder %s27, 1
      %p70 = por %p68, %p69
      %p71 = scmp.ne.s32.totalorder %s63, %s66
      %p72 = scmp.eq.s32.totalorder %s27, 0
      %p73 = por %p71, %p72
      %p74 = scmp.ne.s32.totalorder %s63, %s66
      %p75 = scmp.eq.s32.totalorder %s32, 1
      %p76 = por %p74, %p75
      %p77 = scmp.ne.s32.totalorder %s66, %s67
      %p78 = scmp.eq.s32.totalorder %s32, 0
      %p79 = por %p77, %p78
      %p80 = scmp.ne.s32.totalorder %s66, %s67
      %p81 = scmp.eq.s32.totalorder %s33, 1
      %p82 = por %p80, %p81
      %p84 = scmp.ne.s32.totalorder %s67, %s83
      %p85 = scmp.eq.s32.totalorder %s33, 0
      %p86 = por %p84, %p85
      %s88 = sadd.s32 %s87, 1
      %p91 = scmp.eq.s32.totalorder %s27, 1
      %p92 = scmp.ne.s32.totalorder %s87, %s89
      %p93 = scmp.eq.s32.totalorder %s27, 0
      %p94 = por %p92, %p93
      %p95 = scmp.ne.s32.totalorder %s87, %s89
      %p96 = scmp.eq.s32.totalorder %s32, 1
      %p97 = por %p95, %p96
      %p98 = scmp.ne.s32.totalorder %s89, %s90
      %p99 = scmp.eq.s32.totalorder %s32, 0
      %p100 = por %p98, %p99
      %p101 = scmp.ne.s32.totalorder %s89, %s90
      %p102 = scmp.eq.s32.totalorder %s33, 1
      %p103 = por %p101, %p102
      %p105 = scmp.ne.s32.totalorder %s90, %s104
      %p106 = scmp.eq.s32.totalorder %s33, 0
      %p107 = por %p105, %p106
      %s109 = sadd.s32 %s108, 1
      %p112 = scmp.eq.s32.totalorder %s27, 1
      %p113 = scmp.ne.s32.totalorder %s108, %s110
      %p114 = scmp.eq.s32.totalorder %s27, 0
      %p115 = por %p113, %p114
      %p116 = scmp.ne.s32.totalorder %s108, %s110
      %p117 = scmp.eq.s32.totalorder %s32, 1
      %p118 = por %p116, %p117
      %p119 = scmp.ne.s32.totalorder %s110, %s111
      %p120 = scmp.eq.s32.totalorder %s32, 0
      %p121 = por %p119, %p120
      %p122 = scmp.ne.s32.totalorder %s110, %s111
      %p123 = scmp.eq.s32.totalorder %s33, 1
      %p124 = por %p122, %p123
      %p126 = scmp.ne.s32.totalorder %s111, %s125
      %p127 = scmp.eq.s32.totalorder %s33, 0
      %p128 = por %p126, %p127
      %s130 = sadd.s32 %s129, 1
      %p133 = scmp.eq.s32.totalorder %s27, 1
      %p134 = scmp.ne.s32.totalorder %s129, %s131
      %p135 = scmp.eq.s32.totalorder %s27, 0
      %p136 = por %p134, %p135
      %p137 = scmp.ne.s32.totalorder %s129, %s131
      %p138 = scmp.eq.s32.totalorder %s32, 1
      %p139 = por %p137, %p138
      %p140 = scmp.ne.s32.totalorder %s131, %s132
      %p141 = scmp.eq.s32.totalorder %s32, 0
      %p142 = por %p140, %p141
      %p143 = scmp.ne.s32.totalorder %s131, %s132
      %p144 = scmp.eq.s32.totalorder %s33, 1
      %p145 = por %p143, %p144
      %p147 = scmp.ne.s32.totalorder %s132, %s146
      %p148 = scmp.eq.s32.totalorder %s33, 0
      %p149 = por %p147, %p148
      %s151 = sadd.s32 %s150, 1
      %p154 = scmp.eq.s32.totalorder %s27, 1
      %p155 = scmp.ne.s32.totalorder %s150, %s152
      %p156 = scmp.eq.s32.totalorder %s27, 0
      %p157 = por %p155, %p156
      %p158 = scmp.ne.s32.totalorder %s150, %s152
      %p159 = scmp.eq.s32.totalorder %s32, 1
      %p160 = por %p158, %p159
      %p161 = scmp.ne.s32.totalorder %s152, %s153
      %p162 = scmp.eq.s32.totalorder %s32, 0
      %p163 = por %p161, %p162
      %p164 = scmp.ne.s32.totalorder %s152, %s153
      %p165 = scmp.eq.s32.totalorder %s33, 1
      %p166 = por %p164, %p165
      %p168 = scmp.ne.s32.totalorder %s153, %s167
      %p169 = scmp.eq.s32.totalorder %s33, 0
      %p170 = por %p168, %p169
      %s172 = sadd.s32 %s171, 1
      %p175 = scmp.eq.s32.totalorder %s27, 1
      %p176 = scmp.ne.s32.totalorder %s171, %s173
      %p177 = scmp.eq.s32.totalorder %s27, 0
      %p178 = por %p176, %p177
      %p179 = scmp.ne.s32.totalorder %s171, %s173
      %p180 = scmp.eq.s32.totalorder %s32, 1
      %p181 = por %p179, %p180
      %p182 = scmp.ne.s32.totalorder %s173, %s174
      %p183 = scmp.eq.s32.totalorder %s32, 0
      %p184 = por %p182, %p183
      %p185 = scmp.ne.s32.totalorder %s173, %s174
      %p186 = scmp.eq.s32.totalorder %s33, 1
      %p187 = por %p185, %p186
      %p189 = scmp.ne.s32.totalorder %s174, %s188
      %p190 = scmp.eq.s32.totalorder %s33, 0
      %p191 = por %p189, %p190
      %s193 = sadd.s32 %s192, 1
      %p196 = scmp.eq.s32.totalorder %s27, 1
      %p197 = scmp.ne.s32.totalorder %s192, %s194
      %p198 = scmp.eq.s32.totalorder %s27, 0
      %p199 = por %p197, %p198
      %p200 = scmp.ne.s32.totalorder %s192, %s194
      %p201 = scmp.eq.s32.totalorder %s32, 1
      %p202 = por %p200, %p201
      %p203 = scmp.ne.s32.totalorder %s194, %s195
      %p204 = scmp.eq.s32.totalorder %s32, 0
      %p205 = por %p203, %p204
      %p206 = scmp.ne.s32.totalorder %s194, %s195
      %p207 = scmp.eq.s32.totalorder %s33, 1
      %p208 = por %p206, %p207
      %p210 = scmp.ne.s32.totalorder %s195, %s209
      %p211 = scmp.eq.s32.totalorder %s33, 0
      %p212 = por %p210, %p211
      %s214 = sadd.s32 %s213, 1
      %p217 = scmp.eq.s32.totalorder %s27, 1
      %p218 = scmp.ne.s32.totalorder %s213, %s215
      %p219 = scmp.eq.s32.totalorder %s27, 0
      %p220 = por %p218, %p219
      %p221 = scmp.ne.s32.totalorder %s213, %s215
      %p222 = scmp.eq.s32.totalorder %s32, 1
      %p223 = por %p221, %p222
      %p224 = scmp.ne.s32.totalorder %s215, %s216
      %p225 = scmp.eq.s32.totalorder %s32, 0
      %p226 = por %p224, %p225
      %p227 = scmp.ne.s32.totalorder %s215, %s216
      %p228 = scmp.eq.s32.totalorder %s33, 1
      %p229 = por %p227, %p228
      %p231 = scmp.ne.s32.totalorder %s216, %s230
      %p232 = scmp.eq.s32.totalorder %s33, 0
      %p233 = por %p231, %p232
      %s235 = sadd.s32 %s234, 1
      %p238 = scmp.eq.s32.totalorder %s27, 1
      %p239 = scmp.ne.s32.totalorder %s234, %s236
      %p240 = scmp.eq.s32.totalorder %s27, 0
      %p241 = por %p239, %p240
      %p242 = scmp.ne.s32.totalorder %s234, %s236
      %p243 = scmp.eq.s32.totalorder %s32, 1
      %p244 = por %p242, %p243
      %p245 = scmp.ne.s32.totalorder %s236, %s237
      %p246 = scmp.eq.s32.totalorder %s32, 0
      %p247 = por %p245, %p246
      %p248 = scmp.ne.s32.totalorder %s236, %s237
      %p249 = scmp.eq.s32.totalorder %s33, 1
      %p250 = por %p248, %p249
      %p252 = scmp.ne.s32.totalorder %s237, %s251
      %p253 = scmp.eq.s32.totalorder %s33, 0
      %p254 = por %p252, %p253
      %s256 = sadd.s32 %s255, 1
      %p259 = scmp.eq.s32.totalorder %s27, 1
      %p260 = scmp.ne.s32.totalorder %s255, %s257
      %p261 = scmp.eq.s32.totalorder %s27, 0
      %p262 = por %p260, %p261
      %p263 = scmp.ne.s32.totalorder %s255, %s257
      %p264 = scmp.eq.s32.totalorder %s32, 1
      %p265 = por %p263, %p264
      %p266 = scmp.ne.s32.totalorder %s257, %s258
      %p267 = scmp.eq.s32.totalorder %s32, 0
      %p268 = por %p266, %p267
      %p269 = scmp.ne.s32.totalorder %s257, %s258
      %p270 = scmp.eq.s32.totalorder %s33, 1
      %p271 = por %p269, %p270
      %p273 = scmp.ne.s32.totalorder %s258, %s272
      %p274 = scmp.eq.s32.totalorder %s33, 0
      %p275 = por %p273, %p274
      %s277 = sadd.s32 %s276, 1
      %p280 = scmp.eq.s32.totalorder %s27, 1
      %p281 = scmp.ne.s32.totalorder %s276, %s278
      %p282 = scmp.eq.s32.totalorder %s27, 0
      %p283 = por %p281, %p282
      %p284 = scmp.ne.s32.totalorder %s276, %s278
      %p285 = scmp.eq.s32.totalorder %s32, 1
      %p286 = por %p284, %p285
      %p287 = scmp.ne.s32.totalorder %s278, %s279
      %p288 = scmp.eq.s32.totalorder %s32, 0
      %p289 = por %p287, %p288
      %p290 = scmp.ne.s32.totalorder %s278, %s279
      %p291 = scmp.eq.s32.totalorder %s33, 1
      %p292 = por %p290, %p291
      %p294 = scmp.ne.s32.totalorder %s279, %s293
      %p295 = scmp.eq.s32.totalorder %s33, 0
      %p296 = por %p294, %p295
      %s298 = sadd.s32 %s297, 1
      %p301 = scmp.eq.s32.totalorder %s27, 1
      %p302 = scmp.ne.s32.totalorder %s297, %s299
      %p303 = scmp.eq.s32.totalorder %s27, 0
      %p304 = por %p302, %p303
      %p305 = scmp.ne.s32.totalorder %s297, %s299
      %p306 = scmp.eq.s32.totalorder %s32, 1
      %p307 = por %p305, %p306
      %p308 = scmp.ne.s32.totalorder %s299, %s300
      %p309 = scmp.eq.s32.totalorder %s32, 0
      %p310 = por %p308, %p309
      %p311 = scmp.ne.s32.totalorder %s299, %s300
      %p312 = scmp.eq.s32.totalorder %s33, 1
      %p313 = por %p311, %p312
      %p315 = scmp.ne.s32.totalorder %s300, %s314
      %p316 = scmp.eq.s32.totalorder %s33, 0
      %p317 = por %p315, %p316
      %s318 = ssub.s32 %s27, %s34
      %p319 = scmp.eq.s32.totalorder %s318, 0
      %s321 = sadd.s32 %s320, 1
      %s322 = scalar_select %p319, %s320, %s321
      %p325 = pneg %p319
      %p326 = scmp.eq.s32.totalorder %s27, 1
      %p327 = por %p325, %p326
      %p328 = scmp.ne.s32.totalorder %s320, %s323
      %p329 = scmp.eq.s32.totalorder %s27, 0
      %p330 = por %p328, %p329
      %p331 = scmp.ne.s32.totalorder %s320, %s323
      %p332 = scmp.eq.s32.totalorder %s32, 1
      %p333 = por %p331, %p332
      %p334 = scmp.ne.s32.totalorder %s323, %s324
      %p335 = scmp.eq.s32.totalorder %s32, 0
      %p336 = por %p334, %p335
      %p337 = scmp.ne.s32.totalorder %s323, %s324
      %p338 = scmp.eq.s32.totalorder %s33, 1
      %p339 = por %p337, %p338
      %p341 = scmp.ne.s32.totalorder %s324, %s340
      %p342 = scmp.eq.s32.totalorder %s33, 0
      %p343 = por %p341, %p342
      %s344 = ssub.s32 %s27, %s34
      %p345 = scmp.eq.s32.totalorder %s344, 0
      %s347 = sadd.s32 %s346, 1
      %s348 = scalar_select %p345, %s346, %s347
      %p351 = pneg %p345
      %p352 = scmp.eq.s32.totalorder %s27, 1
      %p353 = por %p351, %p352
      %p354 = scmp.ne.s32.totalorder %s346, %s349
      %p355 = scmp.eq.s32.totalorder %s27, 0
      %p356 = por %p354, %p355
      %p357 = scmp.ne.s32.totalorder %s346, %s349
      %p358 = scmp.eq.s32.totalorder %s32, 1
      %p359 = por %p357, %p358
      %p360 = scmp.ne.s32.totalorder %s349, %s350
      %p361 = scmp.eq.s32.totalorder %s32, 0
      %p362 = por %p360, %p361
      %p363 = scmp.ne.s32.totalorder %s349, %s350
      %p364 = scmp.eq.s32.totalorder %s33, 1
      %p365 = por %p363, %p364
      %p367 = scmp.ne.s32.totalorder %s350, %s366
      %p368 = scmp.eq.s32.totalorder %s33, 0
      %p369 = por %p367, %p368
      %p370 = scmp.le.s32.totalorder 1, %s27
      %p371 = scmp.lt.s32.totalorder %s27, 3
      %p372 = pnand %p370, %p371
      %p373 = pneg %p372
      // Predicated region
      $region9: #{_vit_forward.1} parent=5 // pred_check
        _
      $region10: #{_vit_forward.1} parent=5 // pred_check_branch
        %375 = sbr.rel (%p372) target = $region12
      $region11: #{_vit_forward.1} parent=5 // pred_region
        %s376 = ssub.s32 %s27, 1
        // Predicated region
        $region13: #{_vit_forward.1} parent=11 // pred_check
          %p377 = pneg %p100
        $region14: #{_vit_forward.1} parent=11 // pred_check_branch
          %379 = sbr.rel (%p377) target = $region16
        $region15: #{_vit_forward.1} parent=11 // pred_region
          _
        $region16: #{_vit_forward.1} parent=11 // pred_fallthru
          _
        // Predicated region
        $region17: #{_vit_forward.1} parent=11 // pred_check
          %p380 = pneg %p121
        $region18: #{_vit_forward.1} parent=11 // pred_check_branch
          %382 = sbr.rel (%p380) target = $region20
        $region19: #{_vit_forward.1} parent=11 // pred_region
          _
        $region20: #{_vit_forward.1} parent=11 // pred_fallthru
          _
        // Predicated region
        $region21: #{_vit_forward.1} parent=11 // pred_check
          %p383 = pneg %p142
        $region22: #{_vit_forward.1} parent=11 // pred_check_branch
          %385 = sbr.rel (%p383) target = $region24
        $region23: #{_vit_forward.1} parent=11 // pred_region
          _
        $region24: #{_vit_forward.1} parent=11 // pred_fallthru
          _
        // Predicated region
        $region25: #{_vit_forward.1} parent=11 // pred_check
          %p386 = pneg %p163
        $region26: #{_vit_forward.1} parent=11 // pred_check_branch
          %388 = sbr.rel (%p386) target = $region28
        $region27: #{_vit_forward.1} parent=11 // pred_region
          _
        $region28: #{_vit_forward.1} parent=11 // pred_fallthru
          _
        // Predicated region
        $region29: #{_vit_forward.1} parent=11 // pred_check
          %p389 = pneg %p184
        $region30: #{_vit_forward.1} parent=11 // pred_check_branch
          %391 = sbr.rel (%p389) target = $region32
        $region31: #{_vit_forward.1} parent=11 // pred_region
          _
        $region32: #{_vit_forward.1} parent=11 // pred_fallthru
          _
        // Predicated region
        $region33: #{_vit_forward.1} parent=11 // pred_check
          %p392 = pneg %p205
        $region34: #{_vit_forward.1} parent=11 // pred_check_branch
          %394 = sbr.rel (%p392) target = $region36
        $region35: #{_vit_forward.1} parent=11 // pred_region
          _
        $region36: #{_vit_forward.1} parent=11 // pred_fallthru
          _
        // Predicated region
        $region37: #{_vit_forward.1} parent=11 // pred_check
          %p395 = pneg %p226
        $region38: #{_vit_forward.1} parent=11 // pred_check_branch
          %397 = sbr.rel (%p395) target = $region40
        $region39: #{_vit_forward.1} parent=11 // pred_region
          _
        $region40: #{_vit_forward.1} parent=11 // pred_fallthru
          _
        // Predicated region
        $region41: #{_vit_forward.1} parent=11 // pred_check
          %p398 = pneg %p247
        $region42: #{_vit_forward.1} parent=11 // pred_check_branch
          %400 = sbr.rel (%p398) target = $region44
        $region43: #{_vit_forward.1} parent=11 // pred_region
          _
        $region44: #{_vit_forward.1} parent=11 // pred_fallthru
          _
        // Predicated region
        $region45: #{_vit_forward.1} parent=11 // pred_check
          %p401 = pneg %p268
        $region46: #{_vit_forward.1} parent=11 // pred_check_branch
          %403 = sbr.rel (%p401) target = $region48
        $region47: #{_vit_forward.1} parent=11 // pred_region
          _
        $region48: #{_vit_forward.1} parent=11 // pred_fallthru
          _
        // Predicated region
        $region49: #{_vit_forward.1} parent=11 // pred_check
          %p404 = pneg %p289
        $region50: #{_vit_forward.1} parent=11 // pred_check_branch
          %406 = sbr.rel (%p404) target = $region52
        $region51: #{_vit_forward.1} parent=11 // pred_region
          _
        $region52: #{_vit_forward.1} parent=11 // pred_fallthru
          _
        // Predicated region
        $region53: #{_vit_forward.1} parent=11 // pred_check
          %p407 = pneg %p310
        $region54: #{_vit_forward.1} parent=11 // pred_check_branch
          %409 = sbr.rel (%p407) target = $region56
        $region55: #{_vit_forward.1} parent=11 // pred_region
          _
        $region56: #{_vit_forward.1} parent=11 // pred_fallthru
          _
      $region12: #{_vit_forward.1} parent=5 // pred_fallthru
        _
      %p410 = scmp.lt.s32.totalorder %s27, 2
      // Predicated region
      $region57: #{_vit_forward.1} parent=5 // pred_check
        %p411 = pneg %p410
      $region58: #{_vit_forward.1} parent=5 // pred_check_branch
        %413 = sbr.rel (%p411) target = $region60
      $region59: #{_vit_forward.1} parent=5 // pred_region
        // Predicated region
        $region61: #{_vit_forward.1} parent=59 // pred_check
          %p414 = pneg %p47
        $region62: #{_vit_forward.1} parent=59 // pred_check_branch
          %416 = sbr.rel (%p414) target = $region64
        $region63: #{_vit_forward.1} parent=59 // pred_region
          %p417 = scmp.lt.s32.totalorder %s27, 1
          %s418 = scalar_select %p417, %s27, 1
          %s419 = smul.addr %s418, 8
          %s420 = smul.addr %s419, 4
          %s421 = scalar_lea.vmem %s0, %s420
        $region64: #{_vit_forward.1} parent=59 // pred_fallthru
          _
        // Predicated region
        $region65: #{_vit_forward.1} parent=59 // pred_check
          %p422 = pneg %p73
        $region66: #{_vit_forward.1} parent=59 // pred_check_branch
          %424 = sbr.rel (%p422) target = $region68
        $region67: #{_vit_forward.1} parent=59 // pred_region
          %p425 = scmp.lt.s32.totalorder %s27, 1
          %s426 = scalar_select %p425, %s27, 1
          %s427 = smul.addr %s426, 16
          %s428 = smul.addr %s427, 4
          %s429 = scalar_lea.vmem %s1, %s428
        $region68: #{_vit_forward.1} parent=59 // pred_fallthru
          _
      $region60: #{_vit_forward.1} parent=5 // pred_fallthru
        _
      %p430 = scmp.le.s32.totalorder 1, %s27
      %p431 = scmp.lt.s32.totalorder %s27, 3
      %p432 = pnand %p430, %p431
      %p433 = pneg %p432
      // Predicated region
      $region69: #{_vit_forward.1} parent=5 // pred_check
        _
      $region70: #{_vit_forward.1} parent=5 // pred_check_branch
        %435 = sbr.rel (%p432) target = $region72
      $region71: #{_vit_forward.1} parent=5 // pred_region
        %s436 = ssub.s32 %s27, 1
        %p437 = scmp.lt.s32.totalorder %s32, 1
        %s438 = scalar_select %p437, %s32, 1
        %s439 = smul.addr %s438, 8
        %s440 = smul.addr %s439, 4
        %s441 = scalar_lea.vmem %s0, %s440
        %p442 = pneg %p53
        %p443 = pneg %p50
        %p444 = scmp.lt.s32.totalorder %s32, 1
        %s445 = scalar_select %p444, %s32, 1
        %s446 = smul.addr %s445, 16
        %s447 = smul.addr %s446, 4
        %s448 = scalar_lea.vmem %s1, %s447
        %p449 = pneg %p79
        %p450 = pneg %p76
        %p451 = pneg %p100
        %p452 = pneg %p97
        %p453 = pneg %p121
        %p454 = pneg %p118
        %p455 = pneg %p142
        %p456 = pneg %p139
        %p457 = pneg %p163
        %p458 = pneg %p160
        %p459 = pneg %p184
        %p460 = pneg %p181
        %p461 = pneg %p205
        %p462 = pneg %p202
        %p463 = pneg %p226
        %p464 = pneg %p223
        %p465 = pneg %p247
        %p466 = pneg %p244
        %p467 = pneg %p268
        %p468 = pneg %p265
        %p469 = pneg %p289
        %p470 = pneg %p286
        %p471 = pneg %p310
        %p472 = pneg %p307
        %p473 = pneg %p336
        %p474 = pneg %p333
        %s475 = sand.u32 %s323, 1
        %s476 = scalar_lea.sflag [#allocation3], %s475
        %s477 = sand.u32 %s323, 1
        %s478 = smul.addr %s477, 64
        %s479 = scalar_lea.vmem [#allocation2], %s478
        %p480 = pneg %p362
        %p481 = pneg %p359
        %s482 = sand.u32 %s349, 1
        %s483 = scalar_lea.sflag [#allocation5], %s482
        %s484 = sand.u32 %s349, 1
        %s485 = smul.addr %s484, 128
        %s486 = scalar_lea.vmem [#allocation4], %s485
        %p487 = scmp.lt.s32.totalorder %s32, 1
        %s488 = scalar_select %p487, %s32, 1
        %s489 = smul.addr %s488, 8
        %s490 = smul.addr %s489, 4
        %s491 = scalar_lea.vmem %s0, %s490
        %p492 = scmp.lt.s32.totalorder %s32, 1
        %s493 = scalar_select %p492, %s32, 1
        %s494 = smul.addr %s493, 16
        %s495 = smul.addr %s494, 4
        %s496 = scalar_lea.vmem %s1, %s495
        %v498 = vld [vmem:[%s496] sm:$0xf]
        %v499 = vld [vmem:[%s496 + $0x4] sm:$0xf]
        %v500 = vld [vmem:[%s496 + $0x8] sm:$0xf]
        %v501 = vld [vmem:[%s496 + $0xc] sm:$0xf]
        %v502 = vld [vmem:[%s496 + $0x10] sm:$0xf]
        %v503 = vld [vmem:[%s496 + $0x14] sm:$0xf]
        %v504 = vld [vmem:[%s496 + $0x18] sm:$0xf]
        %v505 = vld [vmem:[%s496 + $0x1c] sm:$0xf]
        %v506 = vld [vmem:[%s496 + $0x20] sm:$0xf]
        %v507 = vld [vmem:[%s496 + $0x24] sm:$0xf]
        %v508 = vld [vmem:[%s496 + $0x28] sm:$0xf]
        %v509 = vld [vmem:[%s496 + $0x2c] sm:$0xf]
        %v510 = vld [vmem:[%s496 + $0x30] sm:$0xf]
        %v511 = vld [vmem:[%s496 + $0x34] sm:$0xf]
        %v512 = vld [vmem:[%s496 + $0x38] sm:$0xf]
        %v513 = vld [vmem:[%s496 + $0x3c] sm:$0xf]
        %v514 = vld [vmem:[%s2] sm:$0xf]
        %v515 = vld [vmem:[%s2 + $0x4] sm:$0xf]
        %v516 = vld [vmem:[%s2 + $0x8] sm:$0xf]
        %v517 = vld [vmem:[%s2 + $0xc] sm:$0xf]
        %v518 = vld [vmem:[%s2 + $0x10] sm:$0xf]
        %v519 = vld [vmem:[%s2 + $0x14] sm:$0xf]
        %v520 = vld [vmem:[%s2 + $0x18] sm:$0xf]
        %v521 = vld [vmem:[%s2 + $0x1c] sm:$0xf]
        %v522 = vld [vmem:[%s3] sm:$0x1]
        %v524 = vlaneseq
        %v525 = vshrl.u32 %v524, 7
        %v526 = vsub.s32 0, %v525
        %v527 = vrot.slane %v522, %v526
        %v545 = vunpack.c.l.b16 %v498
        %v546 = vunpack.c.l.b16 %v499
        %v547 = vunpack.c.l.b16 %v500
        %v548 = vunpack.c.l.b16 %v501
        %v549 = vunpack.c.l.b16 %v502
        %v550 = vunpack.c.l.b16 %v503
        %v551 = vunpack.c.l.b16 %v504
        %v552 = vunpack.c.l.b16 %v505
        %v553 = vunpack.c.l.b16 %v506
        %v554 = vunpack.c.l.b16 %v507
        %v555 = vunpack.c.l.b16 %v508
        %v556 = vunpack.c.l.b16 %v509
        %v557 = vunpack.c.l.b16 %v510
        %v558 = vunpack.c.l.b16 %v511
        %v559 = vunpack.c.l.b16 %v512
        %v560 = vunpack.c.l.b16 %v513
        %v561 = vpack.c.b16 %v546, %v545
        %v562 = vpack.c.b16 %v548, %v547
        %v563 = vpack.c.b16 %v550, %v549
        %v564 = vpack.c.b16 %v552, %v551
        %v565 = vpack.c.b16 %v554, %v553
        %v566 = vpack.c.b16 %v556, %v555
        %v567 = vpack.c.b16 %v558, %v557
        %v568 = vpack.c.b16 %v560, %v559
        %v577 = vunpack.c.l.b16 %v514
        %v578 = vunpack.c.l.b16 %v515
        %v579 = vunpack.c.l.b16 %v516
        %v580 = vunpack.c.l.b16 %v517
        %v581 = vunpack.c.l.b16 %v518
        %v582 = vunpack.c.l.b16 %v519
        %v583 = vunpack.c.l.b16 %v520
        %v584 = vunpack.c.l.b16 %v521
        %v585 = vpack.c.b16 %v578, %v577
        %v586 = vpack.c.b16 %v580, %v579
        %v587 = vpack.c.b16 %v582, %v581
        %v588 = vpack.c.b16 %v584, %v583
        %vm593 = vcmask 523264
        %v595 = vsel %vm593, %v561, 0
        %v598 = vsel %vm593, %v562, 0
        %v601 = vsel %vm593, %v563, 0
        %v604 = vsel %vm593, %v564, 0
        %v607 = vsel %vm593, %v565, 0
        %v610 = vsel %vm593, %v566, 0
        %v613 = vsel %vm593, %v567, 0
        %v616 = vsel %vm593, %v568, 0
        %618 = vmatprep.subr.bf16.mxu0 0
        %619 = vmatpush1.bf16.msra.mxu0 0
        %620 = vmatprep.subr.bf16.mxu0 0
        %621 = vmatpush1.bf16.msra.mxu0 0
        %622 = vmatprep.subr.bf16.mxu0 0
        %623 = vmatpush1.bf16.msra.mxu0 0
        %624 = vmatprep.subr.bf16.mxu0 0
        %625 = vmatpush1.bf16.msra.mxu0 0
        %626 = vmatprep.subr.bf16.mxu0 0
        %627 = vmatpush1.bf16.msra.mxu0 %v588
        %628 = vmatprep.subr.bf16.mxu0 0
        %629 = vmatpush1.bf16.msra.mxu0 %v587
        %630 = vmatprep.subr.bf16.mxu0 0
        %631 = vmatpush1.bf16.msra.mxu0 %v586
        %632 = vmatprep.subr.bf16.mxu0 0
        %633 = vmatpush1.bf16.msra.mxu0 %v585
        %634 = vmatprep.subr.bf16.mxu0 0
        %635 = vmatpush2.bf16.msra.mxu0 0
        %636 = vmatprep.subr.bf16.mxu0 0
        %637 = vmatpush2.bf16.msra.mxu0 0
        %638 = vmatprep.subr.bf16.mxu0 0
        %639 = vmatpush2.bf16.msra.mxu0 0
        %640 = vmatprep.subr.bf16.mxu0 0
        %641 = vmatpush2.bf16.msra.mxu0 0
        %642 = vmatprep.subr.bf16.mxu0 0
        %643 = vmatpush2.bf16.msra.mxu0 0
        %644 = vmatprep.subr.bf16.mxu0 0
        %645 = vmatpush2.bf16.msra.mxu0 0
        %646 = vmatprep.subr.bf16.mxu0 0
        %647 = vmatpush2.bf16.msra.mxu0 0
        %648 = vmatprep.subr.bf16.mxu0 0
        %649 = vmatpush2.bf16.msra.mxu0 0
        %650 = vmatprep.mubr.bf16.mxu0 0
        %651 = vmatmul.mubr.bf16.gmra.mxu0 %v595
        %v652 = vpop.f32.mrf.mxu0
        %v653 = vadd.f32 %v527, %v652
        %v654 = vpop.f32.mrf.mxu0
        %v655 = vpop.f32.mrf.mxu0
        %v656 = vadd.f32 %v527, %v655
        %v657 = vpop.f32.mrf.mxu0
        %658 = vmatprep.mubr.bf16.mxu0 0
        %659 = vmatmul.mubr.bf16.gmra.mxu0 %v598
        %v660 = vpop.f32.mrf.mxu0
        %v661 = vadd.f32 %v527, %v660
        %v662 = vpop.f32.mrf.mxu0
        %v663 = vpop.f32.mrf.mxu0
        %v664 = vadd.f32 %v527, %v663
        %v665 = vpop.f32.mrf.mxu0
        %666 = vmatprep.mubr.bf16.mxu0 0
        %667 = vmatmul.mubr.bf16.gmra.mxu0 %v601
        %v668 = vpop.f32.mrf.mxu0
        %v669 = vadd.f32 %v527, %v668
        %v670 = vpop.f32.mrf.mxu0
        %v671 = vpop.f32.mrf.mxu0
        %v672 = vadd.f32 %v527, %v671
        %v673 = vpop.f32.mrf.mxu0
        %674 = vmatprep.mubr.bf16.mxu0 0
        %675 = vmatmul.mubr.bf16.gmra.mxu0 %v604
        %v676 = vpop.f32.mrf.mxu0
        %v677 = vadd.f32 %v527, %v676
        %v678 = vpop.f32.mrf.mxu0
        %v679 = vpop.f32.mrf.mxu0
        %v680 = vadd.f32 %v527, %v679
        %v681 = vpop.f32.mrf.mxu0
        %682 = vmatprep.mubr.bf16.mxu0 0
        %683 = vmatmul.mubr.bf16.gmra.mxu0 %v607
        %v684 = vpop.f32.mrf.mxu0
        %v685 = vadd.f32 %v527, %v684
        %v686 = vpop.f32.mrf.mxu0
        %v687 = vpop.f32.mrf.mxu0
        %v688 = vadd.f32 %v527, %v687
        %v689 = vpop.f32.mrf.mxu0
        %690 = vmatprep.mubr.bf16.mxu0 0
        %691 = vmatmul.mubr.bf16.gmra.mxu0 %v610
        %v692 = vpop.f32.mrf.mxu0
        %v693 = vadd.f32 %v527, %v692
        %v694 = vpop.f32.mrf.mxu0
        %v695 = vpop.f32.mrf.mxu0
        %v696 = vadd.f32 %v527, %v695
        %v697 = vpop.f32.mrf.mxu0
        %698 = vmatprep.mubr.bf16.mxu0 0
        %699 = vmatmul.mubr.bf16.gmra.mxu0 %v613
        %v700 = vpop.f32.mrf.mxu0
        %v701 = vadd.f32 %v527, %v700
        %v702 = vpop.f32.mrf.mxu0
        %v703 = vpop.f32.mrf.mxu0
        %v704 = vadd.f32 %v527, %v703
        %v705 = vpop.f32.mrf.mxu0
        %706 = vmatprep.mubr.bf16.mxu0 0
        %707 = vmatmul.mubr.bf16.gmra.mxu0 %v616
        %v708 = vpop.f32.mrf.mxu0
        %v709 = vadd.f32 %v527, %v708
        %v710 = vpop.f32.mrf.mxu0
        %v711 = vpop.f32.mrf.mxu0
        %v712 = vadd.f32 %v527, %v711
        %v713 = vpop.f32.mrf.mxu0
        %714 = vdwg.mxu0
        %v715 = vlaneseq
        %v716 = vand.u32 %v715, 127
        %v717 = vlaneseq
        %v718 = vshrl.u32 %v717, 7
        %v719 = vmul.u32 %v718, 16
        %vm720 = vcmp.ge.s32.totalorder %v716, %v719
        %v721 = vadd.s32 %v718, 1
        %v722 = vmul.u32 %v721, 16
        %vm723 = vcmp.lt.s32.totalorder %v716, %v722
        %vm724 = vmand %vm720, %vm723
        %v725 = vsel %vm724, 1, 0
        %v726 = vcvt.s32.f32 %v725
        %v727 = vadd.s32 %v718, 8
        %v728 = vadd.s32 %v718, 16
        %v729 = vadd.s32 %v718, 24
        %v730 = vadd.s32 %v718, 32
        %v731 = vadd.s32 %v718, 40
        %v732 = vadd.s32 %v718, 48
        %v733 = vadd.s32 %v718, 56
        %v734 = vadd.s32 %v718, 64
        %v735 = vadd.s32 %v718, 72
        %v736 = vadd.s32 %v718, 80
        %v737 = vadd.s32 %v718, 88
        %v738 = vadd.s32 %v718, 96
        %v739 = vadd.s32 %v718, 104
        %v740 = vadd.s32 %v718, 112
        %v741 = vadd.s32 %v718, 120
        %v742 = vmul.u32 %v716, 16
        %vm743 = vcmp.ge.s32.totalorder %v718, %v742
        %vm744 = vcmp.ge.s32.totalorder %v727, %v742
        %vm745 = vcmp.ge.s32.totalorder %v728, %v742
        %vm746 = vcmp.ge.s32.totalorder %v729, %v742
        %vm747 = vcmp.ge.s32.totalorder %v730, %v742
        %vm748 = vcmp.ge.s32.totalorder %v731, %v742
        %vm749 = vcmp.ge.s32.totalorder %v732, %v742
        %vm750 = vcmp.ge.s32.totalorder %v733, %v742
        %vm751 = vcmp.ge.s32.totalorder %v734, %v742
        %vm752 = vcmp.ge.s32.totalorder %v735, %v742
        %vm753 = vcmp.ge.s32.totalorder %v736, %v742
        %vm754 = vcmp.ge.s32.totalorder %v737, %v742
        %vm755 = vcmp.ge.s32.totalorder %v738, %v742
        %vm756 = vcmp.ge.s32.totalorder %v739, %v742
        %vm757 = vcmp.ge.s32.totalorder %v740, %v742
        %vm758 = vcmp.ge.s32.totalorder %v741, %v742
        %v759 = vadd.s32 %v716, 1
        %v760 = vmul.u32 %v759, 16
        %vm761 = vcmp.lt.s32.totalorder %v718, %v760
        %vm762 = vcmp.lt.s32.totalorder %v727, %v760
        %vm763 = vcmp.lt.s32.totalorder %v728, %v760
        %vm764 = vcmp.lt.s32.totalorder %v729, %v760
        %vm765 = vcmp.lt.s32.totalorder %v730, %v760
        %vm766 = vcmp.lt.s32.totalorder %v731, %v760
        %vm767 = vcmp.lt.s32.totalorder %v732, %v760
        %vm768 = vcmp.lt.s32.totalorder %v733, %v760
        %vm769 = vcmp.lt.s32.totalorder %v734, %v760
        %vm770 = vcmp.lt.s32.totalorder %v735, %v760
        %vm771 = vcmp.lt.s32.totalorder %v736, %v760
        %vm772 = vcmp.lt.s32.totalorder %v737, %v760
        %vm773 = vcmp.lt.s32.totalorder %v738, %v760
        %vm774 = vcmp.lt.s32.totalorder %v739, %v760
        %vm775 = vcmp.lt.s32.totalorder %v740, %v760
        %vm776 = vcmp.lt.s32.totalorder %v741, %v760
        %vm777 = vmand %vm743, %vm761
        %vm778 = vmand %vm744, %vm762
        %vm779 = vmand %vm745, %vm763
        %vm780 = vmand %vm746, %vm764
        %vm781 = vmand %vm747, %vm765
        %vm782 = vmand %vm748, %vm766
        %vm783 = vmand %vm749, %vm767
        %vm784 = vmand %vm750, %vm768
        %vm785 = vmand %vm751, %vm769
        %vm786 = vmand %vm752, %vm770
        %vm787 = vmand %vm753, %vm771
        %vm788 = vmand %vm754, %vm772
        %vm789 = vmand %vm755, %vm773
        %vm790 = vmand %vm756, %vm774
        %vm791 = vmand %vm757, %vm775
        %vm792 = vmand %vm758, %vm776
        %v793 = vsel %vm777, 1, 0
        %v794 = vsel %vm778, 1, 0
        %v795 = vsel %vm779, 1, 0
        %v796 = vsel %vm780, 1, 0
        %v797 = vsel %vm781, 1, 0
        %v798 = vsel %vm782, 1, 0
        %v799 = vsel %vm783, 1, 0
        %v800 = vsel %vm784, 1, 0
        %v801 = vsel %vm785, 1, 0
        %v802 = vsel %vm786, 1, 0
        %v803 = vsel %vm787, 1, 0
        %v804 = vsel %vm788, 1, 0
        %v805 = vsel %vm789, 1, 0
        %v806 = vsel %vm790, 1, 0
        %v807 = vsel %vm791, 1, 0
        %v808 = vsel %vm792, 1, 0
        %v809 = vcvt.s32.f32 %v793
        %v810 = vcvt.s32.f32 %v794
        %v811 = vcvt.s32.f32 %v795
        %v812 = vcvt.s32.f32 %v796
        %v813 = vcvt.s32.f32 %v797
        %v814 = vcvt.s32.f32 %v798
        %v815 = vcvt.s32.f32 %v799
        %v816 = vcvt.s32.f32 %v800
        %v817 = vcvt.s32.f32 %v801
        %v818 = vcvt.s32.f32 %v802
        %v819 = vcvt.s32.f32 %v803
        %v820 = vcvt.s32.f32 %v804
        %v821 = vcvt.s32.f32 %v805
        %v822 = vcvt.s32.f32 %v806
        %v823 = vcvt.s32.f32 %v807
        %v824 = vcvt.s32.f32 %v808
        %v825 = vmul.u32 %v718, 8
        %vm826 = vcmp.ge.s32.totalorder %v716, %v825
        %v827 = vmul.u32 %v721, 8
        %vm828 = vcmp.lt.s32.totalorder %v716, %v827
        %vm829 = vmand %vm826, %vm828
        %v830 = vsel %vm829, 1, 0
        %v831 = vcvt.s32.f32 %v830
        %v832 = vmul.u32 %v716, 8
        %vm833 = vcmp.ge.s32.totalorder %v718, %v832
        %vm834 = vcmp.ge.s32.totalorder %v727, %v832
        %v835 = vmul.u32 %v759, 8
        %vm836 = vcmp.lt.s32.totalorder %v718, %v835
        %vm837 = vcmp.lt.s32.totalorder %v727, %v835
        %vm838 = vmand %vm833, %vm836
        %vm839 = vmand %vm834, %vm837
        %v840 = vsel %vm838, 1, 0
        %v841 = vsel %vm839, 1, 0
        %v842 = vcvt.s32.f32 %v840
        %v843 = vcvt.s32.f32 %v841
        %844 = vmatprep.subr.mxu0 0.0
        %845 = vmatpush1.msra.mxu0 %v712
        %846 = vmatprep.subr.mxu0 0.0
        %847 = vmatpush1.msra.mxu0 %v709
        %848 = vmatprep.subr.mxu0 0.0
        %849 = vmatpush1.msra.mxu0 %v704
        %850 = vmatprep.subr.mxu0 0.0
        %851 = vmatpush1.msra.mxu0 %v701
        %852 = vmatprep.subr.mxu0 0.0
        %853 = vmatpush1.msra.mxu0 %v696
        %854 = vmatprep.subr.mxu0 0.0
        %855 = vmatpush1.msra.mxu0 %v693
        %856 = vmatprep.subr.mxu0 0.0
        %857 = vmatpush1.msra.mxu0 %v688
        %858 = vmatprep.subr.mxu0 0.0
        %859 = vmatpush1.msra.mxu0 %v685
        %860 = vmatprep.subr.mxu0 0.0
        %861 = vmatpush1.msra.mxu0 %v680
        %862 = vmatprep.subr.mxu0 0.0
        %863 = vmatpush1.msra.mxu0 %v677
        %864 = vmatprep.subr.mxu0 0.0
        %865 = vmatpush1.msra.mxu0 %v672
        %866 = vmatprep.subr.mxu0 0.0
        %867 = vmatpush1.msra.mxu0 %v669
        %868 = vmatprep.subr.mxu0 0.0
        %869 = vmatpush1.msra.mxu0 %v664
        %870 = vmatprep.subr.mxu0 0.0
        %871 = vmatpush1.msra.mxu0 %v661
        %872 = vmatprep.subr.mxu0 0.0
        %873 = vmatpush1.msra.mxu0 %v656
        %874 = vmatprep.subr.mxu0 0.0
        %875 = vmatpush1.msra.mxu0 %v653
        %876 = vmatprep.subr.mxu0 0.0
        %877 = vmatpush2.msra.mxu0 0.0
        %878 = vmatprep.subr.mxu0 0.0
        %879 = vmatpush2.msra.mxu0 0.0
        %880 = vmatprep.subr.mxu0 0.0
        %881 = vmatpush2.msra.mxu0 0.0
        %882 = vmatprep.subr.mxu0 0.0
        %883 = vmatpush2.msra.mxu0 0.0
        %884 = vmatprep.subr.mxu0 0.0
        %885 = vmatpush2.msra.mxu0 0.0
        %886 = vmatprep.subr.mxu0 0.0
        %887 = vmatpush2.msra.mxu0 0.0
        %888 = vmatprep.subr.mxu0 0.0
        %889 = vmatpush2.msra.mxu0 0.0
        %890 = vmatprep.subr.mxu0 0.0
        %891 = vmatpush2.msra.mxu0 0.0
        %892 = vmatprep.subr.mxu0 0.0
        %893 = vmatpush2.msra.mxu0 0.0
        %894 = vmatprep.subr.mxu0 0.0
        %895 = vmatpush2.msra.mxu0 0.0
        %896 = vmatprep.subr.mxu0 0.0
        %897 = vmatpush2.msra.mxu0 0.0
        %898 = vmatprep.subr.mxu0 0.0
        %899 = vmatpush2.msra.mxu0 0.0
        %900 = vmatprep.subr.mxu0 0.0
        %901 = vmatpush2.msra.mxu0 0.0
        %902 = vmatprep.subr.mxu0 0.0
        %903 = vmatpush2.msra.mxu0 0.0
        %904 = vmatprep.subr.mxu0 0.0
        %905 = vmatpush2.msra.mxu0 0.0
        %906 = vmatprep.subr.mxu0 0.0
        %907 = vmatpush2.msra.mxu0 0.0
        %908 = vmatprep.mubr.f32.mxu0 0.0
        %909 = vmatmul.mubr.f32.gmra.mxu0 %v726
        %v910 = vpop.f32.mrf.mxu0
        %v911 = vadd.f32 0.0, %v910
        %v912 = vpop.f32.mrf.mxu0
        %913 = vdwg.mxu0
        %v914 = vmul.f32 %v653, %v653
        %v915 = vmul.f32 %v656, %v656
        %v916 = vmul.f32 %v661, %v661
        %v917 = vmul.f32 %v664, %v664
        %v918 = vmul.f32 %v669, %v669
        %v919 = vmul.f32 %v672, %v672
        %v920 = vmul.f32 %v677, %v677
        %v921 = vmul.f32 %v680, %v680
        %v922 = vmul.f32 %v685, %v685
        %v923 = vmul.f32 %v688, %v688
        %v924 = vmul.f32 %v693, %v693
        %v925 = vmul.f32 %v696, %v696
        %v926 = vmul.f32 %v701, %v701
        %v927 = vmul.f32 %v704, %v704
        %v928 = vmul.f32 %v709, %v709
        %v929 = vmul.f32 %v712, %v712
        %930 = vmatprep.subr.mxu0 0.0
        %931 = vmatpush1.msra.mxu0 %v929
        %932 = vmatprep.subr.mxu0 0.0
        %933 = vmatpush1.msra.mxu0 %v928
        %934 = vmatprep.subr.mxu0 0.0
        %935 = vmatpush1.msra.mxu0 %v927
        %936 = vmatprep.subr.mxu0 0.0
        %937 = vmatpush1.msra.mxu0 %v926
        %938 = vmatprep.subr.mxu0 0.0
        %939 = vmatpush1.msra.mxu0 %v925
        %940 = vmatprep.subr.mxu0 0.0
        %941 = vmatpush1.msra.mxu0 %v924
        %942 = vmatprep.subr.mxu0 0.0
        %943 = vmatpush1.msra.mxu0 %v923
        %944 = vmatprep.subr.mxu0 0.0
        %945 = vmatpush1.msra.mxu0 %v922
        %946 = vmatprep.subr.mxu0 0.0
        %947 = vmatpush1.msra.mxu0 %v921
        %948 = vmatprep.subr.mxu0 0.0
        %949 = vmatpush1.msra.mxu0 %v920
        %950 = vmatprep.subr.mxu0 0.0
        %951 = vmatpush1.msra.mxu0 %v919
        %952 = vmatprep.subr.mxu0 0.0
        %953 = vmatpush1.msra.mxu0 %v918
        %954 = vmatprep.subr.mxu0 0.0
        %955 = vmatpush1.msra.mxu0 %v917
        %956 = vmatprep.subr.mxu0 0.0
        %957 = vmatpush1.msra.mxu0 %v916
        %958 = vmatprep.subr.mxu0 0.0
        %959 = vmatpush1.msra.mxu0 %v915
        %960 = vmatprep.subr.mxu0 0.0
        %961 = vmatpush1.msra.mxu0 %v914
        %962 = vmatprep.subr.mxu0 0.0
        %963 = vmatpush2.msra.mxu0 0.0
        %964 = vmatprep.subr.mxu0 0.0
        %965 = vmatpush2.msra.mxu0 0.0
        %966 = vmatprep.subr.mxu0 0.0
        %967 = vmatpush2.msra.mxu0 0.0
        %968 = vmatprep.subr.mxu0 0.0
        %969 = vmatpush2.msra.mxu0 0.0
        %970 = vmatprep.subr.mxu0 0.0
        %971 = vmatpush2.msra.mxu0 0.0
        %972 = vmatprep.subr.mxu0 0.0
        %973 = vmatpush2.msra.mxu0 0.0
        %974 = vmatprep.subr.mxu0 0.0
        %975 = vmatpush2.msra.mxu0 0.0
        %976 = vmatprep.subr.mxu0 0.0
        %977 = vmatpush2.msra.mxu0 0.0
        %978 = vmatprep.subr.mxu0 0.0
        %979 = vmatpush2.msra.mxu0 0.0
        %980 = vmatprep.subr.mxu0 0.0
        %981 = vmatpush2.msra.mxu0 0.0
        %982 = vmatprep.subr.mxu0 0.0
        %983 = vmatpush2.msra.mxu0 0.0
        %984 = vmatprep.subr.mxu0 0.0
        %985 = vmatpush2.msra.mxu0 0.0
        %986 = vmatprep.subr.mxu0 0.0
        %987 = vmatpush2.msra.mxu0 0.0
        %988 = vmatprep.subr.mxu0 0.0
        %989 = vmatpush2.msra.mxu0 0.0
        %990 = vmatprep.subr.mxu0 0.0
        %991 = vmatpush2.msra.mxu0 0.0
        %992 = vmatprep.subr.mxu0 0.0
        %993 = vmatpush2.msra.mxu0 0.0
        %994 = vmatprep.mubr.f32.mxu0 0.0
        %995 = vmatmul.mubr.f32.gmra.mxu0 %v726
        %v996 = vpop.f32.mrf.mxu0
        %v997 = vadd.f32 0.0, %v996
        %v998 = vpop.f32.mrf.mxu0
        %999 = vdwg.mxu0
        %vm1000 = vcmask 130048
        %v1002 = vsel %vm1000, %v911, 0
        %1004 = vmatprep.subr.mxu0 0.0
        %1005 = vmatpush1.msra.mxu0 0.0
        %1006 = vmatprep.subr.mxu0 0.0
        %1007 = vmatpush1.msra.mxu0 0.0
        %1008 = vmatprep.subr.mxu0 0.0
        %1009 = vmatpush1.msra.mxu0 0.0
        %1010 = vmatprep.subr.mxu0 0.0
        %1011 = vmatpush1.msra.mxu0 0.0
        %1012 = vmatprep.subr.mxu0 0.0
        %1013 = vmatpush1.msra.mxu0 0.0
        %1014 = vmatprep.subr.mxu0 0.0
        %1015 = vmatpush1.msra.mxu0 0.0
        %1016 = vmatprep.subr.mxu0 0.0
        %1017 = vmatpush1.msra.mxu0 0.0
        %1018 = vmatprep.subr.mxu0 0.0
        %1019 = vmatpush1.msra.mxu0 0.0
        %1020 = vmatprep.subr.mxu0 0.0
        %1021 = vmatpush1.msra.mxu0 0.0
        %1022 = vmatprep.subr.mxu0 0.0
        %1023 = vmatpush1.msra.mxu0 0.0
        %1024 = vmatprep.subr.mxu0 0.0
        %1025 = vmatpush1.msra.mxu0 0.0
        %1026 = vmatprep.subr.mxu0 0.0
        %1027 = vmatpush1.msra.mxu0 0.0
        %1028 = vmatprep.subr.mxu0 0.0
        %1029 = vmatpush1.msra.mxu0 0.0
        %1030 = vmatprep.subr.mxu0 0.0
        %1031 = vmatpush1.msra.mxu0 0.0
        %1032 = vmatprep.subr.mxu0 0.0
        %1033 = vmatpush1.msra.mxu0 %v843
        %1034 = vmatprep.subr.mxu0 0.0
        %1035 = vmatpush1.msra.mxu0 %v842
        %1036 = vmatprep.subr.mxu0 0.0
        %1037 = vmatpush2.msra.mxu0 0.0
        %1038 = vmatprep.subr.mxu0 0.0
        %1039 = vmatpush2.msra.mxu0 0.0
        %1040 = vmatprep.subr.mxu0 0.0
        %1041 = vmatpush2.msra.mxu0 0.0
        %1042 = vmatprep.subr.mxu0 0.0
        %1043 = vmatpush2.msra.mxu0 0.0
        %1044 = vmatprep.subr.mxu0 0.0
        %1045 = vmatpush2.msra.mxu0 0.0
        %1046 = vmatprep.subr.mxu0 0.0
        %1047 = vmatpush2.msra.mxu0 0.0
        %1048 = vmatprep.subr.mxu0 0.0
        %1049 = vmatpush2.msra.mxu0 0.0
        %1050 = vmatprep.subr.mxu0 0.0
        %1051 = vmatpush2.msra.mxu0 0.0
        %1052 = vmatprep.subr.mxu0 0.0
        %1053 = vmatpush2.msra.mxu0 0.0
        %1054 = vmatprep.subr.mxu0 0.0
        %1055 = vmatpush2.msra.mxu0 0.0
        %1056 = vmatprep.subr.mxu0 0.0
        %1057 = vmatpush2.msra.mxu0 0.0
        %1058 = vmatprep.subr.mxu0 0.0
        %1059 = vmatpush2.msra.mxu0 0.0
        %1060 = vmatprep.subr.mxu0 0.0
        %1061 = vmatpush2.msra.mxu0 0.0
        %1062 = vmatprep.subr.mxu0 0.0
        %1063 = vmatpush2.msra.mxu0 0.0
        %1064 = vmatprep.subr.mxu0 0.0
        %1065 = vmatpush2.msra.mxu0 0.0
        %1066 = vmatprep.subr.mxu0 0.0
        %1067 = vmatpush2.msra.mxu0 0.0
        %1068 = vmatprep.mubr.f32.mxu0 0.0
        %1069 = vmatmul.mubr.f32.gmra.mxu0 %v1002
        %v1070 = vpop.f32.mrf.mxu0
        %v1071 = vadd.f32 0.0, %v1070
        %v1072 = vpop.f32.mrf.mxu0
        %1073 = vdwg.mxu0
        %v1074 = vmul.f32 %v1071, 0.0078125
        %v1076 = vsel %vm1000, %v997, 0
        %1078 = vmatprep.subr.mxu0 0.0
        %1079 = vmatpush1.msra.mxu0 0.0
        %1080 = vmatprep.subr.mxu0 0.0
        %1081 = vmatpush1.msra.mxu0 0.0
        %1082 = vmatprep.subr.mxu0 0.0
        %1083 = vmatpush1.msra.mxu0 0.0
        %1084 = vmatprep.subr.mxu0 0.0
        %1085 = vmatpush1.msra.mxu0 0.0
        %1086 = vmatprep.subr.mxu0 0.0
        %1087 = vmatpush1.msra.mxu0 0.0
        %1088 = vmatprep.subr.mxu0 0.0
        %1089 = vmatpush1.msra.mxu0 0.0
        %1090 = vmatprep.subr.mxu0 0.0
        %1091 = vmatpush1.msra.mxu0 0.0
        %1092 = vmatprep.subr.mxu0 0.0
        %1093 = vmatpush1.msra.mxu0 0.0
        %1094 = vmatprep.subr.mxu0 0.0
        %1095 = vmatpush1.msra.mxu0 0.0
        %1096 = vmatprep.subr.mxu0 0.0
        %1097 = vmatpush1.msra.mxu0 0.0
        %1098 = vmatprep.subr.mxu0 0.0
        %1099 = vmatpush1.msra.mxu0 0.0
        %1100 = vmatprep.subr.mxu0 0.0
        %1101 = vmatpush1.msra.mxu0 0.0
        %1102 = vmatprep.subr.mxu0 0.0
        %1103 = vmatpush1.msra.mxu0 0.0
        %1104 = vmatprep.subr.mxu0 0.0
        %1105 = vmatpush1.msra.mxu0 0.0
        %1106 = vmatprep.subr.mxu0 0.0
        %1107 = vmatpush1.msra.mxu0 %v843
        %1108 = vmatprep.subr.mxu0 0.0
        %1109 = vmatpush1.msra.mxu0 %v842
        %1110 = vmatprep.subr.mxu0 0.0
        %1111 = vmatpush2.msra.mxu0 0.0
        %1112 = vmatprep.subr.mxu0 0.0
        %1113 = vmatpush2.msra.mxu0 0.0
        %1114 = vmatprep.subr.mxu0 0.0
        %1115 = vmatpush2.msra.mxu0 0.0
        %1116 = vmatprep.subr.mxu0 0.0
        %1117 = vmatpush2.msra.mxu0 0.0
        %1118 = vmatprep.subr.mxu0 0.0
        %1119 = vmatpush2.msra.mxu0 0.0
        %1120 = vmatprep.subr.mxu0 0.0
        %1121 = vmatpush2.msra.mxu0 0.0
        %1122 = vmatprep.subr.mxu0 0.0
        %1123 = vmatpush2.msra.mxu0 0.0
        %1124 = vmatprep.subr.mxu0 0.0
        %1125 = vmatpush2.msra.mxu0 0.0
        %1126 = vmatprep.subr.mxu0 0.0
        %1127 = vmatpush2.msra.mxu0 0.0
        %1128 = vmatprep.subr.mxu0 0.0
        %1129 = vmatpush2.msra.mxu0 0.0
        %1130 = vmatprep.subr.mxu0 0.0
        %1131 = vmatpush2.msra.mxu0 0.0
        %1132 = vmatprep.subr.mxu0 0.0
        %1133 = vmatpush2.msra.mxu0 0.0
        %1134 = vmatprep.subr.mxu0 0.0
        %1135 = vmatpush2.msra.mxu0 0.0
        %1136 = vmatprep.subr.mxu0 0.0
        %1137 = vmatpush2.msra.mxu0 0.0
        %1138 = vmatprep.subr.mxu0 0.0
        %1139 = vmatpush2.msra.mxu0 0.0
        %1140 = vmatprep.subr.mxu0 0.0
        %1141 = vmatpush2.msra.mxu0 0.0
        %1142 = vmatprep.mubr.f32.mxu0 0.0
        %1143 = vmatmul.mubr.f32.gmra.mxu0 %v1076
        %v1144 = vpop.f32.mrf.mxu0
        %v1145 = vadd.f32 0.0, %v1144
        %v1146 = vpop.f32.mrf.mxu0
        %1147 = vdwg.mxu0
        %v1148 = vmul.f32 %v1145, 0.0078125
        %v1149 = vmul.f32 %v1074, %v1074
        %v1150 = vsub.f32 %v1148, %v1149
        %v1151 = vadd.f32 %v1150, 1e-05
        %v1152 = vrsqrt.pop %v1151
        %vm1153 = vcmask 15360
        %v1155 = vsel %vm1153, %v1074, 0
        %vm1157 = vcmask 1041408
        %v1159 = vsel %vm1157, %v831, 0
        %1161 = vmatprep.subr.mxu0 0.0
        %1162 = vmatpush1.msra.mxu0 0.0
        %1163 = vmatprep.subr.mxu0 0.0
        %1164 = vmatpush1.msra.mxu0 0.0
        %1165 = vmatprep.subr.mxu0 0.0
        %1166 = vmatpush1.msra.mxu0 0.0
        %1167 = vmatprep.subr.mxu0 0.0
        %1168 = vmatpush1.msra.mxu0 0.0
        %1169 = vmatprep.subr.mxu0 0.0
        %1170 = vmatpush1.msra.mxu0 0.0
        %1171 = vmatprep.subr.mxu0 0.0
        %1172 = vmatpush1.msra.mxu0 0.0
        %1173 = vmatprep.subr.mxu0 0.0
        %1174 = vmatpush1.msra.mxu0 0.0
        %1175 = vmatprep.subr.mxu0 0.0
        %1176 = vmatpush1.msra.mxu0 0.0
        %1177 = vmatprep.subr.mxu0 0.0
        %1178 = vmatpush1.msra.mxu0 0.0
        %1179 = vmatprep.subr.mxu0 0.0
        %1180 = vmatpush1.msra.mxu0 0.0
        %1181 = vmatprep.subr.mxu0 0.0
        %1182 = vmatpush1.msra.mxu0 0.0
        %1183 = vmatprep.subr.mxu0 0.0
        %1184 = vmatpush1.msra.mxu0 0.0
        %1185 = vmatprep.subr.mxu0 0.0
        %1186 = vmatpush1.msra.mxu0 0.0
        %1187 = vmatprep.subr.mxu0 0.0
        %1188 = vmatpush1.msra.mxu0 0.0
        %1189 = vmatprep.subr.mxu0 0.0
        %1190 = vmatpush1.msra.mxu0 0.0
        %1191 = vmatprep.subr.mxu0 0.0
        %1192 = vmatpush1.msra.mxu0 %v1159
        %1193 = vmatprep.subr.mxu0 0.0
        %1194 = vmatpush2.msra.mxu0 0.0
        %1195 = vmatprep.subr.mxu0 0.0
        %1196 = vmatpush2.msra.mxu0 0.0
        %1197 = vmatprep.subr.mxu0 0.0
        %1198 = vmatpush2.msra.mxu0 0.0
        %1199 = vmatprep.subr.mxu0 0.0
        %1200 = vmatpush2.msra.mxu0 0.0
        %1201 = vmatprep.subr.mxu0 0.0
        %1202 = vmatpush2.msra.mxu0 0.0
        %1203 = vmatprep.subr.mxu0 0.0
        %1204 = vmatpush2.msra.mxu0 0.0
        %1205 = vmatprep.subr.mxu0 0.0
        %1206 = vmatpush2.msra.mxu0 0.0
        %1207 = vmatprep.subr.mxu0 0.0
        %1208 = vmatpush2.msra.mxu0 0.0
        %1209 = vmatprep.subr.mxu0 0.0
        %1210 = vmatpush2.msra.mxu0 0.0
        %1211 = vmatprep.subr.mxu0 0.0
        %1212 = vmatpush2.msra.mxu0 0.0
        %1213 = vmatprep.subr.mxu0 0.0
        %1214 = vmatpush2.msra.mxu0 0.0
        %1215 = vmatprep.subr.mxu0 0.0
        %1216 = vmatpush2.msra.mxu0 0.0
        %1217 = vmatprep.subr.mxu0 0.0
        %1218 = vmatpush2.msra.mxu0 0.0
        %1219 = vmatprep.subr.mxu0 0.0
        %1220 = vmatpush2.msra.mxu0 0.0
        %1221 = vmatprep.subr.mxu0 0.0
        %1222 = vmatpush2.msra.mxu0 0.0
        %1223 = vmatprep.subr.mxu0 0.0
        %1224 = vmatpush2.msra.mxu0 0.0
        %1225 = vmatprep.mubr.f32.mxu0 0.0
        %1226 = vmatmul.mubr.f32.gmra.mxu0 %v1155
        %v1227 = vpop.f32.mrf.mxu0
        %v1228 = vadd.f32 0.0, %v1227
        %v1229 = vpop.f32.mrf.mxu0
        %1230 = vdwg.mxu0
        %v1232 = vsel %vm1153, %v1152, 0
        %1234 = vmatprep.subr.mxu0 0.0
        %1235 = vmatpush1.msra.mxu0 0.0
        %1236 = vmatprep.subr.mxu0 0.0
        %1237 = vmatpush1.msra.mxu0 0.0
        %1238 = vmatprep.subr.mxu0 0.0
        %1239 = vmatpush1.msra.mxu0 0.0
        %1240 = vmatprep.subr.mxu0 0.0
        %1241 = vmatpush1.msra.mxu0 0.0
        %1242 = vmatprep.subr.mxu0 0.0
        %1243 = vmatpush1.msra.mxu0 0.0
        %1244 = vmatprep.subr.mxu0 0.0
        %1245 = vmatpush1.msra.mxu0 0.0
        %1246 = vmatprep.subr.mxu0 0.0
        %1247 = vmatpush1.msra.mxu0 0.0
        %1248 = vmatprep.subr.mxu0 0.0
        %1249 = vmatpush1.msra.mxu0 0.0
        %1250 = vmatprep.subr.mxu0 0.0
        %1251 = vmatpush1.msra.mxu0 0.0
        %1252 = vmatprep.subr.mxu0 0.0
        %1253 = vmatpush1.msra.mxu0 0.0
        %1254 = vmatprep.subr.mxu0 0.0
        %1255 = vmatpush1.msra.mxu0 0.0
        %1256 = vmatprep.subr.mxu0 0.0
        %1257 = vmatpush1.msra.mxu0 0.0
        %1258 = vmatprep.subr.mxu0 0.0
        %1259 = vmatpush1.msra.mxu0 0.0
        %1260 = vmatprep.subr.mxu0 0.0
        %1261 = vmatpush1.msra.mxu0 0.0
        %1262 = vmatprep.subr.mxu0 0.0
        %1263 = vmatpush1.msra.mxu0 0.0
        %1264 = vmatprep.subr.mxu0 0.0
        %1265 = vmatpush1.msra.mxu0 %v1159
        %1266 = vmatprep.subr.mxu0 0.0
        %1267 = vmatpush2.msra.mxu0 0.0
        %1268 = vmatprep.subr.mxu0 0.0
        %1269 = vmatpush2.msra.mxu0 0.0
        %1270 = vmatprep.subr.mxu0 0.0
        %1271 = vmatpush2.msra.mxu0 0.0
        %1272 = vmatprep.subr.mxu0 0.0
        %1273 = vmatpush2.msra.mxu0 0.0
        %1274 = vmatprep.subr.mxu0 0.0
        %1275 = vmatpush2.msra.mxu0 0.0
        %1276 = vmatprep.subr.mxu0 0.0
        %1277 = vmatpush2.msra.mxu0 0.0
        %1278 = vmatprep.subr.mxu0 0.0
        %1279 = vmatpush2.msra.mxu0 0.0
        %1280 = vmatprep.subr.mxu0 0.0
        %1281 = vmatpush2.msra.mxu0 0.0
        %1282 = vmatprep.subr.mxu0 0.0
        %1283 = vmatpush2.msra.mxu0 0.0
        %1284 = vmatprep.subr.mxu0 0.0
        %1285 = vmatpush2.msra.mxu0 0.0
        %1286 = vmatprep.subr.mxu0 0.0
        %1287 = vmatpush2.msra.mxu0 0.0
        %1288 = vmatprep.subr.mxu0 0.0
        %1289 = vmatpush2.msra.mxu0 0.0
        %1290 = vmatprep.subr.mxu0 0.0
        %1291 = vmatpush2.msra.mxu0 0.0
        %1292 = vmatprep.subr.mxu0 0.0
        %1293 = vmatpush2.msra.mxu0 0.0
        %1294 = vmatprep.subr.mxu0 0.0
        %1295 = vmatpush2.msra.mxu0 0.0
        %1296 = vmatprep.subr.mxu0 0.0
        %1297 = vmatpush2.msra.mxu0 0.0
        %1298 = vmatprep.mubr.f32.mxu0 0.0
        %1299 = vmatmul.mubr.f32.gmra.mxu0 %v1232
        %v1300 = vpop.f32.mrf.mxu0
        %v1301 = vadd.f32 0.0, %v1300
        %v1302 = vpop.f32.mrf.mxu0
        %1303 = vdwg.mxu0
        %v1304 = vld [vmem:[%s4] sm:$0x1]
        %v1306 = vlaneseq
        %v1307 = vshrl.u32 %v1306, 7
        %v1308 = vsub.s32 0, %v1307
        %v1309 = vrot.slane %v1304, %v1308
        %v1311 = vmul.f32 %v1301, %v1309
        %v1312 = vld [vmem:[%s5] sm:$0x1]
        %v1313 = vmul.f32 %v1228, %v1311
        %v1315 = vlaneseq
        %v1316 = vshrl.u32 %v1315, 7
        %v1317 = vsub.s32 0, %v1316
        %v1318 = vrot.slane %v1312, %v1317
        %v1320 = vsub.f32 %v1318, %v1313
        %vm1321 = vcmask 64512
        %v1323 = vsel %vm1321, %v809, 0
        %v1326 = vsel %vm1321, %v810, 0
        %v1329 = vsel %vm1321, %v811, 0
        %v1332 = vsel %vm1321, %v812, 0
        %v1335 = vsel %vm1321, %v813, 0
        %v1338 = vsel %vm1321, %v814, 0
        %v1341 = vsel %vm1321, %v815, 0
        %v1344 = vsel %vm1321, %v816, 0
        %v1347 = vsel %vm1321, %v817, 0
        %v1350 = vsel %vm1321, %v818, 0
        %v1353 = vsel %vm1321, %v819, 0
        %v1356 = vsel %vm1321, %v820, 0
        %v1359 = vsel %vm1321, %v821, 0
        %v1362 = vsel %vm1321, %v822, 0
        %v1365 = vsel %vm1321, %v823, 0
        %v1368 = vsel %vm1321, %v824, 0
        %1370 = vmatprep.subr.mxu0 0.0
        %1371 = vmatpush1.msra.mxu0 0.0
        %1372 = vmatprep.subr.mxu0 0.0
        %1373 = vmatpush1.msra.mxu0 0.0
        %1374 = vmatprep.subr.mxu0 0.0
        %1375 = vmatpush1.msra.mxu0 0.0
        %1376 = vmatprep.subr.mxu0 0.0
        %1377 = vmatpush1.msra.mxu0 0.0
        %1378 = vmatprep.subr.mxu0 0.0
        %1379 = vmatpush1.msra.mxu0 0.0
        %1380 = vmatprep.subr.mxu0 0.0
        %1381 = vmatpush1.msra.mxu0 0.0
        %1382 = vmatprep.subr.mxu0 0.0
        %1383 = vmatpush1.msra.mxu0 0.0
        %1384 = vmatprep.subr.mxu0 0.0
        %1385 = vmatpush1.msra.mxu0 0.0
        %1386 = vmatprep.subr.mxu0 0.0
        %1387 = vmatpush1.msra.mxu0 0.0
        %1388 = vmatprep.subr.mxu0 0.0
        %1389 = vmatpush1.msra.mxu0 0.0
        %1390 = vmatprep.subr.mxu0 0.0
        %1391 = vmatpush1.msra.mxu0 0.0
        %1392 = vmatprep.subr.mxu0 0.0
        %1393 = vmatpush1.msra.mxu0 0.0
        %1394 = vmatprep.subr.mxu0 0.0
        %1395 = vmatpush1.msra.mxu0 0.0
        %1396 = vmatprep.subr.mxu0 0.0
        %1397 = vmatpush1.msra.mxu0 0.0
        %1398 = vmatprep.subr.mxu0 0.0
        %1399 = vmatpush1.msra.mxu0 0.0
        %1400 = vmatprep.subr.mxu0 0.0
        %1401 = vmatpush1.msra.mxu0 %v1311
        %1402 = vmatprep.subr.mxu0 0.0
        %1403 = vmatpush2.msra.mxu0 0.0
        %1404 = vmatprep.subr.mxu0 0.0
        %1405 = vmatpush2.msra.mxu0 0.0
        %1406 = vmatprep.subr.mxu0 0.0
        %1407 = vmatpush2.msra.mxu0 0.0
        %1408 = vmatprep.subr.mxu0 0.0
        %1409 = vmatpush2.msra.mxu0 0.0
        %1410 = vmatprep.subr.mxu0 0.0
        %1411 = vmatpush2.msra.mxu0 0.0
        %1412 = vmatprep.subr.mxu0 0.0
        %1413 = vmatpush2.msra.mxu0 0.0
        %1414 = vmatprep.subr.mxu0 0.0
        %1415 = vmatpush2.msra.mxu0 0.0
        %1416 = vmatprep.subr.mxu0 0.0
        %1417 = vmatpush2.msra.mxu0 0.0
        %1418 = vmatprep.subr.mxu0 0.0
        %1419 = vmatpush2.msra.mxu0 0.0
        %1420 = vmatprep.subr.mxu0 0.0
        %1421 = vmatpush2.msra.mxu0 0.0
        %1422 = vmatprep.subr.mxu0 0.0
        %1423 = vmatpush2.msra.mxu0 0.0
        %1424 = vmatprep.subr.mxu0 0.0
        %1425 = vmatpush2.msra.mxu0 0.0
        %1426 = vmatprep.subr.mxu0 0.0
        %1427 = vmatpush2.msra.mxu0 0.0
        %1428 = vmatprep.subr.mxu0 0.0
        %1429 = vmatpush2.msra.mxu0 0.0
        %1430 = vmatprep.subr.mxu0 0.0
        %1431 = vmatpush2.msra.mxu0 0.0
        %1432 = vmatprep.subr.mxu0 0.0
        %1433 = vmatpush2.msra.mxu0 0.0
        %1434 = vmatprep.mubr.f32.mxu0 0.0
        %1435 = vmatmul.mubr.f32.gmra.mxu0 %v1323
        %v1436 = vpop.f32.mrf.mxu0
        %v1437 = vadd.f32 0.0, %v1436
        %v1438 = vpop.f32.mrf.mxu0
        %1439 = vmatprep.mubr.f32.mxu0 0.0
        %1440 = vmatmul.mubr.f32.gmra.mxu0 %v1326
        %v1441 = vpop.f32.mrf.mxu0
        %v1442 = vadd.f32 0.0, %v1441
        %v1443 = vpop.f32.mrf.mxu0
        %1444 = vmatprep.mubr.f32.mxu0 0.0
        %1445 = vmatmul.mubr.f32.gmra.mxu0 %v1329
        %v1446 = vpop.f32.mrf.mxu0
        %v1447 = vadd.f32 0.0, %v1446
        %v1448 = vpop.f32.mrf.mxu0
        %1449 = vmatprep.mubr.f32.mxu0 0.0
        %1450 = vmatmul.mubr.f32.gmra.mxu0 %v1332
        %v1451 = vpop.f32.mrf.mxu0
        %v1452 = vadd.f32 0.0, %v1451
        %v1453 = vpop.f32.mrf.mxu0
        %1454 = vmatprep.mubr.f32.mxu0 0.0
        %1455 = vmatmul.mubr.f32.gmra.mxu0 %v1335
        %v1456 = vpop.f32.mrf.mxu0
        %v1457 = vadd.f32 0.0, %v1456
        %v1458 = vpop.f32.mrf.mxu0
        %1459 = vmatprep.mubr.f32.mxu0 0.0
        %1460 = vmatmul.mubr.f32.gmra.mxu0 %v1338
        %v1461 = vpop.f32.mrf.mxu0
        %v1462 = vadd.f32 0.0, %v1461
        %v1463 = vpop.f32.mrf.mxu0
        %1464 = vmatprep.mubr.f32.mxu0 0.0
        %1465 = vmatmul.mubr.f32.gmra.mxu0 %v1341
        %v1466 = vpop.f32.mrf.mxu0
        %v1467 = vadd.f32 0.0, %v1466
        %v1468 = vpop.f32.mrf.mxu0
        %1469 = vmatprep.mubr.f32.mxu0 0.0
        %1470 = vmatmul.mubr.f32.gmra.mxu0 %v1344
        %v1471 = vpop.f32.mrf.mxu0
        %v1472 = vadd.f32 0.0, %v1471
        %v1473 = vpop.f32.mrf.mxu0
        %1474 = vmatprep.mubr.f32.mxu0 0.0
        %1475 = vmatmul.mubr.f32.gmra.mxu0 %v1347
        %v1476 = vpop.f32.mrf.mxu0
        %v1477 = vadd.f32 0.0, %v1476
        %v1478 = vpop.f32.mrf.mxu0
        %1479 = vmatprep.mubr.f32.mxu0 0.0
        %1480 = vmatmul.mubr.f32.gmra.mxu0 %v1350
        %v1481 = vpop.f32.mrf.mxu0
        %v1482 = vadd.f32 0.0, %v1481
        %v1483 = vpop.f32.mrf.mxu0
        %1484 = vmatprep.mubr.f32.mxu0 0.0
        %1485 = vmatmul.mubr.f32.gmra.mxu0 %v1353
        %v1486 = vpop.f32.mrf.mxu0
        %v1487 = vadd.f32 0.0, %v1486
        %v1488 = vpop.f32.mrf.mxu0
        %1489 = vmatprep.mubr.f32.mxu0 0.0
        %1490 = vmatmul.mubr.f32.gmra.mxu0 %v1356
        %v1491 = vpop.f32.mrf.mxu0
        %v1492 = vadd.f32 0.0, %v1491
        %v1493 = vpop.f32.mrf.mxu0
        %1494 = vmatprep.mubr.f32.mxu0 0.0
        %1495 = vmatmul.mubr.f32.gmra.mxu0 %v1359
        %v1496 = vpop.f32.mrf.mxu0
        %v1497 = vadd.f32 0.0, %v1496
        %v1498 = vpop.f32.mrf.mxu0
        %1499 = vmatprep.mubr.f32.mxu0 0.0
        %1500 = vmatmul.mubr.f32.gmra.mxu0 %v1362
        %v1501 = vpop.f32.mrf.mxu0
        %v1502 = vadd.f32 0.0, %v1501
        %v1503 = vpop.f32.mrf.mxu0
        %1504 = vmatprep.mubr.f32.mxu0 0.0
        %1505 = vmatmul.mubr.f32.gmra.mxu0 %v1365
        %v1506 = vpop.f32.mrf.mxu0
        %v1507 = vadd.f32 0.0, %v1506
        %v1508 = vpop.f32.mrf.mxu0
        %1509 = vmatprep.mubr.f32.mxu0 0.0
        %1510 = vmatmul.mubr.f32.gmra.mxu0 %v1368
        %v1511 = vpop.f32.mrf.mxu0
        %v1512 = vadd.f32 0.0, %v1511
        %v1513 = vpop.f32.mrf.mxu0
        %1514 = vdwg.mxu0
        %1515 = vmatprep.subr.mxu0 0.0
        %1516 = vmatpush1.msra.mxu0 0.0
        %1517 = vmatprep.subr.mxu0 0.0
        %1518 = vmatpush1.msra.mxu0 0.0
        %1519 = vmatprep.subr.mxu0 0.0
        %1520 = vmatpush1.msra.mxu0 0.0
        %1521 = vmatprep.subr.mxu0 0.0
        %1522 = vmatpush1.msra.mxu0 0.0
        %1523 = vmatprep.subr.mxu0 0.0
        %1524 = vmatpush1.msra.mxu0 0.0
        %1525 = vmatprep.subr.mxu0 0.0
        %1526 = vmatpush1.msra.mxu0 0.0
        %1527 = vmatprep.subr.mxu0 0.0
        %1528 = vmatpush1.msra.mxu0 0.0
        %1529 = vmatprep.subr.mxu0 0.0
        %1530 = vmatpush1.msra.mxu0 0.0
        %1531 = vmatprep.subr.mxu0 0.0
        %1532 = vmatpush1.msra.mxu0 0.0
        %1533 = vmatprep.subr.mxu0 0.0
        %1534 = vmatpush1.msra.mxu0 0.0
        %1535 = vmatprep.subr.mxu0 0.0
        %1536 = vmatpush1.msra.mxu0 0.0
        %1537 = vmatprep.subr.mxu0 0.0
        %1538 = vmatpush1.msra.mxu0 0.0
        %1539 = vmatprep.subr.mxu0 0.0
        %1540 = vmatpush1.msra.mxu0 0.0
        %1541 = vmatprep.subr.mxu0 0.0
        %1542 = vmatpush1.msra.mxu0 0.0
        %1543 = vmatprep.subr.mxu0 0.0
        %1544 = vmatpush1.msra.mxu0 0.0
        %1545 = vmatprep.subr.mxu0 0.0
        %1546 = vmatpush1.msra.mxu0 %v1320
        %1547 = vmatprep.subr.mxu0 0.0
        %1548 = vmatpush2.msra.mxu0 0.0
        %1549 = vmatprep.subr.mxu0 0.0
        %1550 = vmatpush2.msra.mxu0 0.0
        %1551 = vmatprep.subr.mxu0 0.0
        %1552 = vmatpush2.msra.mxu0 0.0
        %1553 = vmatprep.subr.mxu0 0.0
        %1554 = vmatpush2.msra.mxu0 0.0
        %1555 = vmatprep.subr.mxu0 0.0
        %1556 = vmatpush2.msra.mxu0 0.0
        %1557 = vmatprep.subr.mxu0 0.0
        %1558 = vmatpush2.msra.mxu0 0.0
        %1559 = vmatprep.subr.mxu0 0.0
        %1560 = vmatpush2.msra.mxu0 0.0
        %1561 = vmatprep.subr.mxu0 0.0
        %1562 = vmatpush2.msra.mxu0 0.0
        %1563 = vmatprep.subr.mxu0 0.0
        %1564 = vmatpush2.msra.mxu0 0.0
        %1565 = vmatprep.subr.mxu0 0.0
        %1566 = vmatpush2.msra.mxu0 0.0
        %1567 = vmatprep.subr.mxu0 0.0
        %1568 = vmatpush2.msra.mxu0 0.0
        %1569 = vmatprep.subr.mxu0 0.0
        %1570 = vmatpush2.msra.mxu0 0.0
        %1571 = vmatprep.subr.mxu0 0.0
        %1572 = vmatpush2.msra.mxu0 0.0
        %1573 = vmatprep.subr.mxu0 0.0
        %1574 = vmatpush2.msra.mxu0 0.0
        %1575 = vmatprep.subr.mxu0 0.0
        %1576 = vmatpush2.msra.mxu0 0.0
        %1577 = vmatprep.subr.mxu0 0.0
        %1578 = vmatpush2.msra.mxu0 0.0
        %1579 = vmatprep.mubr.f32.mxu0 0.0
        %1580 = vmatmul.mubr.f32.gmra.mxu0 %v1323
        %v1581 = vpop.f32.mrf.mxu0
        %v1582 = vadd.f32 0.0, %v1581
        %v1583 = vpop.f32.mrf.mxu0
        %1584 = vmatprep.mubr.f32.mxu0 0.0
        %1585 = vmatmul.mubr.f32.gmra.mxu0 %v1326
        %v1586 = vpop.f32.mrf.mxu0
        %v1587 = vadd.f32 0.0, %v1586
        %v1588 = vpop.f32.mrf.mxu0
        %1589 = vmatprep.mubr.f32.mxu0 0.0
        %1590 = vmatmul.mubr.f32.gmra.mxu0 %v1329
        %v1591 = vpop.f32.mrf.mxu0
        %v1592 = vadd.f32 0.0, %v1591
        %v1593 = vpop.f32.mrf.mxu0
        %1594 = vmatprep.mubr.f32.mxu0 0.0
        %1595 = vmatmul.mubr.f32.gmra.mxu0 %v1332
        %v1596 = vpop.f32.mrf.mxu0
        %v1597 = vadd.f32 0.0, %v1596
        %v1598 = vpop.f32.mrf.mxu0
        %1599 = vmatprep.mubr.f32.mxu0 0.0
        %1600 = vmatmul.mubr.f32.gmra.mxu0 %v1335
        %v1601 = vpop.f32.mrf.mxu0
        %v1602 = vadd.f32 0.0, %v1601
        %v1603 = vpop.f32.mrf.mxu0
        %1604 = vmatprep.mubr.f32.mxu0 0.0
        %1605 = vmatmul.mubr.f32.gmra.mxu0 %v1338
        %v1606 = vpop.f32.mrf.mxu0
        %v1607 = vadd.f32 0.0, %v1606
        %v1608 = vpop.f32.mrf.mxu0
        %1609 = vmatprep.mubr.f32.mxu0 0.0
        %1610 = vmatmul.mubr.f32.gmra.mxu0 %v1341
        %v1611 = vpop.f32.mrf.mxu0
        %v1612 = vadd.f32 0.0, %v1611
        %v1613 = vpop.f32.mrf.mxu0
        %1614 = vmatprep.mubr.f32.mxu0 0.0
        %1615 = vmatmul.mubr.f32.gmra.mxu0 %v1344
        %v1616 = vpop.f32.mrf.mxu0
        %v1617 = vadd.f32 0.0, %v1616
        %v1618 = vpop.f32.mrf.mxu0
        %1619 = vmatprep.mubr.f32.mxu0 0.0
        %1620 = vmatmul.mubr.f32.gmra.mxu0 %v1347
        %v1621 = vpop.f32.mrf.mxu0
        %v1622 = vadd.f32 0.0, %v1621
        %v1623 = vpop.f32.mrf.mxu0
        %1624 = vmatprep.mubr.f32.mxu0 0.0
        %1625 = vmatmul.mubr.f32.gmra.mxu0 %v1350
        %v1626 = vpop.f32.mrf.mxu0
        %v1627 = vadd.f32 0.0, %v1626
        %v1628 = vpop.f32.mrf.mxu0
        %1629 = vmatprep.mubr.f32.mxu0 0.0
        %1630 = vmatmul.mubr.f32.gmra.mxu0 %v1353
        %v1631 = vpop.f32.mrf.mxu0
        %v1632 = vadd.f32 0.0, %v1631
        %v1633 = vpop.f32.mrf.mxu0
        %1634 = vmatprep.mubr.f32.mxu0 0.0
        %1635 = vmatmul.mubr.f32.gmra.mxu0 %v1356
        %v1636 = vpop.f32.mrf.mxu0
        %v1637 = vadd.f32 0.0, %v1636
        %v1638 = vpop.f32.mrf.mxu0
        %1639 = vmatprep.mubr.f32.mxu0 0.0
        %1640 = vmatmul.mubr.f32.gmra.mxu0 %v1359
        %v1641 = vpop.f32.mrf.mxu0
        %v1642 = vadd.f32 0.0, %v1641
        %v1643 = vpop.f32.mrf.mxu0
        %1644 = vmatprep.mubr.f32.mxu0 0.0
        %1645 = vmatmul.mubr.f32.gmra.mxu0 %v1362
        %v1646 = vpop.f32.mrf.mxu0
        %v1647 = vadd.f32 0.0, %v1646
        %v1648 = vpop.f32.mrf.mxu0
        %1649 = vmatprep.mubr.f32.mxu0 0.0
        %1650 = vmatmul.mubr.f32.gmra.mxu0 %v1365
        %v1651 = vpop.f32.mrf.mxu0
        %v1652 = vadd.f32 0.0, %v1651
        %v1653 = vpop.f32.mrf.mxu0
        %1654 = vmatprep.mubr.f32.mxu0 0.0
        %1655 = vmatmul.mubr.f32.gmra.mxu0 %v1368
        %v1656 = vpop.f32.mrf.mxu0
        %v1657 = vadd.f32 0.0, %v1656
        %v1658 = vpop.f32.mrf.mxu0
        %1659 = vdwg.mxu0
        %v1660 = vmul.f32 %v653, %v1437
        %v1661 = vmul.f32 %v656, %v1442
        %v1662 = vmul.f32 %v661, %v1447
        %v1663 = vmul.f32 %v664, %v1452
        %v1664 = vmul.f32 %v669, %v1457
        %v1665 = vmul.f32 %v672, %v1462
        %v1666 = vmul.f32 %v677, %v1467
        %v1667 = vmul.f32 %v680, %v1472
        %v1668 = vmul.f32 %v685, %v1477
        %v1669 = vmul.f32 %v688, %v1482
        %v1670 = vmul.f32 %v693, %v1487
        %v1671 = vmul.f32 %v696, %v1492
        %v1672 = vmul.f32 %v701, %v1497
        %v1673 = vmul.f32 %v704, %v1502
        %v1674 = vmul.f32 %v709, %v1507
        %v1675 = vmul.f32 %v712, %v1512
        %v1676 = vadd.f32 %v1660, %v1582
        %v1677 = vadd.f32 %v1661, %v1587
        %v1678 = vadd.f32 %v1662, %v1592
        %v1679 = vadd.f32 %v1663, %v1597
        %v1680 = vadd.f32 %v1664, %v1602
        %v1681 = vadd.f32 %v1665, %v1607
        %v1682 = vadd.f32 %v1666, %v1612
        %v1683 = vadd.f32 %v1667, %v1617
        %v1684 = vadd.f32 %v1668, %v1622
        %v1685 = vadd.f32 %v1669, %v1627
        %v1686 = vadd.f32 %v1670, %v1632
        %v1687 = vadd.f32 %v1671, %v1637
        %v1688 = vadd.f32 %v1672, %v1642
        %v1689 = vadd.f32 %v1673, %v1647
        %v1690 = vadd.f32 %v1674, %v1652
        %v1691 = vadd.f32 %v1675, %v1657
        %v1692 = vld [vmem:[%s491] sm:$0xf]
        %v1693 = vld [vmem:[%s491 + $0x4] sm:$0xf]
        %v1694 = vld [vmem:[%s491 + $0x8] sm:$0xf]
        %v1695 = vld [vmem:[%s491 + $0xc] sm:$0xf]
        %v1696 = vld [vmem:[%s491 + $0x10] sm:$0xf]
        %v1697 = vld [vmem:[%s491 + $0x14] sm:$0xf]
        %v1698 = vld [vmem:[%s491 + $0x18] sm:$0xf]
        %v1699 = vld [vmem:[%s491 + $0x1c] sm:$0xf]
        %v1700 = vld [vmem:[%s6] sm:$0xf]
        %v1701 = vld [vmem:[%s6 + $0x4] sm:$0xf]
        %v1702 = vld [vmem:[%s7] sm:$0x1]
        %v1704 = vlaneseq
        %v1705 = vshrl.u32 %v1704, 7
        %v1706 = vsub.s32 0, %v1705
        %v1707 = vrot.slane %v1702, %v1706
        %v1717 = vunpack.c.l.b16 %v1692
        %v1718 = vunpack.c.l.b16 %v1693
        %v1719 = vunpack.c.l.b16 %v1694
        %v1720 = vunpack.c.l.b16 %v1695
        %v1721 = vunpack.c.l.b16 %v1696
        %v1722 = vunpack.c.l.b16 %v1697
        %v1723 = vunpack.c.l.b16 %v1698
        %v1724 = vunpack.c.l.b16 %v1699
        %v1725 = vpack.c.b16 %v1718, %v1717
        %v1726 = vpack.c.b16 %v1720, %v1719
        %v1727 = vpack.c.b16 %v1722, %v1721
        %v1728 = vpack.c.b16 %v1724, %v1723
        %v1731 = vunpack.c.l.b16 %v1700
        %v1732 = vunpack.c.l.b16 %v1701
        %v1733 = vpack.c.b16 %v1732, %v1731
        %v1736 = vsel %vm1000, %v1725, 0
        %v1739 = vsel %vm1000, %v1726, 0
        %v1742 = vsel %vm1000, %v1727, 0
        %v1745 = vsel %vm1000, %v1728, 0
        %1747 = vmatprep.subr.bf16.mxu0 0
        %1748 = vmatpush1.bf16.msra.mxu0 0
        %1749 = vmatprep.subr.bf16.mxu0 0
        %1750 = vmatpush1.bf16.msra.mxu0 0
        %1751 = vmatprep.subr.bf16.mxu0 0
        %1752 = vmatpush1.bf16.msra.mxu0 0
        %1753 = vmatprep.subr.bf16.mxu0 0
        %1754 = vmatpush1.bf16.msra.mxu0 0
        %1755 = vmatprep.subr.bf16.mxu0 0
        %1756 = vmatpush1.bf16.msra.mxu0 0
        %1757 = vmatprep.subr.bf16.mxu0 0
        %1758 = vmatpush1.bf16.msra.mxu0 0
        %1759 = vmatprep.subr.bf16.mxu0 0
        %1760 = vmatpush1.bf16.msra.mxu0 0
        %1761 = vmatprep.subr.bf16.mxu0 0
        %1762 = vmatpush1.bf16.msra.mxu0 %v1733
        %1763 = vmatprep.subr.bf16.mxu0 0
        %1764 = vmatpush2.bf16.msra.mxu0 0
        %1765 = vmatprep.subr.bf16.mxu0 0
        %1766 = vmatpush2.bf16.msra.mxu0 0
        %1767 = vmatprep.subr.bf16.mxu0 0
        %1768 = vmatpush2.bf16.msra.mxu0 0
        %1769 = vmatprep.subr.bf16.mxu0 0
        %1770 = vmatpush2.bf16.msra.mxu0 0
        %1771 = vmatprep.subr.bf16.mxu0 0
        %1772 = vmatpush2.bf16.msra.mxu0 0
        %1773 = vmatprep.subr.bf16.mxu0 0
        %1774 = vmatpush2.bf16.msra.mxu0 0
        %1775 = vmatprep.subr.bf16.mxu0 0
        %1776 = vmatpush2.bf16.msra.mxu0 0
        %1777 = vmatprep.subr.bf16.mxu0 0
        %1778 = vmatpush2.bf16.msra.mxu0 0
        %1779 = vmatprep.mubr.bf16.mxu0 0
        %1780 = vmatmul.mubr.bf16.gmra.mxu0 %v1736
        %v1781 = vpop.f32.mrf.mxu0
        %v1782 = vadd.f32 %v1707, %v1781
        %v1783 = vpop.f32.mrf.mxu0
        %v1784 = vpop.f32.mrf.mxu0
        %v1785 = vadd.f32 %v1707, %v1784
        %v1786 = vpop.f32.mrf.mxu0
        %1787 = vmatprep.mubr.bf16.mxu0 0
        %1788 = vmatmul.mubr.bf16.gmra.mxu0 %v1739
        %v1789 = vpop.f32.mrf.mxu0
        %v1790 = vadd.f32 %v1707, %v1789
        %v1791 = vpop.f32.mrf.mxu0
        %v1792 = vpop.f32.mrf.mxu0
        %v1793 = vadd.f32 %v1707, %v1792
        %v1794 = vpop.f32.mrf.mxu0
        %1795 = vmatprep.mubr.bf16.mxu0 0
        %1796 = vmatmul.mubr.bf16.gmra.mxu0 %v1742
        %v1797 = vpop.f32.mrf.mxu0
        %v1798 = vadd.f32 %v1707, %v1797
        %v1799 = vpop.f32.mrf.mxu0
        %v1800 = vpop.f32.mrf.mxu0
        %v1801 = vadd.f32 %v1707, %v1800
        %v1802 = vpop.f32.mrf.mxu0
        %1803 = vmatprep.mubr.bf16.mxu0 0
        %1804 = vmatmul.mubr.bf16.gmra.mxu0 %v1745
        %v1805 = vpop.f32.mrf.mxu0
        %v1806 = vadd.f32 %v1707, %v1805
        %v1807 = vpop.f32.mrf.mxu0
        %v1808 = vpop.f32.mrf.mxu0
        %v1809 = vadd.f32 %v1707, %v1808
        %v1810 = vpop.f32.mrf.mxu0
        %1811 = vdwg.mxu0
        %v1812 = vpack.c.bf16 %v1677, %v1676
        %v1813 = vpack.c.bf16 %v1679, %v1678
        %v1814 = vpack.c.bf16 %v1681, %v1680
        %v1815 = vpack.c.bf16 %v1683, %v1682
        %v1816 = vpack.c.bf16 %v1685, %v1684
        %v1817 = vpack.c.bf16 %v1687, %v1686
        %v1818 = vpack.c.bf16 %v1689, %v1688
        %v1819 = vpack.c.bf16 %v1691, %v1690
        %v1820 = vld [vmem:[%s8] sm:$0xf]
        %v1821 = vld [vmem:[%s8 + $0x4] sm:$0xf]
        %v1822 = vld [vmem:[%s9] sm:$0x1]
        %v1824 = vlaneseq
        %v1825 = vshrl.u32 %v1824, 7
        %v1826 = vsub.s32 0, %v1825
        %v1827 = vrot.slane %v1822, %v1826
        %v1831 = vunpack.c.l.b16 %v1820
        %v1832 = vunpack.c.l.b16 %v1821
        %v1833 = vpack.c.b16 %v1832, %v1831
        %v1836 = vsel %vm1000, %v1812, 0
        %v1839 = vsel %vm1000, %v1813, 0
        %v1842 = vsel %vm1000, %v1814, 0
        %v1845 = vsel %vm1000, %v1815, 0
        %v1848 = vsel %vm1000, %v1816, 0
        %v1851 = vsel %vm1000, %v1817, 0
        %v1854 = vsel %vm1000, %v1818, 0
        %v1857 = vsel %vm1000, %v1819, 0
        %1859 = vmatprep.subr.bf16.mxu0 0
        %1860 = vmatpush1.bf16.msra.mxu0 0
        %1861 = vmatprep.subr.bf16.mxu0 0
        %1862 = vmatpush1.bf16.msra.mxu0 0
        %1863 = vmatprep.subr.bf16.mxu0 0
        %1864 = vmatpush1.bf16.msra.mxu0 0
        %1865 = vmatprep.subr.bf16.mxu0 0
        %1866 = vmatpush1.bf16.msra.mxu0 0
        %1867 = vmatprep.subr.bf16.mxu0 0
        %1868 = vmatpush1.bf16.msra.mxu0 0
        %1869 = vmatprep.subr.bf16.mxu0 0
        %1870 = vmatpush1.bf16.msra.mxu0 0
        %1871 = vmatprep.subr.bf16.mxu0 0
        %1872 = vmatpush1.bf16.msra.mxu0 0
        %1873 = vmatprep.subr.bf16.mxu0 0
        %1874 = vmatpush1.bf16.msra.mxu0 %v1833
        %1875 = vmatprep.subr.bf16.mxu0 0
        %1876 = vmatpush2.bf16.msra.mxu0 0
        %1877 = vmatprep.subr.bf16.mxu0 0
        %1878 = vmatpush2.bf16.msra.mxu0 0
        %1879 = vmatprep.subr.bf16.mxu0 0
        %1880 = vmatpush2.bf16.msra.mxu0 0
        %1881 = vmatprep.subr.bf16.mxu0 0
        %1882 = vmatpush2.bf16.msra.mxu0 0
        %1883 = vmatprep.subr.bf16.mxu0 0
        %1884 = vmatpush2.bf16.msra.mxu0 0
        %1885 = vmatprep.subr.bf16.mxu0 0
        %1886 = vmatpush2.bf16.msra.mxu0 0
        %1887 = vmatprep.subr.bf16.mxu0 0
        %1888 = vmatpush2.bf16.msra.mxu0 0
        %1889 = vmatprep.subr.bf16.mxu0 0
        %1890 = vmatpush2.bf16.msra.mxu0 0
        %1891 = vmatprep.mubr.bf16.mxu0 0
        %1892 = vmatmul.mubr.bf16.gmra.mxu0 %v1836
        %v1893 = vpop.f32.mrf.mxu0
        %v1894 = vadd.f32 %v1827, %v1893
        %v1895 = vpop.f32.mrf.mxu0
        %v1896 = vpop.f32.mrf.mxu0
        %v1897 = vadd.f32 %v1827, %v1896
        %v1898 = vpop.f32.mrf.mxu0
        %1899 = vmatprep.mubr.bf16.mxu0 0
        %1900 = vmatmul.mubr.bf16.gmra.mxu0 %v1839
        %v1901 = vpop.f32.mrf.mxu0
        %v1902 = vadd.f32 %v1827, %v1901
        %v1903 = vpop.f32.mrf.mxu0
        %v1904 = vpop.f32.mrf.mxu0
        %v1905 = vadd.f32 %v1827, %v1904
        %v1906 = vpop.f32.mrf.mxu0
        %1907 = vmatprep.mubr.bf16.mxu0 0
        %1908 = vmatmul.mubr.bf16.gmra.mxu0 %v1842
        %v1909 = vpop.f32.mrf.mxu0
        %v1910 = vadd.f32 %v1827, %v1909
        %v1911 = vpop.f32.mrf.mxu0
        %v1912 = vpop.f32.mrf.mxu0
        %v1913 = vadd.f32 %v1827, %v1912
        %v1914 = vpop.f32.mrf.mxu0
        %1915 = vmatprep.mubr.bf16.mxu0 0
        %1916 = vmatmul.mubr.bf16.gmra.mxu0 %v1845
        %v1917 = vpop.f32.mrf.mxu0
        %v1918 = vadd.f32 %v1827, %v1917
        %v1919 = vpop.f32.mrf.mxu0
        %v1920 = vpop.f32.mrf.mxu0
        %v1921 = vadd.f32 %v1827, %v1920
        %v1922 = vpop.f32.mrf.mxu0
        %1923 = vmatprep.mubr.bf16.mxu0 0
        %1924 = vmatmul.mubr.bf16.gmra.mxu0 %v1848
        %v1925 = vpop.f32.mrf.mxu0
        %v1926 = vadd.f32 %v1827, %v1925
        %v1927 = vpop.f32.mrf.mxu0
        %v1928 = vpop.f32.mrf.mxu0
        %v1929 = vadd.f32 %v1827, %v1928
        %v1930 = vpop.f32.mrf.mxu0
        %1931 = vmatprep.mubr.bf16.mxu0 0
        %1932 = vmatmul.mubr.bf16.gmra.mxu0 %v1851
        %v1933 = vpop.f32.mrf.mxu0
        %v1934 = vadd.f32 %v1827, %v1933
        %v1935 = vpop.f32.mrf.mxu0
        %v1936 = vpop.f32.mrf.mxu0
        %v1937 = vadd.f32 %v1827, %v1936
        %v1938 = vpop.f32.mrf.mxu0
        %1939 = vmatprep.mubr.bf16.mxu0 0
        %1940 = vmatmul.mubr.bf16.gmra.mxu0 %v1854
        %v1941 = vpop.f32.mrf.mxu0
        %v1942 = vadd.f32 %v1827, %v1941
        %v1943 = vpop.f32.mrf.mxu0
        %v1944 = vpop.f32.mrf.mxu0
        %v1945 = vadd.f32 %v1827, %v1944
        %v1946 = vpop.f32.mrf.mxu0
        %1947 = vmatprep.mubr.bf16.mxu0 0
        %1948 = vmatmul.mubr.bf16.gmra.mxu0 %v1857
        %v1949 = vpop.f32.mrf.mxu0
        %v1950 = vadd.f32 %v1827, %v1949
        %v1951 = vpop.f32.mrf.mxu0
        %v1952 = vpop.f32.mrf.mxu0
        %v1953 = vadd.f32 %v1827, %v1952
        %v1954 = vpop.f32.mrf.mxu0
        %1955 = vdwg.mxu0
        %v1956 = vpack.c.bf16 %v1785, %v1782
        %v1957 = vpack.c.bf16 %v1793, %v1790
        %v1958 = vpack.c.bf16 %v1801, %v1798
        %v1959 = vpack.c.bf16 %v1809, %v1806
        %v1960 = vpack.c.bf16 %v1897, %v1894
        %v1961 = vpack.c.bf16 %v1905, %v1902
        %v1962 = vpack.c.bf16 %v1913, %v1910
        %v1963 = vpack.c.bf16 %v1921, %v1918
        %v1964 = vpack.c.bf16 %v1929, %v1926
        %v1965 = vpack.c.bf16 %v1937, %v1934
        %v1966 = vpack.c.bf16 %v1945, %v1942
        %v1967 = vpack.c.bf16 %v1953, %v1950
        %v1968 = vld [vmem:[%s12] sm:$0xf]
        %v1969 = vld [vmem:[%s12 + $0x4] sm:$0xf]
        %v1970 = vld [vmem:[%s12 + $0x8] sm:$0xf]
        %v1971 = vld [vmem:[%s12 + $0xc] sm:$0xf]
        %v1972 = vld [vmem:[%s12 + $0x10] sm:$0xf]
        %v1973 = vld [vmem:[%s12 + $0x14] sm:$0xf]
        %v1974 = vld [vmem:[%s12 + $0x18] sm:$0xf]
        %v1975 = vld [vmem:[%s12 + $0x1c] sm:$0xf]
        %v1976 = vunpack.c.l.bf16 %v1968
        %v1977 = vunpack.c.l.bf16 %v1969
        %v1978 = vunpack.c.l.bf16 %v1970
        %v1979 = vunpack.c.l.bf16 %v1971
        %v1980 = vunpack.c.l.bf16 %v1972
        %v1981 = vunpack.c.l.bf16 %v1973
        %v1982 = vunpack.c.l.bf16 %v1974
        %v1983 = vunpack.c.l.bf16 %v1975
        %v1985 = vsel %vm1321, %v1956, 0
        %v1988 = vsel %vm1321, %v1957, 0
        %v1991 = vsel %vm1321, %v1958, 0
        %v1994 = vsel %vm1321, %v1959, 0
        %v1997 = vsel %vm1321, %v1960, 0
        %v2000 = vsel %vm1321, %v1961, 0
        %v2003 = vsel %vm1321, %v1962, 0
        %v2006 = vsel %vm1321, %v1963, 0
        %v2009 = vsel %vm1321, %v1964, 0
        %v2012 = vsel %vm1321, %v1965, 0
        %v2015 = vsel %vm1321, %v1966, 0
        %v2018 = vsel %vm1321, %v1967, 0
        %2020 = vmatprep.subr.bf16.mxu0 0
        %2021 = vmatpush1.bf16.xpose.msra.mxu0 %v2018
        %2022 = vmatprep.subr.bf16.mxu0 0
        %2023 = vmatpush1.bf16.xpose.msra.mxu0 %v2015
        %2024 = vmatprep.subr.bf16.mxu0 0
        %2025 = vmatpush1.bf16.xpose.msra.mxu0 %v2012
        %2026 = vmatprep.subr.bf16.mxu0 0
        %2027 = vmatpush1.bf16.xpose.msra.mxu0 %v2009
        %2028 = vmatprep.subr.bf16.mxu0 0
        %2029 = vmatpush1.bf16.xpose.msra.mxu0 %v2006
        %2030 = vmatprep.subr.bf16.mxu0 0
        %2031 = vmatpush1.bf16.xpose.msra.mxu0 %v2003
        %2032 = vmatprep.subr.bf16.mxu0 0
        %2033 = vmatpush1.bf16.xpose.msra.mxu0 %v2000
        %2034 = vmatprep.subr.bf16.mxu0 0
        %2035 = vmatpush1.bf16.xpose.msra.mxu0 %v1997
        %2036 = vmatprep.subr.bf16.mxu0 0
        %2037 = vmatpush2.bf16.xpose.msra.mxu0 0
        %2038 = vmatprep.subr.bf16.mxu0 0
        %2039 = vmatpush2.bf16.xpose.msra.mxu0 0
        %2040 = vmatprep.subr.bf16.mxu0 0
        %2041 = vmatpush2.bf16.xpose.msra.mxu0 0
        %2042 = vmatprep.subr.bf16.mxu0 0
        %2043 = vmatpush2.bf16.xpose.msra.mxu0 0
        %2044 = vmatprep.subr.bf16.mxu0 0
        %2045 = vmatpush2.bf16.xpose.msra.mxu0 0
        %2046 = vmatprep.subr.bf16.mxu0 0
        %2047 = vmatpush2.bf16.xpose.msra.mxu0 0
        %2048 = vmatprep.subr.bf16.mxu0 0
        %2049 = vmatpush2.bf16.xpose.msra.mxu0 0
        %2050 = vmatprep.subr.bf16.mxu0 0
        %2051 = vmatpush2.bf16.xpose.msra.mxu0 0
        %2052 = vmatprep.mubr.bf16.mxu0 0
        %2053 = vmatmul.mubr.bf16.gmra.mxu0 %v1985
        %v2054 = vpop.f32.mrf.mxu0
        %v2055 = vadd.f32 %v1976, %v2054
        %v2056 = vpop.f32.mrf.mxu0
        %v2057 = vpop.f32.mrf.mxu0
        %v2058 = vadd.f32 %v1977, %v2057
        %v2059 = vpop.f32.mrf.mxu0
        %2060 = vmatprep.mubr.bf16.mxu0 0
        %2061 = vmatmul.mubr.bf16.gmra.mxu0 %v1988
        %v2062 = vpop.f32.mrf.mxu0
        %v2063 = vadd.f32 %v1978, %v2062
        %v2064 = vpop.f32.mrf.mxu0
        %v2065 = vpop.f32.mrf.mxu0
        %v2066 = vadd.f32 %v1979, %v2065
        %v2067 = vpop.f32.mrf.mxu0
        %2068 = vmatprep.mubr.bf16.mxu0 0
        %2069 = vmatmul.mubr.bf16.gmra.mxu0 %v1991
        %v2070 = vpop.f32.mrf.mxu0
        %v2071 = vadd.f32 %v1980, %v2070
        %v2072 = vpop.f32.mrf.mxu0
        %v2073 = vpop.f32.mrf.mxu0
        %v2074 = vadd.f32 %v1981, %v2073
        %v2075 = vpop.f32.mrf.mxu0
        %2076 = vmatprep.mubr.bf16.mxu0 0
        %2077 = vmatmul.mubr.bf16.gmra.mxu0 %v1994
        %v2078 = vpop.f32.mrf.mxu0
        %v2079 = vadd.f32 %v1982, %v2078
        %v2080 = vpop.f32.mrf.mxu0
        %v2081 = vpop.f32.mrf.mxu0
        %v2082 = vadd.f32 %v1983, %v2081
        %v2083 = vpop.f32.mrf.mxu0
        %2084 = vdwg.mxu0
        %2085 = vmax.xlane.f32.xlu0 %v2055
        %v2086 = vpop.xlane.xlu0 %2085
        %2087 = vmax.xlane.f32.xlu0 %v2058
        %v2088 = vpop.xlane.xlu0 %2087
        %2089 = vmax.xlane.f32.xlu0 %v2063
        %v2090 = vpop.xlane.xlu0 %2089
        %2091 = vmax.xlane.f32.xlu0 %v2066
        %v2092 = vpop.xlane.xlu0 %2091
        %2093 = vmax.xlane.f32.xlu0 %v2071
        %v2094 = vpop.xlane.xlu0 %2093
        %2095 = vmax.xlane.f32.xlu0 %v2074
        %v2096 = vpop.xlane.xlu0 %2095
        %2097 = vmax.xlane.f32.xlu0 %v2079
        %v2098 = vpop.xlane.xlu0 %2097
        %2099 = vmax.xlane.f32.xlu0 %v2082
        %v2100 = vpop.xlane.xlu0 %2099
        %v2101 = vsub.f32 %v2055, %v2086
        %v2102 = vsub.f32 %v2058, %v2088
        %v2103 = vsub.f32 %v2063, %v2090
        %v2104 = vsub.f32 %v2066, %v2092
        %v2105 = vsub.f32 %v2071, %v2094
        %v2106 = vsub.f32 %v2074, %v2096
        %v2107 = vsub.f32 %v2079, %v2098
        %v2108 = vsub.f32 %v2082, %v2100
        %v2109 = vmul.f32 %v2101, 1.442695
        %v2110 = vpow.pop %v2109
        %v2111 = vmul.f32 %v2102, 1.442695
        %v2112 = vpow.pop %v2111
        %v2113 = vmul.f32 %v2103, 1.442695
        %v2114 = vpow.pop %v2113
        %v2115 = vmul.f32 %v2104, 1.442695
        %v2116 = vpow.pop %v2115
        %v2117 = vmul.f32 %v2105, 1.442695
        %v2118 = vpow.pop %v2117
        %v2119 = vmul.f32 %v2106, 1.442695
        %v2120 = vpow.pop %v2119
        %v2121 = vmul.f32 %v2107, 1.442695
        %v2122 = vpow.pop %v2121
        %v2123 = vmul.f32 %v2108, 1.442695
        %v2124 = vpow.pop %v2123
        %2125 = vadd.xlane.f32.xlu0 %v2110
        %v2126 = vpop.xlane.xlu0 %2125
        %2127 = vadd.xlane.f32.xlu0 %v2112
        %v2128 = vpop.xlane.xlu0 %2127
        %2129 = vadd.xlane.f32.xlu0 %v2114
        %v2130 = vpop.xlane.xlu0 %2129
        %2131 = vadd.xlane.f32.xlu0 %v2116
        %v2132 = vpop.xlane.xlu0 %2131
        %2133 = vadd.xlane.f32.xlu0 %v2118
        %v2134 = vpop.xlane.xlu0 %2133
        %2135 = vadd.xlane.f32.xlu0 %v2120
        %v2136 = vpop.xlane.xlu0 %2135
        %2137 = vadd.xlane.f32.xlu0 %v2122
        %v2138 = vpop.xlane.xlu0 %2137
        %2139 = vadd.xlane.f32.xlu0 %v2124
        %v2140 = vpop.xlane.xlu0 %2139
        %v2141 = vrcp.pop %v2126
        %v2142 = vrcp.pop %v2128
        %v2143 = vrcp.pop %v2130
        %v2144 = vrcp.pop %v2132
        %v2145 = vrcp.pop %v2134
        %v2146 = vrcp.pop %v2136
        %v2147 = vrcp.pop %v2138
        %v2148 = vrcp.pop %v2140
        %v2149 = vmul.f32 %v2110, %v2141
        %v2150 = vmul.f32 %v2112, %v2142
        %v2151 = vmul.f32 %v2114, %v2143
        %v2152 = vmul.f32 %v2116, %v2144
        %v2153 = vmul.f32 %v2118, %v2145
        %v2154 = vmul.f32 %v2120, %v2146
        %v2155 = vmul.f32 %v2122, %v2147
        %v2156 = vmul.f32 %v2124, %v2148
        %2157 = vst [vmem:[%s486] sm:$0xff] %v2149
        %2158 = vst [vmem:[%s486 + $0x8] sm:$0xff] %v2150
        %2159 = vst [vmem:[%s486 + $0x10] sm:$0xff] %v2151
        %2160 = vst [vmem:[%s486 + $0x18] sm:$0xff] %v2152
        %2161 = vst [vmem:[%s486 + $0x20] sm:$0xff] %v2153
        %2162 = vst [vmem:[%s486 + $0x28] sm:$0xff] %v2154
        %2163 = vst [vmem:[%s486 + $0x30] sm:$0xff] %v2155
        %2164 = vst [vmem:[%s486 + $0x38] sm:$0xff] %v2156
        %v2165 = vpack.c.bf16 %v2150, %v2149
        %v2166 = vpack.c.bf16 %v2152, %v2151
        %v2167 = vpack.c.bf16 %v2154, %v2153
        %v2168 = vpack.c.bf16 %v2156, %v2155
        %2177 = vrot.lane.b32.xlu0 %v1960, 112
        %v2178 = vpop.permute.xlu0 %2177
        %2179 = vrot.lane.b32.xlu0 %v1961, 112
        %v2180 = vpop.permute.xlu0 %2179
        %2181 = vrot.lane.b32.xlu0 %v1962, 112
        %v2182 = vpop.permute.xlu0 %2181
        %2183 = vrot.lane.b32.xlu0 %v1963, 112
        %v2184 = vpop.permute.xlu0 %2183
        %2185 = vrot.lane.b32.xlu0 %v1964, 112
        %v2186 = vpop.permute.xlu0 %2185
        %2187 = vrot.lane.b32.xlu0 %v1965, 112
        %v2188 = vpop.permute.xlu0 %2187
        %2189 = vrot.lane.b32.xlu0 %v1966, 112
        %v2190 = vpop.permute.xlu0 %2189
        %2191 = vrot.lane.b32.xlu0 %v1967, 112
        %v2192 = vpop.permute.xlu0 %2191
        %2201 = vmatprep.subr.bf16.mxu0 0
        %2202 = vmatpush1.bf16.msra.mxu0 %v2192
        %2203 = vmatprep.subr.bf16.mxu0 0
        %2204 = vmatpush1.bf16.msra.mxu0 %v2190
        %2205 = vmatprep.subr.bf16.mxu0 0
        %2206 = vmatpush1.bf16.msra.mxu0 %v2188
        %2207 = vmatprep.subr.bf16.mxu0 0
        %2208 = vmatpush1.bf16.msra.mxu0 %v2186
        %2209 = vmatprep.subr.bf16.mxu0 0
        %2210 = vmatpush1.bf16.msra.mxu0 %v2184
        %2211 = vmatprep.subr.bf16.mxu0 0
        %2212 = vmatpush1.bf16.msra.mxu0 %v2182
        %2213 = vmatprep.subr.bf16.mxu0 0
        %2214 = vmatpush1.bf16.msra.mxu0 %v2180
        %2215 = vmatprep.subr.bf16.mxu0 0
        %2216 = vmatpush1.bf16.msra.mxu0 %v2178
        %2217 = vmatprep.subr.bf16.mxu0 0
        %2218 = vmatpush2.bf16.msra.mxu0 0
        %2219 = vmatprep.subr.bf16.mxu0 0
        %2220 = vmatpush2.bf16.msra.mxu0 0
        %2221 = vmatprep.subr.bf16.mxu0 0
        %2222 = vmatpush2.bf16.msra.mxu0 0
        %2223 = vmatprep.subr.bf16.mxu0 0
        %2224 = vmatpush2.bf16.msra.mxu0 0
        %2225 = vmatprep.subr.bf16.mxu0 0
        %2226 = vmatpush2.bf16.msra.mxu0 0
        %2227 = vmatprep.subr.bf16.mxu0 0
        %2228 = vmatpush2.bf16.msra.mxu0 0
        %2229 = vmatprep.subr.bf16.mxu0 0
        %2230 = vmatpush2.bf16.msra.mxu0 0
        %2231 = vmatprep.subr.bf16.mxu0 0
        %2232 = vmatpush2.bf16.msra.mxu0 0
        %2233 = vmatprep.mubr.bf16.mxu0 0
        %2234 = vmatmul.mubr.bf16.gmra.mxu0 %v2165
        %v2235 = vpop.f32.mrf.mxu0
        %v2236 = vadd.f32 0.0, %v2235
        %v2237 = vpop.f32.mrf.mxu0
        %v2238 = vpop.f32.mrf.mxu0
        %v2239 = vadd.f32 0.0, %v2238
        %v2240 = vpop.f32.mrf.mxu0
        %2241 = vmatprep.mubr.bf16.mxu0 0
        %2242 = vmatmul.mubr.bf16.gmra.mxu0 %v2166
        %v2243 = vpop.f32.mrf.mxu0
        %v2244 = vadd.f32 0.0, %v2243
        %v2245 = vpop.f32.mrf.mxu0
        %v2246 = vpop.f32.mrf.mxu0
        %v2247 = vadd.f32 0.0, %v2246
        %v2248 = vpop.f32.mrf.mxu0
        %2249 = vmatprep.mubr.bf16.mxu0 0
        %2250 = vmatmul.mubr.bf16.gmra.mxu0 %v2167
        %v2251 = vpop.f32.mrf.mxu0
        %v2252 = vadd.f32 0.0, %v2251
        %v2253 = vpop.f32.mrf.mxu0
        %v2254 = vpop.f32.mrf.mxu0
        %v2255 = vadd.f32 0.0, %v2254
        %v2256 = vpop.f32.mrf.mxu0
        %2257 = vmatprep.mubr.bf16.mxu0 0
        %2258 = vmatmul.mubr.bf16.gmra.mxu0 %v2168
        %v2259 = vpop.f32.mrf.mxu0
        %v2260 = vadd.f32 0.0, %v2259
        %v2261 = vpop.f32.mrf.mxu0
        %v2262 = vpop.f32.mrf.mxu0
        %v2263 = vadd.f32 0.0, %v2262
        %v2264 = vpop.f32.mrf.mxu0
        %2265 = vdwg.mxu0
        %v2266 = vpack.c.bf16 %v2239, %v2236
        %v2267 = vpack.c.bf16 %v2247, %v2244
        %v2268 = vpack.c.bf16 %v2255, %v2252
        %v2269 = vpack.c.bf16 %v2263, %v2260
        %v2270 = vld [vmem:[%s10] sm:$0xf]
        %s2271 = scalar_lea.vmem %s12, 32
        %v2272 = vld [vmem:[%s2271] sm:$0xf]
        %v2273 = vld [vmem:[%s2271 + $0x4] sm:$0xf]
        %v2274 = vld [vmem:[%s2271 + $0x8] sm:$0xf]
        %v2275 = vld [vmem:[%s2271 + $0xc] sm:$0xf]
        %v2276 = vld [vmem:[%s2271 + $0x10] sm:$0xf]
        %v2277 = vld [vmem:[%s2271 + $0x14] sm:$0xf]
        %v2278 = vld [vmem:[%s2271 + $0x18] sm:$0xf]
        %v2279 = vld [vmem:[%s2271 + $0x1c] sm:$0xf]
        %v2280 = vunpack.c.l.bf16 %v2272
        %v2281 = vunpack.c.l.bf16 %v2273
        %v2282 = vunpack.c.l.bf16 %v2274
        %v2283 = vunpack.c.l.bf16 %v2275
        %v2284 = vunpack.c.l.bf16 %v2276
        %v2285 = vunpack.c.l.bf16 %v2277
        %v2286 = vunpack.c.l.bf16 %v2278
        %v2287 = vunpack.c.l.bf16 %v2279
        %2292 = vrot.lane.b32.xlu0 %v1956, 120
        %v2293 = vpop.permute.xlu0 %2292
        %2294 = vrot.lane.b32.xlu0 %v1957, 120
        %v2295 = vpop.permute.xlu0 %2294
        %2296 = vrot.lane.b32.xlu0 %v1958, 120
        %v2297 = vpop.permute.xlu0 %2296
        %2298 = vrot.lane.b32.xlu0 %v1959, 120
        %v2299 = vpop.permute.xlu0 %2298
        %2300 = vrot.lane.b32.xlu0 %v1960, 120
        %v2301 = vpop.permute.xlu0 %2300
        %2302 = vrot.lane.b32.xlu0 %v1961, 120
        %v2303 = vpop.permute.xlu0 %2302
        %2304 = vrot.lane.b32.xlu0 %v1962, 120
        %v2305 = vpop.permute.xlu0 %2304
        %2306 = vrot.lane.b32.xlu0 %v1963, 120
        %v2307 = vpop.permute.xlu0 %2306
        %2308 = vrot.lane.b32.xlu0 %v1964, 120
        %v2309 = vpop.permute.xlu0 %2308
        %2310 = vrot.lane.b32.xlu0 %v1965, 120
        %v2311 = vpop.permute.xlu0 %2310
        %2312 = vrot.lane.b32.xlu0 %v1966, 120
        %v2313 = vpop.permute.xlu0 %2312
        %2314 = vrot.lane.b32.xlu0 %v1967, 120
        %v2315 = vpop.permute.xlu0 %2314
        %v2317 = vsel %vm1321, %v2293, 0
        %v2320 = vsel %vm1321, %v2295, 0
        %v2323 = vsel %vm1321, %v2297, 0
        %v2326 = vsel %vm1321, %v2299, 0
        %v2329 = vsel %vm1321, %v2301, 0
        %v2332 = vsel %vm1321, %v2303, 0
        %v2335 = vsel %vm1321, %v2305, 0
        %v2338 = vsel %vm1321, %v2307, 0
        %v2341 = vsel %vm1321, %v2309, 0
        %v2344 = vsel %vm1321, %v2311, 0
        %v2347 = vsel %vm1321, %v2313, 0
        %v2350 = vsel %vm1321, %v2315, 0
        %2352 = vmatprep.subr.bf16.mxu0 0
        %2353 = vmatpush1.bf16.xpose.msra.mxu0 %v2350
        %2354 = vmatprep.subr.bf16.mxu0 0
        %2355 = vmatpush1.bf16.xpose.msra.mxu0 %v2347
        %2356 = vmatprep.subr.bf16.mxu0 0
        %2357 = vmatpush1.bf16.xpose.msra.mxu0 %v2344
        %2358 = vmatprep.subr.bf16.mxu0 0
        %2359 = vmatpush1.bf16.xpose.msra.mxu0 %v2341
        %2360 = vmatprep.subr.bf16.mxu0 0
        %2361 = vmatpush1.bf16.xpose.msra.mxu0 %v2338
        %2362 = vmatprep.subr.bf16.mxu0 0
        %2363 = vmatpush1.bf16.xpose.msra.mxu0 %v2335
        %2364 = vmatprep.subr.bf16.mxu0 0
        %2365 = vmatpush1.bf16.xpose.msra.mxu0 %v2332
        %2366 = vmatprep.subr.bf16.mxu0 0
        %2367 = vmatpush1.bf16.xpose.msra.mxu0 %v2329
        %2368 = vmatprep.subr.bf16.mxu0 0
        %2369 = vmatpush2.bf16.xpose.msra.mxu0 0
        %2370 = vmatprep.subr.bf16.mxu0 0
        %2371 = vmatpush2.bf16.xpose.msra.mxu0 0
        %2372 = vmatprep.subr.bf16.mxu0 0
        %2373 = vmatpush2.bf16.xpose.msra.mxu0 0
        %2374 = vmatprep.subr.bf16.mxu0 0
        %2375 = vmatpush2.bf16.xpose.msra.mxu0 0
        %2376 = vmatprep.subr.bf16.mxu0 0
        %2377 = vmatpush2.bf16.xpose.msra.mxu0 0
        %2378 = vmatprep.subr.bf16.mxu0 0
        %2379 = vmatpush2.bf16.xpose.msra.mxu0 0
        %2380 = vmatprep.subr.bf16.mxu0 0
        %2381 = vmatpush2.bf16.xpose.msra.mxu0 0
        %2382 = vmatprep.subr.bf16.mxu0 0
        %2383 = vmatpush2.bf16.xpose.msra.mxu0 0
        %2384 = vmatprep.mubr.bf16.mxu0 0
        %2385 = vmatmul.mubr.bf16.gmra.mxu0 %v2317
        %v2386 = vpop.f32.mrf.mxu0
        %v2387 = vadd.f32 %v2280, %v2386
        %v2388 = vpop.f32.mrf.mxu0
        %v2389 = vpop.f32.mrf.mxu0
        %v2390 = vadd.f32 %v2281, %v2389
        %v2391 = vpop.f32.mrf.mxu0
        %2392 = vmatprep.mubr.bf16.mxu0 0
        %2393 = vmatmul.mubr.bf16.gmra.mxu0 %v2320
        %v2394 = vpop.f32.mrf.mxu0
        %v2395 = vadd.f32 %v2282, %v2394
        %v2396 = vpop.f32.mrf.mxu0
        %v2397 = vpop.f32.mrf.mxu0
        %v2398 = vadd.f32 %v2283, %v2397
        %v2399 = vpop.f32.mrf.mxu0
        %2400 = vmatprep.mubr.bf16.mxu0 0
        %2401 = vmatmul.mubr.bf16.gmra.mxu0 %v2323
        %v2402 = vpop.f32.mrf.mxu0
        %v2403 = vadd.f32 %v2284, %v2402
        %v2404 = vpop.f32.mrf.mxu0
        %v2405 = vpop.f32.mrf.mxu0
        %v2406 = vadd.f32 %v2285, %v2405
        %v2407 = vpop.f32.mrf.mxu0
        %2408 = vmatprep.mubr.bf16.mxu0 0
        %2409 = vmatmul.mubr.bf16.gmra.mxu0 %v2326
        %v2410 = vpop.f32.mrf.mxu0
        %v2411 = vadd.f32 %v2286, %v2410
        %v2412 = vpop.f32.mrf.mxu0
        %v2413 = vpop.f32.mrf.mxu0
        %v2414 = vadd.f32 %v2287, %v2413
        %v2415 = vpop.f32.mrf.mxu0
        %2416 = vdwg.mxu0
        %2417 = vmax.xlane.f32.xlu0 %v2387
        %v2418 = vpop.xlane.xlu0 %2417
        %2419 = vmax.xlane.f32.xlu0 %v2390
        %v2420 = vpop.xlane.xlu0 %2419
        %2421 = vmax.xlane.f32.xlu0 %v2395
        %v2422 = vpop.xlane.xlu0 %2421
        %2423 = vmax.xlane.f32.xlu0 %v2398
        %v2424 = vpop.xlane.xlu0 %2423
        %2425 = vmax.xlane.f32.xlu0 %v2403
        %v2426 = vpop.xlane.xlu0 %2425
        %2427 = vmax.xlane.f32.xlu0 %v2406
        %v2428 = vpop.xlane.xlu0 %2427
        %2429 = vmax.xlane.f32.xlu0 %v2411
        %v2430 = vpop.xlane.xlu0 %2429
        %2431 = vmax.xlane.f32.xlu0 %v2414
        %v2432 = vpop.xlane.xlu0 %2431
        %v2433 = vsub.f32 %v2387, %v2418
        %v2434 = vsub.f32 %v2390, %v2420
        %v2435 = vsub.f32 %v2395, %v2422
        %v2436 = vsub.f32 %v2398, %v2424
        %v2437 = vsub.f32 %v2403, %v2426
        %v2438 = vsub.f32 %v2406, %v2428
        %v2439 = vsub.f32 %v2411, %v2430
        %v2440 = vsub.f32 %v2414, %v2432
        %v2441 = vmul.f32 %v2433, 1.442695
        %v2442 = vpow.pop %v2441
        %v2443 = vmul.f32 %v2434, 1.442695
        %v2444 = vpow.pop %v2443
        %v2445 = vmul.f32 %v2435, 1.442695
        %v2446 = vpow.pop %v2445
        %v2447 = vmul.f32 %v2436, 1.442695
        %v2448 = vpow.pop %v2447
        %v2449 = vmul.f32 %v2437, 1.442695
        %v2450 = vpow.pop %v2449
        %v2451 = vmul.f32 %v2438, 1.442695
        %v2452 = vpow.pop %v2451
        %v2453 = vmul.f32 %v2439, 1.442695
        %v2454 = vpow.pop %v2453
        %v2455 = vmul.f32 %v2440, 1.442695
        %v2456 = vpow.pop %v2455
        %2457 = vadd.xlane.f32.xlu0 %v2442
        %v2458 = vpop.xlane.xlu0 %2457
        %2459 = vadd.xlane.f32.xlu0 %v2444
        %v2460 = vpop.xlane.xlu0 %2459
        %2461 = vadd.xlane.f32.xlu0 %v2446
        %v2462 = vpop.xlane.xlu0 %2461
        %2463 = vadd.xlane.f32.xlu0 %v2448
        %v2464 = vpop.xlane.xlu0 %2463
        %2465 = vadd.xlane.f32.xlu0 %v2450
        %v2466 = vpop.xlane.xlu0 %2465
        %2467 = vadd.xlane.f32.xlu0 %v2452
        %v2468 = vpop.xlane.xlu0 %2467
        %2469 = vadd.xlane.f32.xlu0 %v2454
        %v2470 = vpop.xlane.xlu0 %2469
        %2471 = vadd.xlane.f32.xlu0 %v2456
        %v2472 = vpop.xlane.xlu0 %2471
        %v2473 = vrcp.pop %v2458
        %v2474 = vrcp.pop %v2460
        %v2475 = vrcp.pop %v2462
        %v2476 = vrcp.pop %v2464
        %v2477 = vrcp.pop %v2466
        %v2478 = vrcp.pop %v2468
        %v2479 = vrcp.pop %v2470
        %v2480 = vrcp.pop %v2472
        %v2481 = vmul.f32 %v2442, %v2473
        %v2482 = vmul.f32 %v2444, %v2474
        %v2483 = vmul.f32 %v2446, %v2475
        %v2484 = vmul.f32 %v2448, %v2476
        %v2485 = vmul.f32 %v2450, %v2477
        %v2486 = vmul.f32 %v2452, %v2478
        %v2487 = vmul.f32 %v2454, %v2479
        %v2488 = vmul.f32 %v2456, %v2480
        %s2489 = scalar_lea.vmem %s486, 64 [#allocation4]
        %2490 = vst [vmem:[%s2489] sm:$0xff] %v2481
        %2491 = vst [vmem:[%s2489 + $0x8] sm:$0xff] %v2482
        %2492 = vst [vmem:[%s2489 + $0x10] sm:$0xff] %v2483
        %2493 = vst [vmem:[%s2489 + $0x18] sm:$0xff] %v2484
        %2494 = vst [vmem:[%s2489 + $0x20] sm:$0xff] %v2485
        %2495 = vst [vmem:[%s2489 + $0x28] sm:$0xff] %v2486
        %2496 = vst [vmem:[%s2489 + $0x30] sm:$0xff] %v2487
        %2497 = vst [vmem:[%s2489 + $0x38] sm:$0xff] %v2488
        %v2498 = vpack.c.bf16 %v2482, %v2481
        %v2499 = vpack.c.bf16 %v2484, %v2483
        %v2500 = vpack.c.bf16 %v2486, %v2485
        %v2501 = vpack.c.bf16 %v2488, %v2487
        %2502 = vrot.lane.b32.xlu0 %v1960, 104
        %v2503 = vpop.permute.xlu0 %2502
        %2504 = vrot.lane.b32.xlu0 %v1961, 104
        %v2505 = vpop.permute.xlu0 %2504
        %2506 = vrot.lane.b32.xlu0 %v1962, 104
        %v2507 = vpop.permute.xlu0 %2506
        %2508 = vrot.lane.b32.xlu0 %v1963, 104
        %v2509 = vpop.permute.xlu0 %2508
        %2510 = vrot.lane.b32.xlu0 %v1964, 104
        %v2511 = vpop.permute.xlu0 %2510
        %2512 = vrot.lane.b32.xlu0 %v1965, 104
        %v2513 = vpop.permute.xlu0 %2512
        %2514 = vrot.lane.b32.xlu0 %v1966, 104
        %v2515 = vpop.permute.xlu0 %2514
        %2516 = vrot.lane.b32.xlu0 %v1967, 104
        %v2517 = vpop.permute.xlu0 %2516
        %2526 = vmatprep.subr.bf16.mxu0 0
        %2527 = vmatpush1.bf16.msra.mxu0 %v2517
        %2528 = vmatprep.subr.bf16.mxu0 0
        %2529 = vmatpush1.bf16.msra.mxu0 %v2515
        %2530 = vmatprep.subr.bf16.mxu0 0
        %2531 = vmatpush1.bf16.msra.mxu0 %v2513
        %2532 = vmatprep.subr.bf16.mxu0 0
        %2533 = vmatpush1.bf16.msra.mxu0 %v2511
        %2534 = vmatprep.subr.bf16.mxu0 0
        %2535 = vmatpush1.bf16.msra.mxu0 %v2509
        %2536 = vmatprep.subr.bf16.mxu0 0
        %2537 = vmatpush1.bf16.msra.mxu0 %v2507
        %2538 = vmatprep.subr.bf16.mxu0 0
        %2539 = vmatpush1.bf16.msra.mxu0 %v2505
        %2540 = vmatprep.subr.bf16.mxu0 0
        %2541 = vmatpush1.bf16.msra.mxu0 %v2503
        %2542 = vmatprep.subr.bf16.mxu0 0
        %2543 = vmatpush2.bf16.msra.mxu0 0
        %2544 = vmatprep.subr.bf16.mxu0 0
        %2545 = vmatpush2.bf16.msra.mxu0 0
        %2546 = vmatprep.subr.bf16.mxu0 0
        %2547 = vmatpush2.bf16.msra.mxu0 0
        %2548 = vmatprep.subr.bf16.mxu0 0
        %2549 = vmatpush2.bf16.msra.mxu0 0
        %2550 = vmatprep.subr.bf16.mxu0 0
        %2551 = vmatpush2.bf16.msra.mxu0 0
        %2552 = vmatprep.subr.bf16.mxu0 0
        %2553 = vmatpush2.bf16.msra.mxu0 0
        %2554 = vmatprep.subr.bf16.mxu0 0
        %2555 = vmatpush2.bf16.msra.mxu0 0
        %2556 = vmatprep.subr.bf16.mxu0 0
        %2557 = vmatpush2.bf16.msra.mxu0 0
        %2558 = vmatprep.mubr.bf16.mxu0 0
        %2559 = vmatmul.mubr.bf16.gmra.mxu0 %v2498
        %v2560 = vpop.f32.mrf.mxu0
        %v2561 = vadd.f32 0.0, %v2560
        %v2562 = vpop.f32.mrf.mxu0
        %v2563 = vpop.f32.mrf.mxu0
        %v2564 = vadd.f32 0.0, %v2563
        %v2565 = vpop.f32.mrf.mxu0
        %2566 = vmatprep.mubr.bf16.mxu0 0
        %2567 = vmatmul.mubr.bf16.gmra.mxu0 %v2499
        %v2568 = vpop.f32.mrf.mxu0
        %v2569 = vadd.f32 0.0, %v2568
        %v2570 = vpop.f32.mrf.mxu0
        %v2571 = vpop.f32.mrf.mxu0
        %v2572 = vadd.f32 0.0, %v2571
        %v2573 = vpop.f32.mrf.mxu0
        %2574 = vmatprep.mubr.bf16.mxu0 0
        %2575 = vmatmul.mubr.bf16.gmra.mxu0 %v2500
        %v2576 = vpop.f32.mrf.mxu0
        %v2577 = vadd.f32 0.0, %v2576
        %v2578 = vpop.f32.mrf.mxu0
        %v2579 = vpop.f32.mrf.mxu0
        %v2580 = vadd.f32 0.0, %v2579
        %v2581 = vpop.f32.mrf.mxu0
        %2582 = vmatprep.mubr.bf16.mxu0 0
        %2583 = vmatmul.mubr.bf16.gmra.mxu0 %v2501
        %v2584 = vpop.f32.mrf.mxu0
        %v2585 = vadd.f32 0.0, %v2584
        %v2586 = vpop.f32.mrf.mxu0
        %v2587 = vpop.f32.mrf.mxu0
        %v2588 = vadd.f32 0.0, %v2587
        %v2589 = vpop.f32.mrf.mxu0
        %2590 = vdwg.mxu0
        %v2591 = vpack.c.bf16 %v2564, %v2561
        %v2592 = vpack.c.bf16 %v2572, %v2569
        %v2593 = vpack.c.bf16 %v2580, %v2577
        %v2594 = vpack.c.bf16 %v2588, %v2585
        %v2595 = vld [vmem:[%s10 + $0x4] sm:$0xf]
        %v2597 = vsel %vm1321, %v2591, 0
        %v2600 = vsel %vm1321, %v2592, 0
        %v2603 = vsel %vm1321, %v2593, 0
        %v2606 = vsel %vm1321, %v2594, 0
        %vm2608 = vcmask 1043456
        %v2610 = vsel %vm2608, %v2595, 0
        %2612 = vmatprep.subr.bf16.mxu0 0
        %2613 = vmatpush1.bf16.msra.mxu0 0
        %2614 = vmatprep.subr.bf16.mxu0 0
        %2615 = vmatpush1.bf16.msra.mxu0 0
        %2616 = vmatprep.subr.bf16.mxu0 0
        %2617 = vmatpush1.bf16.msra.mxu0 0
        %2618 = vmatprep.subr.bf16.mxu0 0
        %2619 = vmatpush1.bf16.msra.mxu0 0
        %2620 = vmatprep.subr.bf16.mxu0 0
        %2621 = vmatpush1.bf16.msra.mxu0 0
        %2622 = vmatprep.subr.bf16.mxu0 0
        %2623 = vmatpush1.bf16.msra.mxu0 0
        %2624 = vmatprep.subr.bf16.mxu0 0
        %2625 = vmatpush1.bf16.msra.mxu0 0
        %2626 = vmatprep.subr.bf16.mxu0 0
        %2627 = vmatpush1.bf16.msra.mxu0 %v2610
        %2628 = vmatprep.subr.bf16.mxu0 0
        %2629 = vmatpush2.bf16.msra.mxu0 0
        %2630 = vmatprep.subr.bf16.mxu0 0
        %2631 = vmatpush2.bf16.msra.mxu0 0
        %2632 = vmatprep.subr.bf16.mxu0 0
        %2633 = vmatpush2.bf16.msra.mxu0 0
        %2634 = vmatprep.subr.bf16.mxu0 0
        %2635 = vmatpush2.bf16.msra.mxu0 0
        %2636 = vmatprep.subr.bf16.mxu0 0
        %2637 = vmatpush2.bf16.msra.mxu0 0
        %2638 = vmatprep.subr.bf16.mxu0 0
        %2639 = vmatpush2.bf16.msra.mxu0 0
        %2640 = vmatprep.subr.bf16.mxu0 0
        %2641 = vmatpush2.bf16.msra.mxu0 0
        %2642 = vmatprep.subr.bf16.mxu0 0
        %2643 = vmatpush2.bf16.msra.mxu0 0
        %2644 = vmatprep.mubr.bf16.mxu0 0
        %2645 = vmatmul.mubr.bf16.gmra.mxu0 %v2597
        %v2646 = vpop.f32.mrf.mxu0
        %v2647 = vadd.f32 0.0, %v2646
        %v2648 = vpop.f32.mrf.mxu0
        %v2649 = vpop.f32.mrf.mxu0
        %v2650 = vadd.f32 0.0, %v2649
        %v2651 = vpop.f32.mrf.mxu0
        %2652 = vmatprep.mubr.bf16.mxu0 0
        %2653 = vmatmul.mubr.bf16.gmra.mxu0 %v2600
        %v2654 = vpop.f32.mrf.mxu0
        %v2655 = vadd.f32 0.0, %v2654
        %v2656 = vpop.f32.mrf.mxu0
        %v2657 = vpop.f32.mrf.mxu0
        %v2658 = vadd.f32 0.0, %v2657
        %v2659 = vpop.f32.mrf.mxu0
        %2660 = vmatprep.mubr.bf16.mxu0 0
        %2661 = vmatmul.mubr.bf16.gmra.mxu0 %v2603
        %v2662 = vpop.f32.mrf.mxu0
        %v2663 = vadd.f32 0.0, %v2662
        %v2664 = vpop.f32.mrf.mxu0
        %v2665 = vpop.f32.mrf.mxu0
        %v2666 = vadd.f32 0.0, %v2665
        %v2667 = vpop.f32.mrf.mxu0
        %2668 = vmatprep.mubr.bf16.mxu0 0
        %2669 = vmatmul.mubr.bf16.gmra.mxu0 %v2606
        %v2670 = vpop.f32.mrf.mxu0
        %v2671 = vadd.f32 0.0, %v2670
        %v2672 = vpop.f32.mrf.mxu0
        %v2673 = vpop.f32.mrf.mxu0
        %v2674 = vadd.f32 0.0, %v2673
        %v2675 = vpop.f32.mrf.mxu0
        %2676 = vdwg.mxu0
        %v2678 = vsel %vm1321, %v2266, 0
        %v2681 = vsel %vm1321, %v2267, 0
        %v2684 = vsel %vm1321, %v2268, 0
        %v2687 = vsel %vm1321, %v2269, 0
        %v2690 = vsel %vm2608, %v2270, 0
        %2692 = vmatprep.subr.bf16.mxu0 0
        %2693 = vmatpush1.bf16.msra.mxu0 0
        %2694 = vmatprep.subr.bf16.mxu0 0
        %2695 = vmatpush1.bf16.msra.mxu0 0
        %2696 = vmatprep.subr.bf16.mxu0 0
        %2697 = vmatpush1.bf16.msra.mxu0 0
        %2698 = vmatprep.subr.bf16.mxu0 0
        %2699 = vmatpush1.bf16.msra.mxu0 0
        %2700 = vmatprep.subr.bf16.mxu0 0
        %2701 = vmatpush1.bf16.msra.mxu0 0
        %2702 = vmatprep.subr.bf16.mxu0 0
        %2703 = vmatpush1.bf16.msra.mxu0 0
        %2704 = vmatprep.subr.bf16.mxu0 0
        %2705 = vmatpush1.bf16.msra.mxu0 0
        %2706 = vmatprep.subr.bf16.mxu0 0
        %2707 = vmatpush1.bf16.msra.mxu0 %v2690
        %2708 = vmatprep.subr.bf16.mxu0 0
        %2709 = vmatpush2.bf16.msra.mxu0 0
        %2710 = vmatprep.subr.bf16.mxu0 0
        %2711 = vmatpush2.bf16.msra.mxu0 0
        %2712 = vmatprep.subr.bf16.mxu0 0
        %2713 = vmatpush2.bf16.msra.mxu0 0
        %2714 = vmatprep.subr.bf16.mxu0 0
        %2715 = vmatpush2.bf16.msra.mxu0 0
        %2716 = vmatprep.subr.bf16.mxu0 0
        %2717 = vmatpush2.bf16.msra.mxu0 0
        %2718 = vmatprep.subr.bf16.mxu0 0
        %2719 = vmatpush2.bf16.msra.mxu0 0
        %2720 = vmatprep.subr.bf16.mxu0 0
        %2721 = vmatpush2.bf16.msra.mxu0 0
        %2722 = vmatprep.subr.bf16.mxu0 0
        %2723 = vmatpush2.bf16.msra.mxu0 0
        %2724 = vmatprep.mubr.bf16.mxu0 0
        %2725 = vmatmul.mubr.bf16.gmra.mxu0 %v2678
        %v2726 = vpop.f32.mrf.mxu0
        %v2727 = vadd.f32 %v2647, %v2726
        %v2728 = vpop.f32.mrf.mxu0
        %v2729 = vpop.f32.mrf.mxu0
        %v2730 = vadd.f32 %v2650, %v2729
        %v2731 = vpop.f32.mrf.mxu0
        %2732 = vmatprep.mubr.bf16.mxu0 0
        %2733 = vmatmul.mubr.bf16.gmra.mxu0 %v2681
        %v2734 = vpop.f32.mrf.mxu0
        %v2735 = vadd.f32 %v2655, %v2734
        %v2736 = vpop.f32.mrf.mxu0
        %v2737 = vpop.f32.mrf.mxu0
        %v2738 = vadd.f32 %v2658, %v2737
        %v2739 = vpop.f32.mrf.mxu0
        %2740 = vmatprep.mubr.bf16.mxu0 0
        %2741 = vmatmul.mubr.bf16.gmra.mxu0 %v2684
        %v2742 = vpop.f32.mrf.mxu0
        %v2743 = vadd.f32 %v2663, %v2742
        %v2744 = vpop.f32.mrf.mxu0
        %v2745 = vpop.f32.mrf.mxu0
        %v2746 = vadd.f32 %v2666, %v2745
        %v2747 = vpop.f32.mrf.mxu0
        %2748 = vmatprep.mubr.bf16.mxu0 0
        %2749 = vmatmul.mubr.bf16.gmra.mxu0 %v2687
        %v2750 = vpop.f32.mrf.mxu0
        %v2751 = vadd.f32 %v2671, %v2750
        %v2752 = vpop.f32.mrf.mxu0
        %v2753 = vpop.f32.mrf.mxu0
        %v2754 = vadd.f32 %v2674, %v2753
        %v2755 = vpop.f32.mrf.mxu0
        %2756 = vdwg.mxu0
        %v2757 = vld [vmem:[%s11] sm:$0x1]
        %v2759 = vlaneseq
        %v2760 = vshrl.u32 %v2759, 7
        %v2761 = vsub.s32 0, %v2760
        %v2762 = vrot.slane %v2757, %v2761
        %v2764 = vadd.f32 %v2727, %v2762
        %v2765 = vadd.f32 %v2730, %v2762
        %v2766 = vadd.f32 %v2735, %v2762
        %v2767 = vadd.f32 %v2738, %v2762
        %v2768 = vadd.f32 %v2743, %v2762
        %v2769 = vadd.f32 %v2746, %v2762
        %v2770 = vadd.f32 %v2751, %v2762
        %v2771 = vadd.f32 %v2754, %v2762
        %2772 = vst.msk [vmem:[%s479] sm:$0xff] %vm1000, %v2764
        %2773 = vst.msk [vmem:[%s479 + $0x8] sm:$0xff] %vm1000, %v2765
        %2774 = vst.msk [vmem:[%s479 + $0x10] sm:$0xff] %vm1000, %v2766
        %2775 = vst.msk [vmem:[%s479 + $0x18] sm:$0xff] %vm1000, %v2767
        %2776 = vst.msk [vmem:[%s479 + $0x20] sm:$0xff] %vm1000, %v2768
        %2777 = vst.msk [vmem:[%s479 + $0x28] sm:$0xff] %vm1000, %v2769
        %2778 = vst.msk [vmem:[%s479 + $0x30] sm:$0xff] %vm1000, %v2770
        %2779 = vst.msk [vmem:[%s479 + $0x38] sm:$0xff] %vm1000, %v2771
        %s2780 = sand.u32 %s323, 1
        %s2781 = scalar_lea.sflag [#allocation3], %s2780
        %s2782 = sand.u32 %s323, 1
        %s2783 = smul.addr %s2782, 64
        %s2784 = scalar_lea.vmem [#allocation2], %s2783
        %s2785 = sand.u32 %s349, 1
        %s2786 = scalar_lea.sflag [#allocation5], %s2785
        %s2787 = sand.u32 %s349, 1
        %s2788 = smul.addr %s2787, 128
        %s2789 = scalar_lea.vmem [#allocation4], %s2788
        // Predicated region
        $region73: #{_vit_forward.1} parent=71 // pred_check
          %p2790 = pneg %p333
        $region74: #{_vit_forward.1} parent=71 // pred_check_branch
          %2792 = sbr.rel (%p2790) target = $region76
        $region75: #{_vit_forward.1} parent=71 // pred_region
          %s2794 = ssub.s32 1024, 1024
          %2795 = vsyncadd %s2781, %s2794
          %s2796 = smul.addr %s32, 8
          %s2797 = smul.addr %s2796, 128
          %s2798 = scalar_lea.hbm %s13, %s2797
          %s2799 = sshll.u32 %s2784, 4
          %s2800 = int_to_ptr.vmem [resolvable:$true] %s2799
          %2805 = dma.vmem_to_hbm [thread:$0]  %s2800, 1024, %s2798, %s2781, 128, 128, 8
        $region76: #{_vit_forward.1} parent=71 // pred_fallthru
          _
        // Predicated region
        $region77: #{_vit_forward.1} parent=71 // pred_check
          %p2806 = pneg %p359
        $region78: #{_vit_forward.1} parent=71 // pred_check_branch
          %2808 = sbr.rel (%p2806) target = $region80
        $region79: #{_vit_forward.1} parent=71 // pred_region
          #allocation7 [shape = 'u32[6]{0}', space=smem, size = 0x18, scoped, tag = 'DMA stride descriptor']
          %s2810 = ssub.s32 2048, 2048
          %2811 = vsyncadd %s2786, %s2810
          %s2812 = smul.addr %s32, 8
          %s2813 = smul.addr %s2812, 128
          %s2814 = scalar_lea.hbm %s14, %s2813
          %s2816 = sshll.u32 1, 14
          %s2817 = sxor.u32 4294967295, %s2816
          %s2820 = sshll.u32 7, 18
          %s2821 = sxor.u32 4294967295, %s2820
          %s2822 = sand.u32 0, %s2821
          %s2824 = sor.u32 %s2822, 0
          %s2825 = sshll.u32 %s2789, 4
          %s2826 = int_to_ptr.vmem [resolvable:$true] %s2825
          %2832 = sst [smem:[#allocation7]] 1024
          %s2833 = scalar_lea.smem [#allocation7], 1
          %2834 = sst [smem:[%s2833]] 2048
          %s2835 = scalar_lea.smem [#allocation7], 2
          %2836 = sst [smem:[%s2835]] 8
          %s2837 = scalar_lea.smem [#allocation7], 3
          %2838 = sst [smem:[%s2837]] 128
          %s2839 = scalar_lea.smem [#allocation7], 4
          %2840 = sst [smem:[%s2839]] 128
          %s2841 = scalar_lea.smem [#allocation7], 5
          %2842 = sst [smem:[%s2841]] 8
          %2844 = dma.general %s2826, 2048, %s2814, %s2786, 131072, [#allocation7], %s2824, 0
        $region80: #{_vit_forward.1} parent=71 // pred_fallthru
          _
      $region72: #{_vit_forward.1} parent=5 // pred_fallthru
        _
      %p2845 = scmp.le.s32.totalorder 2, %s27
      // Predicated region
      $region81: #{_vit_forward.1} parent=5 // pred_check
        %p2846 = pneg %p2845
      $region82: #{_vit_forward.1} parent=5 // pred_check_branch
        %2848 = sbr.rel (%p2846) target = $region84
      $region83: #{_vit_forward.1} parent=5 // pred_region
        %s2849 = ssub.s32 %s27, 2
        // Predicated region
        $region85: #{_vit_forward.1} parent=83 // pred_check
          %p2850 = pneg %p339
        $region86: #{_vit_forward.1} parent=83 // pred_check_branch
          %2852 = sbr.rel (%p2850) target = $region88
        $region87: #{_vit_forward.1} parent=83 // pred_region
          %s2853 = sand.u32 %s324, 1
          %s2854 = scalar_lea.sflag [#allocation3], %s2853
          %s2855 = sand.u32 %s324, 1
          %s2856 = smul.addr %s2855, 64
          %s2857 = scalar_lea.vmem [#allocation2], %s2856
          %2858 = dma.done %s2854, 1024
        $region88: #{_vit_forward.1} parent=83 // pred_fallthru
          _
        // Predicated region
        $region89: #{_vit_forward.1} parent=83 // pred_check
          %p2859 = pneg %p365
        $region90: #{_vit_forward.1} parent=83 // pred_check_branch
          %2861 = sbr.rel (%p2859) target = $region92
        $region91: #{_vit_forward.1} parent=83 // pred_region
          %s2862 = sand.u32 %s350, 1
          %s2863 = scalar_lea.sflag [#allocation5], %s2862
          %s2864 = sand.u32 %s350, 1
          %s2865 = smul.addr %s2864, 128
          %s2866 = scalar_lea.vmem [#allocation4], %s2865
          %2867 = dma.done %s2863, 2048
        $region92: #{_vit_forward.1} parent=83 // pred_fallthru
          _
      $region84: #{_vit_forward.1} parent=5 // pred_fallthru
        _
    $region6: #{_vit_forward.1} parent=1 // loop_footer
      %s31 = sadd.s32 1, %s27
    $region7: #{_vit_forward.1} parent=1 // loop_footer_branch
      %26 = sbr.rel target = $region3
    $region8: #{_vit_forward.1} parent=1 // loop_exit
      _
    %2868 = vsyncpa [#allocation3], 1
    %s2869 = scalar_lea.sflag [#allocation3], 1
    %2870 = vsyncpa %s2869, 1
    %2871 = vsyncpa [#allocation5], 1
    %s2872 = scalar_lea.sflag [#allocation5], 1
    %2873 = vsyncpa %s2872, 1

</llo_original>
